<compile_context>
chip_gen: v7x
topology: tpu7x:2x2x1
jax: 0.10.0
libtpu: 0.0.40
codegen_flags: <defaults>
</compile_context>

<pallas_src>
import functools

import jax
import jax.numpy as jnp
from jax.experimental import pallas as pl
from jax.experimental.pallas import tpu as pltpu

HIDDEN = 750       # logical hidden size from the PyTorch module
HIDDEN_PAD = 768   # lane-aligned padded hidden size used by the kernel
LANE = 128         # TPU lane width


def _vae_kernel(state_dim, latent_pad,
                ma_ref, sa_ref, eps_ref,
                e1w_ref, e1b_ref,
                e2w_ref, e2b_ref,
                mlw_ref, mlb_ref,
                d1ws_ref, d1wz_ref, d1b_ref,
                d2w_ref, d2b_ref,
                d3w_ref, d3b_ref,
                u_ref, mean_ref, std_ref):
    f32 = jnp.float32
    bf16 = jnp.bfloat16

    ma = ma_ref[0]                       # scalar max_action from SMEM
    sa = sa_ref[...]                     # (TB, state_dim + action_dim), f32
    eps = eps_ref[...]                   # (TB, latent_pad), f32, zero-padded lanes
    sa16 = sa.astype(bf16)
    state16 = sa[:, :state_dim].astype(bf16)

    # ---- encoder: h = relu(e2(relu(e1([state, action])))) ----
    h = jnp.dot(sa16, e1w_ref[...], preferred_element_type=f32) + e1b_ref[...]
    h = jnp.maximum(h, 0.0)
    h = jnp.dot(h.astype(bf16), e2w_ref[...], preferred_element_type=f32) + e2b_ref[...]
    h = jnp.maximum(h, 0.0)

    # ---- fused, lane-padded mean / log_std head: (TB, 2*latent_pad) ----
    ml = jnp.dot(h.astype(bf16), mlw_ref[...], preferred_element_type=f32) + mlb_ref[...]
    mean = ml[:, :latent_pad]                       # padded lanes are exactly 0
    log_std = jnp.clip(ml[:, latent_pad:], -4.0, 15.0)
    std = jnp.exp(log_std)                          # padded lanes -> exp(0) = 1

    # reparameterize on the padded slab (eps padded lanes are 0 -> z pad lanes = 0)
    z = mean + std * eps

    # ---- decoder: u = max_action * tanh(d3(relu(d2(relu(d1([state, z])))))) ----
    a = jnp.dot(state16, d1ws_ref[...], preferred_element_type=f32)
    a = a + jnp.dot(z.astype(bf16), d1wz_ref[...], preferred_element_type=f32)
    a = jnp.maximum(a + d1b_ref[...], 0.0)
    a = jnp.dot(a.astype(bf16), d2w_ref[...], preferred_element_type=f32) + d2b_ref[...]
    a = jnp.maximum(a, 0.0)
    u = ma * jnp.tanh(
        jnp.dot(a.astype(bf16), d3w_ref[...], preferred_element_type=f32) + d3b_ref[...])

    # All three stores are 128-lane-wide -> unmasked vst.
    u_ref[...] = u
    mean_ref[...] = mean
    std_ref[...] = std


def _vae_forward_impl(kparams, state, action, eps, max_action):
    batch, state_dim = state.shape
    action_dim = action.shape[1]
    latent_dim = eps.shape[1]
    latent_pad = LANE * pl.cdiv(latent_dim, LANE)
    action_pad = LANE * pl.cdiv(action_dim, LANE)

    # [state, action] concat done once in the wrapper -> single fused e1 matmul.
    sa = jnp.concatenate([state, action], axis=1).astype(jnp.float32)
    # Zero-pad eps to lane width so the reparameterization runs on padded slabs.
    eps_p = jnp.pad(eps.astype(jnp.float32), ((0, 0), (0, latent_pad - latent_dim)))
    ma = jnp.reshape(jnp.asarray(max_action, jnp.float32), (1,))

    # Batch tiling: one tile for small batches, 256-row tiles for large ones.
    tb = 256 if batch >= 256 else batch
    padded_batch = tb * pl.cdiv(batch, tb)
    if padded_batch != batch:
        pad = padded_batch - batch
        sa = jnp.pad(sa, ((0, pad), (0, 0)))
        eps_p = jnp.pad(eps_p, ((0, pad), (0, 0)))
    grid = (padded_batch // tb,)

    def batch_spec(width):
        return pl.BlockSpec((tb, width), lambda i: (i, 0))

    def weight_spec(arr):
        # Constant index_map: weights are fetched once and stay VMEM-resident.
        return pl.BlockSpec(arr.shape, lambda i: (0, 0))

    smem_spec = pl.BlockSpec(memory_space=pltpu.MemorySpace.SMEM)

    args = (ma, sa, eps_p,
            kparams["e1w"], kparams["e1b"],
            kparams["e2w"], kparams["e2b"],
            kparams["mlw"], kparams["mlb"],
            kparams["d1w_s"], kparams["d1w_z"], kparams["d1b"],
            kparams["d2w"], kparams["d2b"],
            kparams["d3w"], kparams["d3b"])

    in_specs = [smem_spec,
                batch_spec(state_dim + action_dim),
                batch_spec(latent_pad)] + [weight_spec(a) for a in args[3:]]

    out_specs = (batch_spec(action_pad), batch_spec(latent_pad), batch_spec(latent_pad))
    out_shape = (jax.ShapeDtypeStruct((padded_batch, action_pad), jnp.float32),
                 jax.ShapeDtypeStruct((padded_batch, latent_pad), jnp.float32),
                 jax.ShapeDtypeStruct((padded_batch, latent_pad), jnp.float32))

    u_p, mean_p, std_p = pl.pallas_call(
        functools.partial(_vae_kernel, state_dim, latent_pad),
        grid=grid,
        in_specs=in_specs,
        out_specs=out_specs,
        out_shape=out_shape,
        compiler_params=pltpu.CompilerParams(
            dimension_semantics=("parallel",)),
    )(*args)

    # Slice away batch padding and the zero-padded lanes.
    u = u_p[:batch, :action_dim]
    mean = mean_p[:batch, :latent_dim]
    std = std_p[:batch, :latent_dim]
    return u, mean, std


vae_forward = jax.jit(_vae_forward_impl)


def init_params(key, state_dim, action_dim, latent_dim):
    """PyTorch-default-style init: U(-1/sqrt(fan_in), 1/sqrt(fan_in)), f32, hidden=750."""
    def linear(k, fan_in, fan_out):
        kw, kb = jax.random.split(k)
        bound = 1.0 / float(fan_in) ** 0.5
        w = jax.random.uniform(kw, (fan_in, fan_out), jnp.float32, -bound, bound)
        b = jax.random.uniform(kb, (1, fan_out), jnp.float32, -bound, bound)
        return w, b

    k = jax.random.split(key, 7)
    e1w, e1b = linear(k[0], state_dim + action_dim, HIDDEN)
    e2w, e2b = linear(k[1], HIDDEN, HIDDEN)
    mw, mb = linear(k[2], HIDDEN, latent_dim)
    lw, lb = linear(k[3], HIDDEN, latent_dim)
    d1w, d1b = linear(k[4], state_dim + latent_dim, HIDDEN)
    d2w, d2b = linear(k[5], HIDDEN, HIDDEN)
    d3w, d3b = linear(k[6], HIDDEN, action_dim)
    return dict(e1w=e1w, e1b=e1b, e2w=e2w, e2b=e2b, mw=mw, mb=mb, lw=lw, lb=lb,
                d1w=d1w, d1b=d1b, d2w=d2w, d2b=d2b, d3w=d3w, d3b=d3b)


def pack_params(p, state_dim, action_dim, latent_dim):
    """Kernel-side packing:
       * pad hidden 750->768 with zeros (mathematical no-op),
       * fuse mean/log_std heads into one 2*128-lane slab,
       * pad head / d3 output columns and d1 z-rows to 128 lanes with zeros,
       * split d1 by [state, z],
       * cast all weights to bf16 (biases stay f32)."""
    pad_h = HIDDEN_PAD - HIDDEN
    latent_pad = LANE * pl.cdiv(latent_dim, LANE)
    action_pad = LANE * pl.cdiv(action_dim, LANE)
    bf16 = jnp.bfloat16

    pad_out_h = lambda w: jnp.pad(w, ((0, 0), (0, pad_h)))   # hidden on output axis
    pad_in_h = lambda w: jnp.pad(w, ((0, pad_h), (0, 0)))    # hidden on input axis

    e1w = pad_out_h(p["e1w"])
    e2w = pad_in_h(pad_out_h(p["e2w"]))

    mw = jnp.pad(p["mw"], ((0, pad_h), (0, latent_pad - latent_dim)))
    lw = jnp.pad(p["lw"], ((0, pad_h), (0, latent_pad - latent_dim)))
    mlw = jnp.concatenate([mw, lw], axis=1)                   # (768, 2*latent_pad)
    mb = jnp.pad(p["mb"], ((0, 0), (0, latent_pad - latent_dim)))
    lb = jnp.pad(p["lb"], ((0, 0), (0, latent_pad - latent_dim)))
    mlb = jnp.concatenate([mb, lb], axis=1)

    d1w = pad_out_h(p["d1w"])                                 # (state+latent, 768)
    d1w_s = d1w[:state_dim]
    d1w_z = jnp.pad(d1w[state_dim:], ((0, latent_pad - latent_dim), (0, 0)))

    d2w = pad_in_h(pad_out_h(p["d2w"]))
    d3w = jnp.pad(p["d3w"], ((0, pad_h), (0, action_pad - action_dim)))
    d3b = jnp.pad(p["d3b"], ((0, 0), (0, action_pad - action_dim)))

    return dict(
        e1w=e1w.astype(bf16), e1b=pad_out_h(p["e1b"]),
        e2w=e2w.astype(bf16), e2b=pad_out_h(p["e2b"]),
        mlw=mlw.astype(bf16), mlb=mlb,
        d1w_s=d1w_s.astype(bf16),
        d1w_z=d1w_z.astype(bf16),
        d1b=pad_out_h(p["d1b"]),
        d2w=d2w.astype(bf16), d2b=pad_out_h(p["d2b"]),
        d3w=d3w.astype(bf16), d3b=d3b,
    )


def vae_forward_ref(kparams, state, action, eps, max_action):
    """Pure-JAX reference mirroring the kernel's bf16-input / f32-accum matmuls."""
    bf16, f32 = jnp.bfloat16, jnp.float32

    def mm(x, w):
        return jnp.dot(x.astype(bf16), w, preferred_element_type=f32)

    latent_dim = eps.shape[1]
    action_dim = action.shape[1]
    latent_pad = kparams["mlw"].shape[1] // 2

    sa = jnp.concatenate([state, action], axis=1)
    h = jnp.maximum(mm(sa, kparams["e1w"]) + kparams["e1b"], 0.0)
    h = jnp.maximum(mm(h, kparams["e2w"]) + kparams["e2b"], 0.0)
    ml = mm(h, kparams["mlw"]) + kparams["mlb"]
    mean = ml[:, :latent_dim]
    log_std = jnp.clip(ml[:, latent_pad:latent_pad + latent_dim], -4.0, 15.0)
    std = jnp.exp(log_std)
    z = mean + std * eps
    a = (mm(state, kparams["d1w_s"])
         + mm(z, kparams["d1w_z"][:latent_dim])
         + kparams["d1b"])
    a = jnp.maximum(a, 0.0)
    a = jnp.maximum(mm(a, kparams["d2w"]) + kparams["d2b"], 0.0)
    u = max_action * jnp.tanh(mm(a, kparams["d3w"]) + kparams["d3b"])
    return u[:, :action_dim], mean, std


if __name__ == "__main__":
    state_dim, action_dim, latent_dim = 12, 4, 8
    batch = 8
    max_action = 1.0

    root = jax.random.PRNGKey(0)
    k_params, k_state, k_action, k_eps = jax.random.split(root, 4)

    params = init_params(k_params, state_dim, action_dim, latent_dim)
    kparams = pack_params(params, state_dim, action_dim, latent_dim)

    state = jax.random.normal(k_state, (batch, state_dim), jnp.float32)
    action = jax.random.normal(k_action, (batch, action_dim), jnp.float32)
    # TODO(synk): torch.randn_like(std) is replaced by externally supplied noise.
    eps = jax.random.normal(k_eps, (batch, latent_dim), jnp.float32)
    ma = jnp.asarray(max_action, jnp.float32)

    u, mean, std = jax.block_until_ready(
        vae_forward(kparams, state, action, eps, ma))

    u_ref, mean_ref, std_ref = vae_forward_ref(kparams, state, action, eps, max_action)
    assert u.shape == (batch, action_dim)
    assert mean.shape == (batch, latent_dim) and std.shape == (batch, latent_dim)
    # bf16 matmul inputs in both kernel and reference; allow small rounding skew.
    assert jnp.allclose(u, u_ref, atol=2e-3, rtol=2e-3)
    assert jnp.allclose(mean, mean_ref, atol=2e-3, rtol=2e-3)
    assert jnp.allclose(std, std_ref, atol=2e-3, rtol=2e-3)

    print("KERNEL_OK")
</pallas_src>

<mosaic_0001>
module attributes {stable_mosaic.version = 11 : i64} {
  func.func @_vae_kernel(%arg0: i32, %arg1: memref<1xf32, #tpu.memory_space<smem>>, %arg2: memref<8x16xf32, #tpu.memory_space<vmem>>, %arg3: memref<8x128xf32, #tpu.memory_space<vmem>>, %arg4: memref<16x768xbf16, #tpu.memory_space<vmem>>, %arg5: memref<1x768xf32, #tpu.memory_space<vmem>>, %arg6: memref<768x768xbf16, #tpu.memory_space<vmem>>, %arg7: memref<1x768xf32, #tpu.memory_space<vmem>>, %arg8: memref<768x256xbf16, #tpu.memory_space<vmem>>, %arg9: memref<1x256xf32, #tpu.memory_space<vmem>>, %arg10: memref<12x768xbf16, #tpu.memory_space<vmem>>, %arg11: memref<128x768xbf16, #tpu.memory_space<vmem>>, %arg12: memref<1x768xf32, #tpu.memory_space<vmem>>, %arg13: memref<768x768xbf16, #tpu.memory_space<vmem>>, %arg14: memref<1x768xf32, #tpu.memory_space<vmem>>, %arg15: memref<768x128xbf16, #tpu.memory_space<vmem>>, %arg16: memref<1x128xf32, #tpu.memory_space<vmem>>, %arg17: memref<8x128xf32, #tpu.memory_space<vmem>>, %arg18: memref<8x128xf32, #tpu.memory_space<vmem>>, %arg19: memref<8x128xf32, #tpu.memory_space<vmem>>) attributes {dimension_semantics = [#tpu.dimension_semantics<parallel>], iteration_bounds = array<i64: 1>, scalar_prefetch = 0 : i64, scratch_operands = 0 : i64, tpu.core_type = #tpu.core_type<tc>, window_params = [{transform_indices = @transform_0, window_bounds = array<i64: 1>}, {transform_indices = @transform_1, window_bounds = array<i64: 8, 16>}, {transform_indices = @transform_2, window_bounds = array<i64: 8, 128>}, {pipeline_mode = #tpu.pipeline_mode<synchronous>, transform_indices = @transform_3, window_bounds = array<i64: 16, 768>}, {pipeline_mode = #tpu.pipeline_mode<synchronous>, transform_indices = @transform_4, window_bounds = array<i64: 1, 768>}, {pipeline_mode = #tpu.pipeline_mode<synchronous>, transform_indices = @transform_5, window_bounds = array<i64: 768, 768>}, {pipeline_mode = #tpu.pipeline_mode<synchronous>, transform_indices = @transform_6, window_bounds = array<i64: 1, 768>}, {pipeline_mode = #tpu.pipeline_mode<synchronous>, transform_indices = @transform_7, window_bounds = array<i64: 768, 256>}, {pipeline_mode = #tpu.pipeline_mode<synchronous>, transform_indices = @transform_8, window_bounds = array<i64: 1, 256>}, {pipeline_mode = #tpu.pipeline_mode<synchronous>, transform_indices = @transform_9, window_bounds = array<i64: 12, 768>}, {pipeline_mode = #tpu.pipeline_mode<synchronous>, transform_indices = @transform_10, window_bounds = array<i64: 128, 768>}, {pipeline_mode = #tpu.pipeline_mode<synchronous>, transform_indices = @transform_11, window_bounds = array<i64: 1, 768>}, {pipeline_mode = #tpu.pipeline_mode<synchronous>, transform_indices = @transform_12, window_bounds = array<i64: 768, 768>}, {pipeline_mode = #tpu.pipeline_mode<synchronous>, transform_indices = @transform_13, window_bounds = array<i64: 1, 768>}, {pipeline_mode = #tpu.pipeline_mode<synchronous>, transform_indices = @transform_14, window_bounds = array<i64: 768, 128>}, {pipeline_mode = #tpu.pipeline_mode<synchronous>, transform_indices = @transform_15, window_bounds = array<i64: 1, 128>}, {transform_indices = @transform_16, window_bounds = array<i64: 8, 128>}, {transform_indices = @transform_17, window_bounds = array<i64: 8, 128>}, {transform_indices = @transform_18, window_bounds = array<i64: 8, 128>}]} {
    %c0 = arith.constant 0 : index
    %0 = memref.load %arg1[%c0] : memref<1xf32, #tpu.memory_space<smem>>
    %c0_0 = arith.constant 0 : index
    %c0_1 = arith.constant 0 : index
    %1 = vector.load %arg2[%c0_0, %c0_1] : memref<8x16xf32, #tpu.memory_space<vmem>>, vector<8x16xf32>
    %c0_2 = arith.constant 0 : index
    %c0_3 = arith.constant 0 : index
    %2 = vector.load %arg3[%c0_2, %c0_3] : memref<8x128xf32, #tpu.memory_space<vmem>>, vector<8x128xf32>
    %3 = arith.truncf %1 : vector<8x16xf32> to vector<8x16xbf16>
    %4 = vector.extract_strided_slice %1 {offsets = [0, 0], sizes = [8, 12], strides = [1, 1]} : vector<8x16xf32> to vector<8x12xf32>
    %5 = arith.truncf %4 : vector<8x12xf32> to vector<8x12xbf16>
    %c0_4 = arith.constant 0 : index
    %c0_5 = arith.constant 0 : index
    %6 = vector.load %arg4[%c0_4, %c0_5] : memref<16x768xbf16, #tpu.memory_space<vmem>>, vector<16x768xbf16>
    %cst = arith.constant dense<0.000000e+00> : vector<8x768xf32>
    %7 = tpu.matmul %3, %6, %cst {dimension_numbers = #tpu.dot_dimension_numbers<[1], [0], [0], [1], [0, 0, 1, 1], [], []>} : vector<8x16xbf16>, vector<16x768xbf16>, vector<8x768xf32> -> vector<8x768xf32>
    %c0_6 = arith.constant 0 : index
    %c0_7 = arith.constant 0 : index
    %8 = vector.load %arg5[%c0_6, %c0_7] : memref<1x768xf32, #tpu.memory_space<vmem>>, vector<1x768xf32>
    %9 = vector.broadcast %8 : vector<1x768xf32> to vector<8x768xf32>
    %10 = arith.addf %7, %9 : vector<8x768xf32>
    %cst_8 = arith.constant 0.000000e+00 : f32
    %11 = vector.broadcast %cst_8 : f32 to vector<8x768xf32>
    %12 = arith.maximumf %10, %11 : vector<8x768xf32>
    %13 = arith.truncf %12 : vector<8x768xf32> to vector<8x768xbf16>
    %c0_9 = arith.constant 0 : index
    %c0_10 = arith.constant 0 : index
    %14 = vector.load %arg6[%c0_9, %c0_10] : memref<768x768xbf16, #tpu.memory_space<vmem>>, vector<768x768xbf16>
    %cst_11 = arith.constant dense<0.000000e+00> : vector<8x768xf32>
    %15 = tpu.matmul %13, %14, %cst_11 {dimension_numbers = #tpu.dot_dimension_numbers<[1], [0], [0], [1], [0, 0, 1, 1], [], []>} : vector<8x768xbf16>, vector<768x768xbf16>, vector<8x768xf32> -> vector<8x768xf32>
    %c0_12 = arith.constant 0 : index
    %c0_13 = arith.constant 0 : index
    %16 = vector.load %arg7[%c0_12, %c0_13] : memref<1x768xf32, #tpu.memory_space<vmem>>, vector<1x768xf32>
    %17 = vector.broadcast %16 : vector<1x768xf32> to vector<8x768xf32>
    %18 = arith.addf %15, %17 : vector<8x768xf32>
    %cst_14 = arith.constant 0.000000e+00 : f32
    %19 = vector.broadcast %cst_14 : f32 to vector<8x768xf32>
    %20 = arith.maximumf %18, %19 : vector<8x768xf32>
    %21 = arith.truncf %20 : vector<8x768xf32> to vector<8x768xbf16>
    %c0_15 = arith.constant 0 : index
    %c0_16 = arith.constant 0 : index
    %22 = vector.load %arg8[%c0_15, %c0_16] : memref<768x256xbf16, #tpu.memory_space<vmem>>, vector<768x256xbf16>
    %cst_17 = arith.constant dense<0.000000e+00> : vector<8x256xf32>
    %23 = tpu.matmul %21, %22, %cst_17 {dimension_numbers = #tpu.dot_dimension_numbers<[1], [0], [0], [1], [0, 0, 1, 1], [], []>} : vector<8x768xbf16>, vector<768x256xbf16>, vector<8x256xf32> -> vector<8x256xf32>
    %c0_18 = arith.constant 0 : index
    %c0_19 = arith.constant 0 : index
    %24 = vector.load %arg9[%c0_18, %c0_19] : memref<1x256xf32, #tpu.memory_space<vmem>>, vector<1x256xf32>
    %25 = vector.broadcast %24 : vector<1x256xf32> to vector<8x256xf32>
    %26 = arith.addf %23, %25 : vector<8x256xf32>
    %27 = vector.extract_strided_slice %26 {offsets = [0, 0], sizes = [8, 128], strides = [1, 1]} : vector<8x256xf32> to vector<8x128xf32>
    %28 = vector.extract_strided_slice %26 {offsets = [0, 128], sizes = [8, 128], strides = [1, 1]} : vector<8x256xf32> to vector<8x128xf32>
    %cst_20 = arith.constant -4.000000e+00 : f32
    %cst_21 = arith.constant 1.500000e+01 : f32
    %29 = vector.broadcast %cst_20 : f32 to vector<8x128xf32>
    %30 = arith.maximumf %29, %28 : vector<8x128xf32>
    %31 = vector.broadcast %cst_21 : f32 to vector<8x128xf32>
    %32 = arith.minimumf %31, %30 : vector<8x128xf32>
    %33 = math.exp %32 : vector<8x128xf32>
    %34 = arith.mulf %33, %2 : vector<8x128xf32>
    %35 = arith.addf %27, %34 : vector<8x128xf32>
    %c0_22 = arith.constant 0 : index
    %c0_23 = arith.constant 0 : index
    %36 = vector.load %arg10[%c0_22, %c0_23] : memref<12x768xbf16, #tpu.memory_space<vmem>>, vector<12x768xbf16>
    %cst_24 = arith.constant dense<0.000000e+00> : vector<8x768xf32>
    %37 = tpu.matmul %5, %36, %cst_24 {dimension_numbers = #tpu.dot_dimension_numbers<[1], [0], [0], [1], [0, 0, 1, 1], [], []>} : vector<8x12xbf16>, vector<12x768xbf16>, vector<8x768xf32> -> vector<8x768xf32>
    %38 = arith.truncf %35 : vector<8x128xf32> to vector<8x128xbf16>
    %c0_25 = arith.constant 0 : index
    %c0_26 = arith.constant 0 : index
    %39 = vector.load %arg11[%c0_25, %c0_26] : memref<128x768xbf16, #tpu.memory_space<vmem>>, vector<128x768xbf16>
    %cst_27 = arith.constant dense<0.000000e+00> : vector<8x768xf32>
    %40 = tpu.matmul %38, %39, %cst_27 {dimension_numbers = #tpu.dot_dimension_numbers<[1], [0], [0], [1], [0, 0, 1, 1], [], []>} : vector<8x128xbf16>, vector<128x768xbf16>, vector<8x768xf32> -> vector<8x768xf32>
    %41 = arith.addf %37, %40 : vector<8x768xf32>
    %c0_28 = arith.constant 0 : index
    %c0_29 = arith.constant 0 : index
    %42 = vector.load %arg12[%c0_28, %c0_29] : memref<1x768xf32, #tpu.memory_space<vmem>>, vector<1x768xf32>
    %43 = vector.broadcast %42 : vector<1x768xf32> to vector<8x768xf32>
    %44 = arith.addf %41, %43 : vector<8x768xf32>
    %cst_30 = arith.constant 0.000000e+00 : f32
    %45 = vector.broadcast %cst_30 : f32 to vector<8x768xf32>
    %46 = arith.maximumf %44, %45 : vector<8x768xf32>
    %47 = arith.truncf %46 : vector<8x768xf32> to vector<8x768xbf16>
    %c0_31 = arith.constant 0 : index
    %c0_32 = arith.constant 0 : index
    %48 = vector.load %arg13[%c0_31, %c0_32] : memref<768x768xbf16, #tpu.memory_space<vmem>>, vector<768x768xbf16>
    %cst_33 = arith.constant dense<0.000000e+00> : vector<8x768xf32>
    %49 = tpu.matmul %47, %48, %cst_33 {dimension_numbers = #tpu.dot_dimension_numbers<[1], [0], [0], [1], [0, 0, 1, 1], [], []>} : vector<8x768xbf16>, vector<768x768xbf16>, vector<8x768xf32> -> vector<8x768xf32>
    %c0_34 = arith.constant 0 : index
    %c0_35 = arith.constant 0 : index
    %50 = vector.load %arg14[%c0_34, %c0_35] : memref<1x768xf32, #tpu.memory_space<vmem>>, vector<1x768xf32>
    %51 = vector.broadcast %50 : vector<1x768xf32> to vector<8x768xf32>
    %52 = arith.addf %49, %51 : vector<8x768xf32>
    %cst_36 = arith.constant 0.000000e+00 : f32
    %53 = vector.broadcast %cst_36 : f32 to vector<8x768xf32>
    %54 = arith.maximumf %52, %53 : vector<8x768xf32>
    %55 = arith.truncf %54 : vector<8x768xf32> to vector<8x768xbf16>
    %c0_37 = arith.constant 0 : index
    %c0_38 = arith.constant 0 : index
    %56 = vector.load %arg15[%c0_37, %c0_38] : memref<768x128xbf16, #tpu.memory_space<vmem>>, vector<768x128xbf16>
    %cst_39 = arith.constant dense<0.000000e+00> : vector<8x128xf32>
    %57 = tpu.matmul %55, %56, %cst_39 {dimension_numbers = #tpu.dot_dimension_numbers<[1], [0], [0], [1], [0, 0, 1, 1], [], []>} : vector<8x768xbf16>, vector<768x128xbf16>, vector<8x128xf32> -> vector<8x128xf32>
    %c0_40 = arith.constant 0 : index
    %c0_41 = arith.constant 0 : index
    %58 = vector.load %arg16[%c0_40, %c0_41] : memref<1x128xf32, #tpu.memory_space<vmem>>, vector<1x128xf32>
    %59 = vector.broadcast %58 : vector<1x128xf32> to vector<8x128xf32>
    %60 = arith.addf %57, %59 : vector<8x128xf32>
    %61 = math.tanh %60 : vector<8x128xf32>
    %62 = vector.broadcast %0 : f32 to vector<8x128xf32>
    %63 = arith.mulf %62, %61 : vector<8x128xf32>
    %c0_42 = arith.constant 0 : index
    %c0_43 = arith.constant 0 : index
    %64 = vector.load %arg17[%c0_42, %c0_43] : memref<8x128xf32, #tpu.memory_space<vmem>>, vector<8x128xf32>
    tpu.vector_store %arg17[%c0_42, %c0_43], %63 {strides = array<i32>} : memref<8x128xf32, #tpu.memory_space<vmem>>, vector<8x128xf32>,
    %c0_44 = arith.constant 0 : index
    %c0_45 = arith.constant 0 : index
    %65 = vector.load %arg18[%c0_44, %c0_45] : memref<8x128xf32, #tpu.memory_space<vmem>>, vector<8x128xf32>
    tpu.vector_store %arg18[%c0_44, %c0_45], %27 {strides = array<i32>} : memref<8x128xf32, #tpu.memory_space<vmem>>, vector<8x128xf32>,
    %c0_46 = arith.constant 0 : index
    %c0_47 = arith.constant 0 : index
    %66 = vector.load %arg19[%c0_46, %c0_47] : memref<8x128xf32, #tpu.memory_space<vmem>>, vector<8x128xf32>
    tpu.vector_store %arg19[%c0_46, %c0_47], %33 {strides = array<i32>} : memref<8x128xf32, #tpu.memory_space<vmem>>, vector<8x128xf32>,
    return
  }
  func.func @transform_0(%arg0: i32) -> i32 {
    %c0_i32 = arith.constant 0 : i32
    %c0_i32_0 = arith.constant 0 : i32
    return %c0_i32 : i32
  }
  func.func @transform_1(%arg0: i32) -> (i32, i32) {
    %c0_i32 = arith.constant 0 : i32
    %c0_i32_0 = arith.constant 0 : i32
    return %arg0, %c0_i32 : i32, i32
  }
  func.func @transform_2(%arg0: i32) -> (i32, i32) {
    %c0_i32 = arith.constant 0 : i32
    %c0_i32_0 = arith.constant 0 : i32
    return %arg0, %c0_i32 : i32, i32
  }
  func.func @transform_3(%arg0: i32) -> (i32, i32) {
    %c0_i32 = arith.constant 0 : i32
    %c0_i32_0 = arith.constant 0 : i32
    %c0_i32_1 = arith.constant 0 : i32
    return %c0_i32, %c0_i32_0 : i32, i32
  }
  func.func @transform_4(%arg0: i32) -> (i32, i32) {
    %c0_i32 = arith.constant 0 : i32
    %c0_i32_0 = arith.constant 0 : i32
    %c0_i32_1 = arith.constant 0 : i32
    return %c0_i32, %c0_i32_0 : i32, i32
  }
  func.func @transform_5(%arg0: i32) -> (i32, i32) {
    %c0_i32 = arith.constant 0 : i32
    %c0_i32_0 = arith.constant 0 : i32
    %c0_i32_1 = arith.constant 0 : i32
    return %c0_i32, %c0_i32_0 : i32, i32
  }
  func.func @transform_6(%arg0: i32) -> (i32, i32) {
    %c0_i32 = arith.constant 0 : i32
    %c0_i32_0 = arith.constant 0 : i32
    %c0_i32_1 = arith.constant 0 : i32
    return %c0_i32, %c0_i32_0 : i32, i32
  }
  func.func @transform_7(%arg0: i32) -> (i32, i32) {
    %c0_i32 = arith.constant 0 : i32
    %c0_i32_0 = arith.constant 0 : i32
    %c0_i32_1 = arith.constant 0 : i32
    return %c0_i32, %c0_i32_0 : i32, i32
  }
  func.func @transform_8(%arg0: i32) -> (i32, i32) {
    %c0_i32 = arith.constant 0 : i32
    %c0_i32_0 = arith.constant 0 : i32
    %c0_i32_1 = arith.constant 0 : i32
    return %c0_i32, %c0_i32_0 : i32, i32
  }
  func.func @transform_9(%arg0: i32) -> (i32, i32) {
    %c0_i32 = arith.constant 0 : i32
    %c0_i32_0 = arith.constant 0 : i32
    %c0_i32_1 = arith.constant 0 : i32
    return %c0_i32, %c0_i32_0 : i32, i32
  }
  func.func @transform_10(%arg0: i32) -> (i32, i32) {
    %c0_i32 = arith.constant 0 : i32
    %c0_i32_0 = arith.constant 0 : i32
    %c0_i32_1 = arith.constant 0 : i32
    return %c0_i32, %c0_i32_0 : i32, i32
  }
  func.func @transform_11(%arg0: i32) -> (i32, i32) {
    %c0_i32 = arith.constant 0 : i32
    %c0_i32_0 = arith.constant 0 : i32
    %c0_i32_1 = arith.constant 0 : i32
    return %c0_i32, %c0_i32_0 : i32, i32
  }
  func.func @transform_12(%arg0: i32) -> (i32, i32) {
    %c0_i32 = arith.constant 0 : i32
    %c0_i32_0 = arith.constant 0 : i32
    %c0_i32_1 = arith.constant 0 : i32
    return %c0_i32, %c0_i32_0 : i32, i32
  }
  func.func @transform_13(%arg0: i32) -> (i32, i32) {
    %c0_i32 = arith.constant 0 : i32
    %c0_i32_0 = arith.constant 0 : i32
    %c0_i32_1 = arith.constant 0 : i32
    return %c0_i32, %c0_i32_0 : i32, i32
  }
  func.func @transform_14(%arg0: i32) -> (i32, i32) {
    %c0_i32 = arith.constant 0 : i32
    %c0_i32_0 = arith.constant 0 : i32
    %c0_i32_1 = arith.constant 0 : i32
    return %c0_i32, %c0_i32_0 : i32, i32
  }
  func.func @transform_15(%arg0: i32) -> (i32, i32) {
    %c0_i32 = arith.constant 0 : i32
    %c0_i32_0 = arith.constant 0 : i32
    %c0_i32_1 = arith.constant 0 : i32
    return %c0_i32, %c0_i32_0 : i32, i32
  }
  func.func @transform_16(%arg0: i32) -> (i32, i32) {
    %c0_i32 = arith.constant 0 : i32
    %c0_i32_0 = arith.constant 0 : i32
    return %arg0, %c0_i32 : i32, i32
  }
  func.func @transform_17(%arg0: i32) -> (i32, i32) {
    %c0_i32 = arith.constant 0 : i32
    %c0_i32_0 = arith.constant 0 : i32
    return %arg0, %c0_i32 : i32, i32
  }
  func.func @transform_18(%arg0: i32) -> (i32, i32) {
    %c0_i32 = arith.constant 0 : i32
    %c0_i32_0 = arith.constant 0 : i32
    return %arg0, %c0_i32 : i32, i32
  }
}

</mosaic_0001>

<llo_original>
// kernel: _vae_forward_impl.1
$region0: #{_vae_forward_impl.1}
  #allocation0 [shape = 'u32[]', space=smem, size = 0x4, offset = 0x4, fixed_abs, tag = 'smem constant byte address 0x4 - core index']
  #allocation1 [shape = 'u32[144,128]{1,0:T(1,128)}', space=vmem, size = 0x12000, scoped, tag = 'internal scratch']
  #allocation2 [shape = 'f32[1]{0:T(128)S(6)}', space=smem, size = 0x200, scoped, tag = 'scoped memory for _vae_forward_impl.1']
  %s0 = inlined_call_operand.<no memory space> [shape: f32[1], index: 0, kind: input, shape index: {}]
  %s1 = inlined_call_operand.vmem [shape: f32[8,16], index: 1, kind: input, shape index: {}]
  %s2 = inlined_call_operand.vmem [shape: f32[8,128], index: 2, kind: input, shape index: {}]
  %s3 = inlined_call_operand.hbm [shape: bf16[16,768], index: 3, kind: input, shape index: {}]
  %s4 = inlined_call_operand.hbm [shape: f32[1,768], index: 4, kind: input, shape index: {}]
  %s5 = inlined_call_operand.hbm [shape: bf16[768,768], index: 5, kind: input, shape index: {}]
  %s6 = inlined_call_operand.hbm [shape: f32[1,768], index: 6, kind: input, shape index: {}]
  %s7 = inlined_call_operand.hbm [shape: bf16[768,256], index: 7, kind: input, shape index: {}]
  %s8 = inlined_call_operand.hbm [shape: f32[1,256], index: 8, kind: input, shape index: {}]
  %s9 = inlined_call_operand.hbm [shape: bf16[12,768], index: 9, kind: input, shape index: {}]
  %s10 = inlined_call_operand.hbm [shape: bf16[128,768], index: 10, kind: input, shape index: {}]
  %s11 = inlined_call_operand.hbm [shape: f32[1,768], index: 11, kind: input, shape index: {}]
  %s12 = inlined_call_operand.hbm [shape: bf16[768,768], index: 12, kind: input, shape index: {}]
  %s13 = inlined_call_operand.hbm [shape: f32[1,768], index: 13, kind: input, shape index: {}]
  %s14 = inlined_call_operand.hbm [shape: bf16[768,128], index: 14, kind: input, shape index: {}]
  %s15 = inlined_call_operand.hbm [shape: f32[1,128], index: 15, kind: input, shape index: {}]
  %s16 = inlined_call_operand.vmem [shape: f32[8,128], index: 16, kind: output, shape index: {0}]
  %s17 = inlined_call_operand.hbm [shape: f32[8,128], index: 17, kind: output, shape index: {1}]
  %s18 = inlined_call_operand.hbm [shape: f32[8,128], index: 18, kind: output, shape index: {2}]
  %19 = xla_tuple %s16, %s17, %s18
  %s20 = sld [smem:[#allocation0]]
  $region142: #{_vae_forward_impl.1} parent=0
    _
  %s22 = ssub.s32 1, %s20
  %s23 = scalar_select 0, %s22, %s20
  %24 = sst [smem:[#allocation2]] %s0
  $region1: #{_vae_forward_impl.1} parent=0
    #allocation3 [shape = 'u8[24576]{0}', space=vmem, size = 0x6000, scoped, tag = 'input window, operand 3, single buffered']
    #allocation4 [shape = 's32[1]{0}', space=sflag, size = 0x4, scoped, tag = 'scoped memory for _vae_forward_impl.1']
    #allocation5 [shape = 's32[1]{0}', space=sflag, size = 0x4, scoped, tag = 'scoped memory for _vae_forward_impl.1']
    #allocation6 [shape = 'u8[3072]{0}', space=vmem, size = 0xc00, scoped, tag = 'input window, operand 4, single buffered']
    #allocation7 [shape = 's32[1]{0}', space=sflag, size = 0x4, scoped, tag = 'scoped memory for _vae_forward_impl.1']
    #allocation8 [shape = 'u8[1179648]{0}', space=vmem, size = 0x120000, scoped, tag = 'input window, operand 5, single buffered']
    #allocation9 [shape = 'u8[3072]{0}', space=vmem, size = 0xc00, scoped, tag = 'input window, operand 6, single buffered']
    #allocation10 [shape = 's32[1]{0}', space=sflag, size = 0x4, scoped, tag = 'scoped memory for _vae_forward_impl.1']
    #allocation11 [shape = 'u8[393216]{0}', space=vmem, size = 0x60000, scoped, tag = 'input window, operand 7, single buffered']
    #allocation12 [shape = 'u8[1024]{0}', space=vmem, size = 0x400, scoped, tag = 'input window, operand 8, single buffered']
    #allocation13 [shape = 's32[1]{0}', space=sflag, size = 0x4, scoped, tag = 'scoped memory for _vae_forward_impl.1']
    #allocation14 [shape = 'u8[24576]{0}', space=vmem, size = 0x6000, scoped, tag = 'input window, operand 9, single buffered']
    #allocation15 [shape = 'u8[196608]{0}', space=vmem, size = 0x30000, scoped, tag = 'input window, operand 10, single buffered']
    #allocation16 [shape = 's32[1]{0}', space=sflag, size = 0x4, scoped, tag = 'scoped memory for _vae_forward_impl.1']
    #allocation17 [shape = 'u8[3072]{0}', space=vmem, size = 0xc00, scoped, tag = 'input window, operand 11, single buffered']
    #allocation18 [shape = 'u8[1179648]{0}', space=vmem, size = 0x120000, scoped, tag = 'input window, operand 12, single buffered']
    #allocation19 [shape = 's32[1]{0}', space=sflag, size = 0x4, scoped, tag = 'scoped memory for _vae_forward_impl.1']
    #allocation20 [shape = 'u8[3072]{0}', space=vmem, size = 0xc00, scoped, tag = 'input window, operand 13, single buffered']
    #allocation21 [shape = 'u8[196608]{0}', space=vmem, size = 0x30000, scoped, tag = 'input window, operand 14, single buffered']
    #allocation22 [shape = 's32[1]{0}', space=sflag, size = 0x4, scoped, tag = 'scoped memory for _vae_forward_impl.1']
    #allocation23 [shape = 'u8[512]{0}', space=vmem, size = 0x400, scoped, tag = 'input window, operand 15, single buffered']
    #allocation24 [shape = 'u8[4096]{0}', space=vmem, size = 0x1000, scoped, tag = 'output window, operand 1, single buffered']
    #allocation25 [shape = 'u8[4096]{0}', space=vmem, size = 0x1000, scoped, tag = 'output window, operand 2, single buffered']
    #allocation26 [shape = 's32[1]{0}', space=sflag, size = 0x4, scoped, tag = 'scoped memory for _vae_forward_impl.1']
    %25 = vsyncpa [#allocation4], 0
    %26 = vsyncpa [#allocation7], 0
    %27 = vsyncpa [#allocation10], 0
    %28 = vsyncpa [#allocation13], 0
    %29 = vsyncpa [#allocation16], 0
    %30 = vsyncpa [#allocation19], 0
    %31 = vsyncpa [#allocation22], 0
    %32 = vsyncpa [#allocation5], 0
    %33 = vsyncpa [#allocation26], 0
    // Predicated region
    $region2: #{_vae_forward_impl.1} parent=1 // pred_check
      _
    $region3: #{_vae_forward_impl.1} parent=1 // pred_check_branch
      %35 = sbr.rel (0) target = $region5
    $region4: #{_vae_forward_impl.1} parent=1 // pred_region
      _
    $region5: #{_vae_forward_impl.1} parent=1 // pred_fallthru
      _
    // Predicated region
    $region6: #{_vae_forward_impl.1} parent=1 // pred_check
      _
    $region7: #{_vae_forward_impl.1} parent=1 // pred_check_branch
      %37 = sbr.rel (0) target = $region9
    $region8: #{_vae_forward_impl.1} parent=1 // pred_region
      _
    $region9: #{_vae_forward_impl.1} parent=1 // pred_fallthru
      _
    // Predicated region
    $region10: #{_vae_forward_impl.1} parent=1 // pred_check
      _
    $region11: #{_vae_forward_impl.1} parent=1 // pred_check_branch
      %39 = sbr.rel (0) target = $region13
    $region12: #{_vae_forward_impl.1} parent=1 // pred_region
      _
    $region13: #{_vae_forward_impl.1} parent=1 // pred_fallthru
      _
    // Predicated region
    $region14: #{_vae_forward_impl.1} parent=1 // pred_check
      _
    $region15: #{_vae_forward_impl.1} parent=1 // pred_check_branch
      %41 = sbr.rel (0) target = $region17
    $region16: #{_vae_forward_impl.1} parent=1 // pred_region
      %s43 = ssub.s32 768, 768
      %44 = vsyncadd [#allocation4], %s43
      %s45 = sshll.u32 [#allocation3], 4
      %s46 = int_to_ptr.vmem [resolvable:$true] %s45
      %51 = dma.hbm_to_vmem [thread:$0]  %s3, 768, %s46, [#allocation4], 384, 384, 24
    $region17: #{_vae_forward_impl.1} parent=1 // pred_fallthru
      _
    // Predicated region
    $region18: #{_vae_forward_impl.1} parent=1 // pred_check
      _
    $region19: #{_vae_forward_impl.1} parent=1 // pred_check_branch
      %53 = sbr.rel (0) target = $region21
    $region20: #{_vae_forward_impl.1} parent=1 // pred_region
      %s55 = ssub.s32 96, 96
      %56 = vsyncadd [#allocation7], %s55
      %s58 = sshll.u32 [#allocation6], 4
      %s59 = int_to_ptr.vmem [resolvable:$true] %s58
      %61 = dma.hbm_to_vmem [thread:$0]  %s4, 96, %s59, [#allocation7]
    $region21: #{_vae_forward_impl.1} parent=1 // pred_fallthru
      _
    // Predicated region
    $region22: #{_vae_forward_impl.1} parent=1 // pred_check
      _
    $region23: #{_vae_forward_impl.1} parent=1 // pred_check_branch
      %63 = sbr.rel (0) target = $region25
    $region24: #{_vae_forward_impl.1} parent=1 // pred_region
      %s65 = ssub.s32 36864, 36864
      %66 = vsyncadd [#allocation7], %s65
      %s67 = sshll.u32 [#allocation8], 4
      %s68 = int_to_ptr.vmem [resolvable:$true] %s67
      %73 = dma.hbm_to_vmem [thread:$0]  %s5, 36864, %s68, [#allocation7], 384, 384, 24
    $region25: #{_vae_forward_impl.1} parent=1 // pred_fallthru
      _
    // Predicated region
    $region26: #{_vae_forward_impl.1} parent=1 // pred_check
      _
    $region27: #{_vae_forward_impl.1} parent=1 // pred_check_branch
      %75 = sbr.rel (0) target = $region29
    $region28: #{_vae_forward_impl.1} parent=1 // pred_region
      %s77 = ssub.s32 96, 96
      %78 = vsyncadd [#allocation10], %s77
      %s80 = sshll.u32 [#allocation9], 4
      %s81 = int_to_ptr.vmem [resolvable:$true] %s80
      %83 = dma.hbm_to_vmem [thread:$0]  %s6, 96, %s81, [#allocation10]
    $region29: #{_vae_forward_impl.1} parent=1 // pred_fallthru
      _
    // Predicated region
    $region30: #{_vae_forward_impl.1} parent=1 // pred_check
      _
    $region31: #{_vae_forward_impl.1} parent=1 // pred_check_branch
      %85 = sbr.rel (0) target = $region33
    $region32: #{_vae_forward_impl.1} parent=1 // pred_region
      %s87 = ssub.s32 12288, 12288
      %88 = vsyncadd [#allocation10], %s87
      %s89 = sshll.u32 [#allocation11], 4
      %s90 = int_to_ptr.vmem [resolvable:$true] %s89
      %95 = dma.hbm_to_vmem [thread:$0]  %s7, 12288, %s90, [#allocation10], 128, 128, 8
    $region33: #{_vae_forward_impl.1} parent=1 // pred_fallthru
      _
    // Predicated region
    $region34: #{_vae_forward_impl.1} parent=1 // pred_check
      _
    $region35: #{_vae_forward_impl.1} parent=1 // pred_check_branch
      %97 = sbr.rel (0) target = $region37
    $region36: #{_vae_forward_impl.1} parent=1 // pred_region
      %s99 = ssub.s32 32, 32
      %100 = vsyncadd [#allocation13], %s99
      %s102 = sshll.u32 [#allocation12], 4
      %s103 = int_to_ptr.vmem [resolvable:$true] %s102
      %105 = dma.hbm_to_vmem [thread:$0]  %s8, 32, %s103, [#allocation13]
    $region37: #{_vae_forward_impl.1} parent=1 // pred_fallthru
      _
    // Predicated region
    $region38: #{_vae_forward_impl.1} parent=1 // pred_check
      _
    $region39: #{_vae_forward_impl.1} parent=1 // pred_check_branch
      %107 = sbr.rel (0) target = $region41
    $region40: #{_vae_forward_impl.1} parent=1 // pred_region
      %s109 = ssub.s32 768, 768
      %110 = vsyncadd [#allocation13], %s109
      %s111 = sshll.u32 [#allocation14], 4
      %s112 = int_to_ptr.vmem [resolvable:$true] %s111
      %117 = dma.hbm_to_vmem [thread:$0]  %s9, 768, %s112, [#allocation13], 384, 384, 24
    $region41: #{_vae_forward_impl.1} parent=1 // pred_fallthru
      _
    // Predicated region
    $region42: #{_vae_forward_impl.1} parent=1 // pred_check
      _
    $region43: #{_vae_forward_impl.1} parent=1 // pred_check_branch
      %119 = sbr.rel (0) target = $region45
    $region44: #{_vae_forward_impl.1} parent=1 // pred_region
      %s121 = ssub.s32 6144, 6144
      %122 = vsyncadd [#allocation16], %s121
      %s123 = sshll.u32 [#allocation15], 4
      %s124 = int_to_ptr.vmem [resolvable:$true] %s123
      %129 = dma.hbm_to_vmem [thread:$0]  %s10, 6144, %s124, [#allocation16], 384, 384, 24
    $region45: #{_vae_forward_impl.1} parent=1 // pred_fallthru
      _
    // Predicated region
    $region46: #{_vae_forward_impl.1} parent=1 // pred_check
      _
    $region47: #{_vae_forward_impl.1} parent=1 // pred_check_branch
      %131 = sbr.rel (0) target = $region49
    $region48: #{_vae_forward_impl.1} parent=1 // pred_region
      %s133 = ssub.s32 96, 96
      %134 = vsyncadd [#allocation16], %s133
      %s136 = sshll.u32 [#allocation17], 4
      %s137 = int_to_ptr.vmem [resolvable:$true] %s136
      %139 = dma.hbm_to_vmem [thread:$0]  %s11, 96, %s137, [#allocation16]
    $region49: #{_vae_forward_impl.1} parent=1 // pred_fallthru
      _
    // Predicated region
    $region50: #{_vae_forward_impl.1} parent=1 // pred_check
      _
    $region51: #{_vae_forward_impl.1} parent=1 // pred_check_branch
      %141 = sbr.rel (0) target = $region53
    $region52: #{_vae_forward_impl.1} parent=1 // pred_region
      %s143 = ssub.s32 36864, 36864
      %144 = vsyncadd [#allocation19], %s143
      %s145 = sshll.u32 [#allocation18], 4
      %s146 = int_to_ptr.vmem [resolvable:$true] %s145
      %151 = dma.hbm_to_vmem [thread:$0]  %s12, 36864, %s146, [#allocation19], 384, 384, 24
    $region53: #{_vae_forward_impl.1} parent=1 // pred_fallthru
      _
    // Predicated region
    $region54: #{_vae_forward_impl.1} parent=1 // pred_check
      _
    $region55: #{_vae_forward_impl.1} parent=1 // pred_check_branch
      %153 = sbr.rel (0) target = $region57
    $region56: #{_vae_forward_impl.1} parent=1 // pred_region
      %s155 = ssub.s32 96, 96
      %156 = vsyncadd [#allocation19], %s155
      %s158 = sshll.u32 [#allocation20], 4
      %s159 = int_to_ptr.vmem [resolvable:$true] %s158
      %161 = dma.hbm_to_vmem [thread:$0]  %s13, 96, %s159, [#allocation19]
    $region57: #{_vae_forward_impl.1} parent=1 // pred_fallthru
      _
    // Predicated region
    $region58: #{_vae_forward_impl.1} parent=1 // pred_check
      _
    $region59: #{_vae_forward_impl.1} parent=1 // pred_check_branch
      %163 = sbr.rel (0) target = $region61
    $region60: #{_vae_forward_impl.1} parent=1 // pred_region
      %s165 = ssub.s32 6144, 6144
      %166 = vsyncadd [#allocation22], %s165
      %s167 = sshll.u32 [#allocation21], 4
      %s168 = int_to_ptr.vmem [resolvable:$true] %s167
      %173 = dma.hbm_to_vmem [thread:$0]  %s14, 6144, %s168, [#allocation22], 64, 64, 4
    $region61: #{_vae_forward_impl.1} parent=1 // pred_fallthru
      _
    // Predicated region
    $region62: #{_vae_forward_impl.1} parent=1 // pred_check
      _
    $region63: #{_vae_forward_impl.1} parent=1 // pred_check_branch
      %175 = sbr.rel (0) target = $region65
    $region64: #{_vae_forward_impl.1} parent=1 // pred_region
      %s177 = ssub.s32 16, 16
      %178 = vsyncadd [#allocation22], %s177
      %s180 = sshll.u32 [#allocation23], 4
      %s181 = int_to_ptr.vmem [resolvable:$true] %s180
      %183 = dma.hbm_to_vmem [thread:$0]  %s15, 16, %s181, [#allocation22]
    $region65: #{_vae_forward_impl.1} parent=1 // pred_fallthru
      _
    // Predicated region
    $region66: #{_vae_forward_impl.1} parent=1 // pred_check
      _
    $region67: #{_vae_forward_impl.1} parent=1 // pred_check_branch
      %185 = sbr.rel (0) target = $region69
    $region68: #{_vae_forward_impl.1} parent=1 // pred_region
      %186 = dma.done [#allocation4], 768
    $region69: #{_vae_forward_impl.1} parent=1 // pred_fallthru
      _
    // Predicated region
    $region70: #{_vae_forward_impl.1} parent=1 // pred_check
      _
    $region71: #{_vae_forward_impl.1} parent=1 // pred_check_branch
      %188 = sbr.rel (0) target = $region73
    $region72: #{_vae_forward_impl.1} parent=1 // pred_region
      %189 = dma.done [#allocation7], 96
    $region73: #{_vae_forward_impl.1} parent=1 // pred_fallthru
      _
    // Predicated region
    $region74: #{_vae_forward_impl.1} parent=1 // pred_check
      _
    $region75: #{_vae_forward_impl.1} parent=1 // pred_check_branch
      %191 = sbr.rel (0) target = $region77
    $region76: #{_vae_forward_impl.1} parent=1 // pred_region
      %192 = dma.done [#allocation7], 36864
    $region77: #{_vae_forward_impl.1} parent=1 // pred_fallthru
      _
    // Predicated region
    $region78: #{_vae_forward_impl.1} parent=1 // pred_check
      _
    $region79: #{_vae_forward_impl.1} parent=1 // pred_check_branch
      %194 = sbr.rel (0) target = $region81
    $region80: #{_vae_forward_impl.1} parent=1 // pred_region
      %195 = dma.done [#allocation10], 96
    $region81: #{_vae_forward_impl.1} parent=1 // pred_fallthru
      _
    // Predicated region
    $region82: #{_vae_forward_impl.1} parent=1 // pred_check
      _
    $region83: #{_vae_forward_impl.1} parent=1 // pred_check_branch
      %197 = sbr.rel (0) target = $region85
    $region84: #{_vae_forward_impl.1} parent=1 // pred_region
      %198 = dma.done [#allocation10], 12288
    $region85: #{_vae_forward_impl.1} parent=1 // pred_fallthru
      _
    // Predicated region
    $region86: #{_vae_forward_impl.1} parent=1 // pred_check
      _
    $region87: #{_vae_forward_impl.1} parent=1 // pred_check_branch
      %200 = sbr.rel (0) target = $region89
    $region88: #{_vae_forward_impl.1} parent=1 // pred_region
      %201 = dma.done [#allocation13], 32
    $region89: #{_vae_forward_impl.1} parent=1 // pred_fallthru
      _
    // Predicated region
    $region90: #{_vae_forward_impl.1} parent=1 // pred_check
      _
    $region91: #{_vae_forward_impl.1} parent=1 // pred_check_branch
      %203 = sbr.rel (0) target = $region93
    $region92: #{_vae_forward_impl.1} parent=1 // pred_region
      %204 = dma.done [#allocation13], 768
    $region93: #{_vae_forward_impl.1} parent=1 // pred_fallthru
      _
    // Predicated region
    $region94: #{_vae_forward_impl.1} parent=1 // pred_check
      _
    $region95: #{_vae_forward_impl.1} parent=1 // pred_check_branch
      %206 = sbr.rel (0) target = $region97
    $region96: #{_vae_forward_impl.1} parent=1 // pred_region
      %207 = dma.done [#allocation16], 6144
    $region97: #{_vae_forward_impl.1} parent=1 // pred_fallthru
      _
    // Predicated region
    $region98: #{_vae_forward_impl.1} parent=1 // pred_check
      _
    $region99: #{_vae_forward_impl.1} parent=1 // pred_check_branch
      %209 = sbr.rel (0) target = $region101
    $region100: #{_vae_forward_impl.1} parent=1 // pred_region
      %210 = dma.done [#allocation16], 96
    $region101: #{_vae_forward_impl.1} parent=1 // pred_fallthru
      _
    // Predicated region
    $region102: #{_vae_forward_impl.1} parent=1 // pred_check
      _
    $region103: #{_vae_forward_impl.1} parent=1 // pred_check_branch
      %212 = sbr.rel (0) target = $region105
    $region104: #{_vae_forward_impl.1} parent=1 // pred_region
      %213 = dma.done [#allocation19], 36864
    $region105: #{_vae_forward_impl.1} parent=1 // pred_fallthru
      _
    // Predicated region
    $region106: #{_vae_forward_impl.1} parent=1 // pred_check
      _
    $region107: #{_vae_forward_impl.1} parent=1 // pred_check_branch
      %215 = sbr.rel (0) target = $region109
    $region108: #{_vae_forward_impl.1} parent=1 // pred_region
      %216 = dma.done [#allocation19], 96
    $region109: #{_vae_forward_impl.1} parent=1 // pred_fallthru
      _
    // Predicated region
    $region110: #{_vae_forward_impl.1} parent=1 // pred_check
      _
    $region111: #{_vae_forward_impl.1} parent=1 // pred_check_branch
      %218 = sbr.rel (0) target = $region113
    $region112: #{_vae_forward_impl.1} parent=1 // pred_region
      %219 = dma.done [#allocation22], 6144
    $region113: #{_vae_forward_impl.1} parent=1 // pred_fallthru
      _
    // Predicated region
    $region114: #{_vae_forward_impl.1} parent=1 // pred_check
      _
    $region115: #{_vae_forward_impl.1} parent=1 // pred_check_branch
      %221 = sbr.rel (0) target = $region117
    $region116: #{_vae_forward_impl.1} parent=1 // pred_region
      %222 = dma.done [#allocation22], 16
    $region117: #{_vae_forward_impl.1} parent=1 // pred_fallthru
      _
    %s224 = sld [smem:[#allocation2]]
    %v225 = vld [vmem:[%s1] sm:$0xff]
    %v226 = vld [vmem:[%s2] sm:$0xff]
    %v227 = vpack.c.bf16 %v225, %v225
    %v228 = vld [vmem:[#allocation3] sm:$0xff]
    %v229 = vld [vmem:[#allocation3 + $0x8] sm:$0xff]
    %v230 = vld [vmem:[#allocation3 + $0x10] sm:$0xff]
    %v231 = vld [vmem:[#allocation3 + $0x18] sm:$0xff]
    %v232 = vld [vmem:[#allocation3 + $0x20] sm:$0xff]
    %v233 = vld [vmem:[#allocation3 + $0x28] sm:$0xff]
    %v234 = vld [vmem:[#allocation6] sm:$0x3f]
    %v236 = vlaneseq
    %v237 = vshrl.u32 %v236, 7
    %v238 = vsub.s32 0, %v237
    %v239 = vrot.slane %v234, %v238
    %v240 = vlaneseq
    %v241 = vshrl.u32 %v240, 7
    %v242 = vsub.s32 1, %v241
    %v243 = vrot.slane %v234, %v242
    %v244 = vlaneseq
    %v245 = vshrl.u32 %v244, 7
    %v246 = vsub.s32 2, %v245
    %v247 = vrot.slane %v234, %v246
    %v248 = vlaneseq
    %v249 = vshrl.u32 %v248, 7
    %v250 = vsub.s32 3, %v249
    %v251 = vrot.slane %v234, %v250
    %v252 = vlaneseq
    %v253 = vshrl.u32 %v252, 7
    %v254 = vsub.s32 4, %v253
    %v255 = vrot.slane %v234, %v254
    %v256 = vlaneseq
    %v257 = vshrl.u32 %v256, 7
    %v258 = vsub.s32 5, %v257
    %v259 = vrot.slane %v234, %v258
    %v272 = vunpack.c.l.b16 %v228
    %v273 = vunpack.c.h.b16 %v228
    %v274 = vunpack.c.l.b16 %v229
    %v275 = vunpack.c.h.b16 %v229
    %v276 = vunpack.c.l.b16 %v230
    %v277 = vunpack.c.h.b16 %v230
    %v278 = vunpack.c.l.b16 %v231
    %v279 = vunpack.c.h.b16 %v231
    %v280 = vunpack.c.l.b16 %v232
    %v281 = vunpack.c.h.b16 %v232
    %v282 = vunpack.c.l.b16 %v233
    %v283 = vunpack.c.h.b16 %v233
    %v284 = vpack.c.b16 %v278, %v272
    %v285 = vpack.c.b16 %v279, %v273
    %v286 = vpack.c.b16 %v280, %v274
    %v287 = vpack.c.b16 %v281, %v275
    %v288 = vpack.c.b16 %v282, %v276
    %v289 = vpack.c.b16 %v283, %v277
    %vm296 = vcmask 130048
    %v298 = vsel %vm296, %v227, 0
    %300 = vmatprep.subr.bf16.mxu0 %v285
    %301 = vmatpush1.bf16.msra.mxu0 %v284
    %302 = vmatprep.subr.bf16.mxu0 0
    %303 = vmatpush1.bf16.msra.mxu0 0
    %304 = vmatprep.subr.bf16.mxu0 0
    %305 = vmatpush1.bf16.msra.mxu0 0
    %306 = vmatprep.subr.bf16.mxu0 0
    %307 = vmatpush1.bf16.msra.mxu0 0
    %308 = vmatprep.subr.bf16.mxu0 0
    %309 = vmatpush1.bf16.msra.mxu0 0
    %310 = vmatprep.subr.bf16.mxu0 0
    %311 = vmatpush1.bf16.msra.mxu0 0
    %312 = vmatprep.subr.bf16.mxu0 0
    %313 = vmatpush1.bf16.msra.mxu0 0
    %314 = vmatprep.subr.bf16.mxu0 0
    %315 = vmatpush1.bf16.msra.mxu0 0
    %316 = vmatprep.subr.bf16.mxu0 0
    %317 = vmatpush1.bf16.msra.mxu0 0
    %318 = vmatprep.subr.bf16.mxu0 0
    %319 = vmatpush1.bf16.msra.mxu0 0
    %320 = vmatprep.subr.bf16.mxu0 0
    %321 = vmatpush1.bf16.msra.mxu0 0
    %322 = vmatprep.subr.bf16.mxu0 0
    %323 = vmatpush1.bf16.msra.mxu0 0
    %324 = vmatprep.subr.bf16.mxu0 0
    %325 = vmatpush1.bf16.msra.mxu0 0
    %326 = vmatprep.subr.bf16.mxu0 0
    %327 = vmatpush1.bf16.msra.mxu0 0
    %328 = vmatprep.subr.bf16.mxu0 0
    %329 = vmatpush1.bf16.msra.mxu0 0
    %330 = vmatprep.subr.bf16.mxu0 0
    %331 = vmatpush1.bf16.msra.mxu0 0
    %332 = vmatprep.mubr.bf16.mxu0 0
    %333 = vmatmul.mubr.bf16.gmra.mrb[0].mxu0 %v298
    %v334 = vpop.f32.mrb[0].mxu0
    %v335 = vadd.f32 %v239, %v334
    %v336 = vpop.f32.mrb[0].mxu0
    %v337 = vadd.f32 %v243, %v336
    %v338 = vpop.f32.mrb[0].mxu0
    %v339 = vpop.f32.mrb[0].mxu0
    %340 = vdwg.mxu0
    %341 = vmatprep.subr.bf16.mxu0 %v287
    %342 = vmatpush1.bf16.msra.mxu0 %v286
    %343 = vmatprep.subr.bf16.mxu0 0
    %344 = vmatpush1.bf16.msra.mxu0 0
    %345 = vmatprep.subr.bf16.mxu0 0
    %346 = vmatpush1.bf16.msra.mxu0 0
    %347 = vmatprep.subr.bf16.mxu0 0
    %348 = vmatpush1.bf16.msra.mxu0 0
    %349 = vmatprep.subr.bf16.mxu0 0
    %350 = vmatpush1.bf16.msra.mxu0 0
    %351 = vmatprep.subr.bf16.mxu0 0
    %352 = vmatpush1.bf16.msra.mxu0 0
    %353 = vmatprep.subr.bf16.mxu0 0
    %354 = vmatpush1.bf16.msra.mxu0 0
    %355 = vmatprep.subr.bf16.mxu0 0
    %356 = vmatpush1.bf16.msra.mxu0 0
    %357 = vmatprep.subr.bf16.mxu0 0
    %358 = vmatpush1.bf16.msra.mxu0 0
    %359 = vmatprep.subr.bf16.mxu0 0
    %360 = vmatpush1.bf16.msra.mxu0 0
    %361 = vmatprep.subr.bf16.mxu0 0
    %362 = vmatpush1.bf16.msra.mxu0 0
    %363 = vmatprep.subr.bf16.mxu0 0
    %364 = vmatpush1.bf16.msra.mxu0 0
    %365 = vmatprep.subr.bf16.mxu0 0
    %366 = vmatpush1.bf16.msra.mxu0 0
    %367 = vmatprep.subr.bf16.mxu0 0
    %368 = vmatpush1.bf16.msra.mxu0 0
    %369 = vmatprep.subr.bf16.mxu0 0
    %370 = vmatpush1.bf16.msra.mxu0 0
    %371 = vmatprep.subr.bf16.mxu0 0
    %372 = vmatpush1.bf16.msra.mxu0 0
    %373 = vmatprep.mubr.bf16.mxu0 0
    %374 = vmatmul.mubr.bf16.gmra.mrb[0].mxu0 %v298
    %v375 = vpop.f32.mrb[0].mxu0
    %v376 = vadd.f32 %v247, %v375
    %v377 = vpop.f32.mrb[0].mxu0
    %v378 = vadd.f32 %v251, %v377
    %v379 = vpop.f32.mrb[0].mxu0
    %v380 = vpop.f32.mrb[0].mxu0
    %381 = vdwg.mxu0
    %382 = vmatprep.subr.bf16.mxu0 %v289
    %383 = vmatpush1.bf16.msra.mxu0 %v288
    %384 = vmatprep.subr.bf16.mxu0 0
    %385 = vmatpush1.bf16.msra.mxu0 0
    %386 = vmatprep.subr.bf16.mxu0 0
    %387 = vmatpush1.bf16.msra.mxu0 0
    %388 = vmatprep.subr.bf16.mxu0 0
    %389 = vmatpush1.bf16.msra.mxu0 0
    %390 = vmatprep.subr.bf16.mxu0 0
    %391 = vmatpush1.bf16.msra.mxu0 0
    %392 = vmatprep.subr.bf16.mxu0 0
    %393 = vmatpush1.bf16.msra.mxu0 0
    %394 = vmatprep.subr.bf16.mxu0 0
    %395 = vmatpush1.bf16.msra.mxu0 0
    %396 = vmatprep.subr.bf16.mxu0 0
    %397 = vmatpush1.bf16.msra.mxu0 0
    %398 = vmatprep.subr.bf16.mxu0 0
    %399 = vmatpush1.bf16.msra.mxu0 0
    %400 = vmatprep.subr.bf16.mxu0 0
    %401 = vmatpush1.bf16.msra.mxu0 0
    %402 = vmatprep.subr.bf16.mxu0 0
    %403 = vmatpush1.bf16.msra.mxu0 0
    %404 = vmatprep.subr.bf16.mxu0 0
    %405 = vmatpush1.bf16.msra.mxu0 0
    %406 = vmatprep.subr.bf16.mxu0 0
    %407 = vmatpush1.bf16.msra.mxu0 0
    %408 = vmatprep.subr.bf16.mxu0 0
    %409 = vmatpush1.bf16.msra.mxu0 0
    %410 = vmatprep.subr.bf16.mxu0 0
    %411 = vmatpush1.bf16.msra.mxu0 0
    %412 = vmatprep.subr.bf16.mxu0 0
    %413 = vmatpush1.bf16.msra.mxu0 0
    %414 = vmatprep.mubr.bf16.mxu0 0
    %415 = vmatmul.mubr.bf16.gmra.mrb[0].mxu0 %v298
    %v416 = vpop.f32.mrb[0].mxu0
    %v417 = vadd.f32 %v255, %v416
    %v418 = vpop.f32.mrb[0].mxu0
    %v419 = vadd.f32 %v259, %v418
    %v420 = vpop.f32.mrb[0].mxu0
    %v421 = vpop.f32.mrb[0].mxu0
    %422 = vdwg.mxu0
    %v423 = vmax.f32 %v335, 0.0
    %v424 = vmax.f32 %v337, 0.0
    %v425 = vmax.f32 %v376, 0.0
    %v426 = vmax.f32 %v378, 0.0
    %v427 = vmax.f32 %v417, 0.0
    %v428 = vmax.f32 %v419, 0.0
    %v429 = vpack.c.bf16 %v423, %v423
    %v430 = vpack.c.bf16 %v424, %v424
    %v431 = vpack.c.bf16 %v425, %v425
    %v432 = vpack.c.bf16 %v426, %v426
    %v433 = vpack.c.bf16 %v427, %v427
    %v434 = vpack.c.bf16 %v428, %v428
    %v435 = vld [vmem:[#allocation8] sm:$0xff]
    %v436 = vld [vmem:[#allocation8 + $0x8] sm:$0xff]
    %v437 = vld [vmem:[#allocation8 + $0x10] sm:$0xff]
    %v438 = vld [vmem:[#allocation8 + $0x18] sm:$0xff]
    %v439 = vld [vmem:[#allocation8 + $0x20] sm:$0xff]
    %v440 = vld [vmem:[#allocation8 + $0x28] sm:$0xff]
    %v441 = vld [vmem:[#allocation8 + $0x30] sm:$0xff]
    %v442 = vld [vmem:[#allocation8 + $0x38] sm:$0xff]
    %v443 = vld [vmem:[#allocation8 + $0x40] sm:$0xff]
    %v444 = vld [vmem:[#allocation8 + $0x48] sm:$0xff]
    %v445 = vld [vmem:[#allocation8 + $0x50] sm:$0xff]
    %v446 = vld [vmem:[#allocation8 + $0x58] sm:$0xff]
    %v447 = vld [vmem:[#allocation8 + $0x60] sm:$0xff]
    %v448 = vld [vmem:[#allocation8 + $0x68] sm:$0xff]
    %v449 = vld [vmem:[#allocation8 + $0x70] sm:$0xff]
    %v450 = vld [vmem:[#allocation8 + $0x78] sm:$0xff]
    %v451 = vld [vmem:[#allocation8 + $0x80] sm:$0xff]
    %v452 = vld [vmem:[#allocation8 + $0x88] sm:$0xff]
    %v453 = vld [vmem:[#allocation8 + $0x90] sm:$0xff]
    %v454 = vld [vmem:[#allocation8 + $0x98] sm:$0xff]
    %v455 = vld [vmem:[#allocation8 + $0xa0] sm:$0xff]
    %v456 = vld [vmem:[#allocation8 + $0xa8] sm:$0xff]
    %v457 = vld [vmem:[#allocation8 + $0xb0] sm:$0xff]
    %v458 = vld [vmem:[#allocation8 + $0xb8] sm:$0xff]
    %v459 = vld [vmem:[#allocation8 + $0xc0] sm:$0xff]
    %v460 = vld [vmem:[#allocation8 + $0xc8] sm:$0xff]
    %v461 = vld [vmem:[#allocation8 + $0xd0] sm:$0xff]
    %v462 = vld [vmem:[#allocation8 + $0xd8] sm:$0xff]
    %v463 = vld [vmem:[#allocation8 + $0xe0] sm:$0xff]
    %v464 = vld [vmem:[#allocation8 + $0xe8] sm:$0xff]
    %v465 = vld [vmem:[#allocation8 + $0xf0] sm:$0xff]
    %v466 = vld [vmem:[#allocation8 + $0xf8] sm:$0xff]
    %v467 = vld [vmem:[#allocation8 + $0x100] sm:$0xff]
    %v468 = vld [vmem:[#allocation8 + $0x108] sm:$0xff]
    %v469 = vld [vmem:[#allocation8 + $0x110] sm:$0xff]
    %v470 = vld [vmem:[#allocation8 + $0x118] sm:$0xff]
    %v471 = vld [vmem:[#allocation8 + $0x120] sm:$0xff]
    %v472 = vld [vmem:[#allocation8 + $0x128] sm:$0xff]
    %v473 = vld [vmem:[#allocation8 + $0x130] sm:$0xff]
    %v474 = vld [vmem:[#allocation8 + $0x138] sm:$0xff]
    %v475 = vld [vmem:[#allocation8 + $0x140] sm:$0xff]
    %v476 = vld [vmem:[#allocation8 + $0x148] sm:$0xff]
    %v477 = vld [vmem:[#allocation8 + $0x150] sm:$0xff]
    %v478 = vld [vmem:[#allocation8 + $0x158] sm:$0xff]
    %v479 = vld [vmem:[#allocation8 + $0x160] sm:$0xff]
    %v480 = vld [vmem:[#allocation8 + $0x168] sm:$0xff]
    %v481 = vld [vmem:[#allocation8 + $0x170] sm:$0xff]
    %v482 = vld [vmem:[#allocation8 + $0x178] sm:$0xff]
    %v483 = vld [vmem:[#allocation8 + $0x180] sm:$0xff]
    %v484 = vld [vmem:[#allocation8 + $0x188] sm:$0xff]
    %v485 = vld [vmem:[#allocation8 + $0x190] sm:$0xff]
    %v486 = vld [vmem:[#allocation8 + $0x198] sm:$0xff]
    %v487 = vld [vmem:[#allocation8 + $0x1a0] sm:$0xff]
    %v488 = vld [vmem:[#allocation8 + $0x1a8] sm:$0xff]
    %v489 = vld [vmem:[#allocation8 + $0x1b0] sm:$0xff]
    %v490 = vld [vmem:[#allocation8 + $0x1b8] sm:$0xff]
    %v491 = vld [vmem:[#allocation8 + $0x1c0] sm:$0xff]
    %v492 = vld [vmem:[#allocation8 + $0x1c8] sm:$0xff]
    %v493 = vld [vmem:[#allocation8 + $0x1d0] sm:$0xff]
    %v494 = vld [vmem:[#allocation8 + $0x1d8] sm:$0xff]
    %v495 = vld [vmem:[#allocation8 + $0x1e0] sm:$0xff]
    %v496 = vld [vmem:[#allocation8 + $0x1e8] sm:$0xff]
    %v497 = vld [vmem:[#allocation8 + $0x1f0] sm:$0xff]
    %v498 = vld [vmem:[#allocation8 + $0x1f8] sm:$0xff]
    %v499 = vld [vmem:[#allocation8 + $0x200] sm:$0xff]
    %v500 = vld [vmem:[#allocation8 + $0x208] sm:$0xff]
    %v501 = vld [vmem:[#allocation8 + $0x210] sm:$0xff]
    %v502 = vld [vmem:[#allocation8 + $0x218] sm:$0xff]
    %v503 = vld [vmem:[#allocation8 + $0x220] sm:$0xff]
    %v504 = vld [vmem:[#allocation8 + $0x228] sm:$0xff]
    %v505 = vld [vmem:[#allocation8 + $0x230] sm:$0xff]
    %v506 = vld [vmem:[#allocation8 + $0x238] sm:$0xff]
    %v507 = vld [vmem:[#allocation8 + $0x240] sm:$0xff]
    %v508 = vld [vmem:[#allocation8 + $0x248] sm:$0xff]
    %v509 = vld [vmem:[#allocation8 + $0x250] sm:$0xff]
    %v510 = vld [vmem:[#allocation8 + $0x258] sm:$0xff]
    %v511 = vld [vmem:[#allocation8 + $0x260] sm:$0xff]
    %v512 = vld [vmem:[#allocation8 + $0x268] sm:$0xff]
    %v513 = vld [vmem:[#allocation8 + $0x270] sm:$0xff]
    %v514 = vld [vmem:[#allocation8 + $0x278] sm:$0xff]
    %v515 = vld [vmem:[#allocation8 + $0x280] sm:$0xff]
    %v516 = vld [vmem:[#allocation8 + $0x288] sm:$0xff]
    %v517 = vld [vmem:[#allocation8 + $0x290] sm:$0xff]
    %v518 = vld [vmem:[#allocation8 + $0x298] sm:$0xff]
    %v519 = vld [vmem:[#allocation8 + $0x2a0] sm:$0xff]
    %v520 = vld [vmem:[#allocation8 + $0x2a8] sm:$0xff]
    %v521 = vld [vmem:[#allocation8 + $0x2b0] sm:$0xff]
    %v522 = vld [vmem:[#allocation8 + $0x2b8] sm:$0xff]
    %v523 = vld [vmem:[#allocation8 + $0x2c0] sm:$0xff]
    %v524 = vld [vmem:[#allocation8 + $0x2c8] sm:$0xff]
    %v525 = vld [vmem:[#allocation8 + $0x2d0] sm:$0xff]
    %v526 = vld [vmem:[#allocation8 + $0x2d8] sm:$0xff]
    %v527 = vld [vmem:[#allocation8 + $0x2e0] sm:$0xff]
    %v528 = vld [vmem:[#allocation8 + $0x2e8] sm:$0xff]
    %v529 = vld [vmem:[#allocation8 + $0x2f0] sm:$0xff]
    %v530 = vld [vmem:[#allocation8 + $0x2f8] sm:$0xff]
    %v531 = vld [vmem:[#allocation8 + $0x300] sm:$0xff]
    %v532 = vld [vmem:[#allocation8 + $0x308] sm:$0xff]
    %v533 = vld [vmem:[#allocation8 + $0x310] sm:$0xff]
    %v534 = vld [vmem:[#allocation8 + $0x318] sm:$0xff]
    %v535 = vld [vmem:[#allocation8 + $0x320] sm:$0xff]
    %v536 = vld [vmem:[#allocation8 + $0x328] sm:$0xff]
    %v537 = vld [vmem:[#allocation8 + $0x330] sm:$0xff]
    %v538 = vld [vmem:[#allocation8 + $0x338] sm:$0xff]
    %v539 = vld [vmem:[#allocation8 + $0x340] sm:$0xff]
    %v540 = vld [vmem:[#allocation8 + $0x348] sm:$0xff]
    %v541 = vld [vmem:[#allocation8 + $0x350] sm:$0xff]
    %v542 = vld [vmem:[#allocation8 + $0x358] sm:$0xff]
    %v543 = vld [vmem:[#allocation8 + $0x360] sm:$0xff]
    %v544 = vld [vmem:[#allocation8 + $0x368] sm:$0xff]
    %v545 = vld [vmem:[#allocation8 + $0x370] sm:$0xff]
    %v546 = vld [vmem:[#allocation8 + $0x378] sm:$0xff]
    %v547 = vld [vmem:[#allocation8 + $0x380] sm:$0xff]
    %v548 = vld [vmem:[#allocation8 + $0x388] sm:$0xff]
    %v549 = vld [vmem:[#allocation8 + $0x390] sm:$0xff]
    %v550 = vld [vmem:[#allocation8 + $0x398] sm:$0xff]
    %v551 = vld [vmem:[#allocation8 + $0x3a0] sm:$0xff]
    %v552 = vld [vmem:[#allocation8 + $0x3a8] sm:$0xff]
    %v553 = vld [vmem:[#allocation8 + $0x3b0] sm:$0xff]
    %v554 = vld [vmem:[#allocation8 + $0x3b8] sm:$0xff]
    %v555 = vld [vmem:[#allocation8 + $0x3c0] sm:$0xff]
    %v556 = vld [vmem:[#allocation8 + $0x3c8] sm:$0xff]
    %v557 = vld [vmem:[#allocation8 + $0x3d0] sm:$0xff]
    %v558 = vld [vmem:[#allocation8 + $0x3d8] sm:$0xff]
    %v559 = vld [vmem:[#allocation8 + $0x3e0] sm:$0xff]
    %v560 = vld [vmem:[#allocation8 + $0x3e8] sm:$0xff]
    %v561 = vld [vmem:[#allocation8 + $0x3f0] sm:$0xff]
    %v562 = vld [vmem:[#allocation8 + $0x3f8] sm:$0xff]
    %v563 = vld [vmem:[#allocation8 + $0x400] sm:$0xff]
    %v564 = vld [vmem:[#allocation8 + $0x408] sm:$0xff]
    %v565 = vld [vmem:[#allocation8 + $0x410] sm:$0xff]
    %v566 = vld [vmem:[#allocation8 + $0x418] sm:$0xff]
    %v567 = vld [vmem:[#allocation8 + $0x420] sm:$0xff]
    %v568 = vld [vmem:[#allocation8 + $0x428] sm:$0xff]
    %v569 = vld [vmem:[#allocation8 + $0x430] sm:$0xff]
    %v570 = vld [vmem:[#allocation8 + $0x438] sm:$0xff]
    %v571 = vld [vmem:[#allocation8 + $0x440] sm:$0xff]
    %v572 = vld [vmem:[#allocation8 + $0x448] sm:$0xff]
    %v573 = vld [vmem:[#allocation8 + $0x450] sm:$0xff]
    %v574 = vld [vmem:[#allocation8 + $0x458] sm:$0xff]
    %v575 = vld [vmem:[#allocation8 + $0x460] sm:$0xff]
    %v576 = vld [vmem:[#allocation8 + $0x468] sm:$0xff]
    %v577 = vld [vmem:[#allocation8 + $0x470] sm:$0xff]
    %v578 = vld [vmem:[#allocation8 + $0x478] sm:$0xff]
    %v579 = vld [vmem:[#allocation8 + $0x480] sm:$0xff]
    %v580 = vld [vmem:[#allocation8 + $0x488] sm:$0xff]
    %v581 = vld [vmem:[#allocation8 + $0x490] sm:$0xff]
    %v582 = vld [vmem:[#allocation8 + $0x498] sm:$0xff]
    %v583 = vld [vmem:[#allocation8 + $0x4a0] sm:$0xff]
    %v584 = vld [vmem:[#allocation8 + $0x4a8] sm:$0xff]
    %v585 = vld [vmem:[#allocation8 + $0x4b0] sm:$0xff]
    %v586 = vld [vmem:[#allocation8 + $0x4b8] sm:$0xff]
    %v587 = vld [vmem:[#allocation8 + $0x4c0] sm:$0xff]
    %v588 = vld [vmem:[#allocation8 + $0x4c8] sm:$0xff]
    %v589 = vld [vmem:[#allocation8 + $0x4d0] sm:$0xff]
    %v590 = vld [vmem:[#allocation8 + $0x4d8] sm:$0xff]
    %v591 = vld [vmem:[#allocation8 + $0x4e0] sm:$0xff]
    %v592 = vld [vmem:[#allocation8 + $0x4e8] sm:$0xff]
    %v593 = vld [vmem:[#allocation8 + $0x4f0] sm:$0xff]
    %v594 = vld [vmem:[#allocation8 + $0x4f8] sm:$0xff]
    %v595 = vld [vmem:[#allocation8 + $0x500] sm:$0xff]
    %v596 = vld [vmem:[#allocation8 + $0x508] sm:$0xff]
    %v597 = vld [vmem:[#allocation8 + $0x510] sm:$0xff]
    %v598 = vld [vmem:[#allocation8 + $0x518] sm:$0xff]
    %v599 = vld [vmem:[#allocation8 + $0x520] sm:$0xff]
    %v600 = vld [vmem:[#allocation8 + $0x528] sm:$0xff]
    %v601 = vld [vmem:[#allocation8 + $0x530] sm:$0xff]
    %v602 = vld [vmem:[#allocation8 + $0x538] sm:$0xff]
    %v603 = vld [vmem:[#allocation8 + $0x540] sm:$0xff]
    %v604 = vld [vmem:[#allocation8 + $0x548] sm:$0xff]
    %v605 = vld [vmem:[#allocation8 + $0x550] sm:$0xff]
    %v606 = vld [vmem:[#allocation8 + $0x558] sm:$0xff]
    %v607 = vld [vmem:[#allocation8 + $0x560] sm:$0xff]
    %v608 = vld [vmem:[#allocation8 + $0x568] sm:$0xff]
    %v609 = vld [vmem:[#allocation8 + $0x570] sm:$0xff]
    %v610 = vld [vmem:[#allocation8 + $0x578] sm:$0xff]
    %v611 = vld [vmem:[#allocation8 + $0x580] sm:$0xff]
    %v612 = vld [vmem:[#allocation8 + $0x588] sm:$0xff]
    %v613 = vld [vmem:[#allocation8 + $0x590] sm:$0xff]
    %v614 = vld [vmem:[#allocation8 + $0x598] sm:$0xff]
    %v615 = vld [vmem:[#allocation8 + $0x5a0] sm:$0xff]
    %v616 = vld [vmem:[#allocation8 + $0x5a8] sm:$0xff]
    %v617 = vld [vmem:[#allocation8 + $0x5b0] sm:$0xff]
    %v618 = vld [vmem:[#allocation8 + $0x5b8] sm:$0xff]
    %v619 = vld [vmem:[#allocation8 + $0x5c0] sm:$0xff]
    %v620 = vld [vmem:[#allocation8 + $0x5c8] sm:$0xff]
    %v621 = vld [vmem:[#allocation8 + $0x5d0] sm:$0xff]
    %v622 = vld [vmem:[#allocation8 + $0x5d8] sm:$0xff]
    %v623 = vld [vmem:[#allocation8 + $0x5e0] sm:$0xff]
    %v624 = vld [vmem:[#allocation8 + $0x5e8] sm:$0xff]
    %v625 = vld [vmem:[#allocation8 + $0x5f0] sm:$0xff]
    %v626 = vld [vmem:[#allocation8 + $0x5f8] sm:$0xff]
    %v627 = vld [vmem:[#allocation8 + $0x600] sm:$0xff]
    %v628 = vld [vmem:[#allocation8 + $0x608] sm:$0xff]
    %v629 = vld [vmem:[#allocation8 + $0x610] sm:$0xff]
    %v630 = vld [vmem:[#allocation8 + $0x618] sm:$0xff]
    %v631 = vld [vmem:[#allocation8 + $0x620] sm:$0xff]
    %v632 = vld [vmem:[#allocation8 + $0x628] sm:$0xff]
    %v633 = vld [vmem:[#allocation8 + $0x630] sm:$0xff]
    %v634 = vld [vmem:[#allocation8 + $0x638] sm:$0xff]
    %v635 = vld [vmem:[#allocation8 + $0x640] sm:$0xff]
    %v636 = vld [vmem:[#allocation8 + $0x648] sm:$0xff]
    %v637 = vld [vmem:[#allocation8 + $0x650] sm:$0xff]
    %v638 = vld [vmem:[#allocation8 + $0x658] sm:$0xff]
    %v639 = vld [vmem:[#allocation8 + $0x660] sm:$0xff]
    %v640 = vld [vmem:[#allocation8 + $0x668] sm:$0xff]
    %v641 = vld [vmem:[#allocation8 + $0x670] sm:$0xff]
    %v642 = vld [vmem:[#allocation8 + $0x678] sm:$0xff]
    %v643 = vld [vmem:[#allocation8 + $0x680] sm:$0xff]
    %v644 = vld [vmem:[#allocation8 + $0x688] sm:$0xff]
    %v645 = vld [vmem:[#allocation8 + $0x690] sm:$0xff]
    %v646 = vld [vmem:[#allocation8 + $0x698] sm:$0xff]
    %v647 = vld [vmem:[#allocation8 + $0x6a0] sm:$0xff]
    %v648 = vld [vmem:[#allocation8 + $0x6a8] sm:$0xff]
    %v649 = vld [vmem:[#allocation8 + $0x6b0] sm:$0xff]
    %v650 = vld [vmem:[#allocation8 + $0x6b8] sm:$0xff]
    %v651 = vld [vmem:[#allocation8 + $0x6c0] sm:$0xff]
    %v652 = vld [vmem:[#allocation8 + $0x6c8] sm:$0xff]
    %v653 = vld [vmem:[#allocation8 + $0x6d0] sm:$0xff]
    %v654 = vld [vmem:[#allocation8 + $0x6d8] sm:$0xff]
    %v655 = vld [vmem:[#allocation8 + $0x6e0] sm:$0xff]
    %v656 = vld [vmem:[#allocation8 + $0x6e8] sm:$0xff]
    %v657 = vld [vmem:[#allocation8 + $0x6f0] sm:$0xff]
    %v658 = vld [vmem:[#allocation8 + $0x6f8] sm:$0xff]
    %v659 = vld [vmem:[#allocation8 + $0x700] sm:$0xff]
    %v660 = vld [vmem:[#allocation8 + $0x708] sm:$0xff]
    %v661 = vld [vmem:[#allocation8 + $0x710] sm:$0xff]
    %v662 = vld [vmem:[#allocation8 + $0x718] sm:$0xff]
    %v663 = vld [vmem:[#allocation8 + $0x720] sm:$0xff]
    %v664 = vld [vmem:[#allocation8 + $0x728] sm:$0xff]
    %v665 = vld [vmem:[#allocation8 + $0x730] sm:$0xff]
    %v666 = vld [vmem:[#allocation8 + $0x738] sm:$0xff]
    %v667 = vld [vmem:[#allocation8 + $0x740] sm:$0xff]
    %v668 = vld [vmem:[#allocation8 + $0x748] sm:$0xff]
    %v669 = vld [vmem:[#allocation8 + $0x750] sm:$0xff]
    %v670 = vld [vmem:[#allocation8 + $0x758] sm:$0xff]
    %v671 = vld [vmem:[#allocation8 + $0x760] sm:$0xff]
    %v672 = vld [vmem:[#allocation8 + $0x768] sm:$0xff]
    %v673 = vld [vmem:[#allocation8 + $0x770] sm:$0xff]
    %v674 = vld [vmem:[#allocation8 + $0x778] sm:$0xff]
    %v675 = vld [vmem:[#allocation8 + $0x780] sm:$0xff]
    %v676 = vld [vmem:[#allocation8 + $0x788] sm:$0xff]
    %v677 = vld [vmem:[#allocation8 + $0x790] sm:$0xff]
    %v678 = vld [vmem:[#allocation8 + $0x798] sm:$0xff]
    %v679 = vld [vmem:[#allocation8 + $0x7a0] sm:$0xff]
    %v680 = vld [vmem:[#allocation8 + $0x7a8] sm:$0xff]
    %v681 = vld [vmem:[#allocation8 + $0x7b0] sm:$0xff]
    %v682 = vld [vmem:[#allocation8 + $0x7b8] sm:$0xff]
    %v683 = vld [vmem:[#allocation8 + $0x7c0] sm:$0xff]
    %v684 = vld [vmem:[#allocation8 + $0x7c8] sm:$0xff]
    %v685 = vld [vmem:[#allocation8 + $0x7d0] sm:$0xff]
    %v686 = vld [vmem:[#allocation8 + $0x7d8] sm:$0xff]
    %v687 = vld [vmem:[#allocation8 + $0x7e0] sm:$0xff]
    %v688 = vld [vmem:[#allocation8 + $0x7e8] sm:$0xff]
    %v689 = vld [vmem:[#allocation8 + $0x7f0] sm:$0xff]
    %v690 = vld [vmem:[#allocation8 + $0x7f8] sm:$0xff]
    %v691 = vld [vmem:[#allocation8 + $0x800] sm:$0xff]
    %v692 = vld [vmem:[#allocation8 + $0x808] sm:$0xff]
    %v693 = vld [vmem:[#allocation8 + $0x810] sm:$0xff]
    %v694 = vld [vmem:[#allocation8 + $0x818] sm:$0xff]
    %v695 = vld [vmem:[#allocation8 + $0x820] sm:$0xff]
    %v696 = vld [vmem:[#allocation8 + $0x828] sm:$0xff]
    %v697 = vld [vmem:[#allocation8 + $0x830] sm:$0xff]
    %v698 = vld [vmem:[#allocation8 + $0x838] sm:$0xff]
    %v699 = vld [vmem:[#allocation8 + $0x840] sm:$0xff]
    %v700 = vld [vmem:[#allocation8 + $0x848] sm:$0xff]
    %v701 = vld [vmem:[#allocation8 + $0x850] sm:$0xff]
    %v702 = vld [vmem:[#allocation8 + $0x858] sm:$0xff]
    %v703 = vld [vmem:[#allocation8 + $0x860] sm:$0xff]
    %v704 = vld [vmem:[#allocation8 + $0x868] sm:$0xff]
    %v705 = vld [vmem:[#allocation8 + $0x870] sm:$0xff]
    %v706 = vld [vmem:[#allocation8 + $0x878] sm:$0xff]
    %v707 = vld [vmem:[#allocation8 + $0x880] sm:$0xff]
    %v708 = vld [vmem:[#allocation8 + $0x888] sm:$0xff]
    %v709 = vld [vmem:[#allocation8 + $0x890] sm:$0xff]
    %v710 = vld [vmem:[#allocation8 + $0x898] sm:$0xff]
    %v711 = vld [vmem:[#allocation8 + $0x8a0] sm:$0xff]
    %v712 = vld [vmem:[#allocation8 + $0x8a8] sm:$0xff]
    %v713 = vld [vmem:[#allocation8 + $0x8b0] sm:$0xff]
    %v714 = vld [vmem:[#allocation8 + $0x8b8] sm:$0xff]
    %v715 = vld [vmem:[#allocation8 + $0x8c0] sm:$0xff]
    %v716 = vld [vmem:[#allocation8 + $0x8c8] sm:$0xff]
    %v717 = vld [vmem:[#allocation8 + $0x8d0] sm:$0xff]
    %v718 = vld [vmem:[#allocation8 + $0x8d8] sm:$0xff]
    %v719 = vld [vmem:[#allocation8 + $0x8e0] sm:$0xff]
    %v720 = vld [vmem:[#allocation8 + $0x8e8] sm:$0xff]
    %v721 = vld [vmem:[#allocation8 + $0x8f0] sm:$0xff]
    %v722 = vld [vmem:[#allocation8 + $0x8f8] sm:$0xff]
    %v723 = vld [vmem:[#allocation9] sm:$0x3f]
    %v725 = vlaneseq
    %v726 = vshrl.u32 %v725, 7
    %v727 = vsub.s32 0, %v726
    %v728 = vrot.slane %v723, %v727
    %v729 = vlaneseq
    %v730 = vshrl.u32 %v729, 7
    %v731 = vsub.s32 1, %v730
    %v732 = vrot.slane %v723, %v731
    %v733 = vlaneseq
    %v734 = vshrl.u32 %v733, 7
    %v735 = vsub.s32 2, %v734
    %v736 = vrot.slane %v723, %v735
    %v737 = vlaneseq
    %v738 = vshrl.u32 %v737, 7
    %v739 = vsub.s32 3, %v738
    %v740 = vrot.slane %v723, %v739
    %v741 = vlaneseq
    %v742 = vshrl.u32 %v741, 7
    %v743 = vsub.s32 4, %v742
    %v744 = vrot.slane %v723, %v743
    %v745 = vlaneseq
    %v746 = vshrl.u32 %v745, 7
    %v747 = vsub.s32 5, %v746
    %v748 = vrot.slane %v723, %v747
    %v1043 = vunpack.c.l.b16 %v435
    %v1044 = vunpack.c.h.b16 %v435
    %v1045 = vunpack.c.l.b16 %v436
    %v1046 = vunpack.c.h.b16 %v436
    %v1047 = vunpack.c.l.b16 %v437
    %v1048 = vunpack.c.h.b16 %v437
    %v1049 = vunpack.c.l.b16 %v438
    %v1050 = vunpack.c.h.b16 %v438
    %v1051 = vunpack.c.l.b16 %v439
    %v1052 = vunpack.c.h.b16 %v439
    %v1053 = vunpack.c.l.b16 %v440
    %v1054 = vunpack.c.h.b16 %v440
    %v1055 = vunpack.c.l.b16 %v441
    %v1056 = vunpack.c.h.b16 %v441
    %v1057 = vunpack.c.l.b16 %v442
    %v1058 = vunpack.c.h.b16 %v442
    %v1059 = vunpack.c.l.b16 %v443
    %v1060 = vunpack.c.h.b16 %v443
    %v1061 = vunpack.c.l.b16 %v444
    %v1062 = vunpack.c.h.b16 %v444
    %v1063 = vunpack.c.l.b16 %v445
    %v1064 = vunpack.c.h.b16 %v445
    %v1065 = vunpack.c.l.b16 %v446
    %v1066 = vunpack.c.h.b16 %v446
    %v1067 = vunpack.c.l.b16 %v447
    %v1068 = vunpack.c.h.b16 %v447
    %v1069 = vunpack.c.l.b16 %v448
    %v1070 = vunpack.c.h.b16 %v448
    %v1071 = vunpack.c.l.b16 %v449
    %v1072 = vunpack.c.h.b16 %v449
    %v1073 = vunpack.c.l.b16 %v450
    %v1074 = vunpack.c.h.b16 %v450
    %v1075 = vunpack.c.l.b16 %v451
    %v1076 = vunpack.c.h.b16 %v451
    %v1077 = vunpack.c.l.b16 %v452
    %v1078 = vunpack.c.h.b16 %v452
    %v1079 = vunpack.c.l.b16 %v453
    %v1080 = vunpack.c.h.b16 %v453
    %v1081 = vunpack.c.l.b16 %v454
    %v1082 = vunpack.c.h.b16 %v454
    %v1083 = vunpack.c.l.b16 %v455
    %v1084 = vunpack.c.h.b16 %v455
    %v1085 = vunpack.c.l.b16 %v456
    %v1086 = vunpack.c.h.b16 %v456
    %v1087 = vunpack.c.l.b16 %v457
    %v1088 = vunpack.c.h.b16 %v457
    %v1089 = vunpack.c.l.b16 %v458
    %v1090 = vunpack.c.h.b16 %v458
    %v1091 = vunpack.c.l.b16 %v459
    %v1092 = vunpack.c.h.b16 %v459
    %v1093 = vunpack.c.l.b16 %v460
    %v1094 = vunpack.c.h.b16 %v460
    %v1095 = vunpack.c.l.b16 %v461
    %v1096 = vunpack.c.h.b16 %v461
    %v1097 = vunpack.c.l.b16 %v462
    %v1098 = vunpack.c.h.b16 %v462
    %v1099 = vunpack.c.l.b16 %v463
    %v1100 = vunpack.c.h.b16 %v463
    %v1101 = vunpack.c.l.b16 %v464
    %v1102 = vunpack.c.h.b16 %v464
    %v1103 = vunpack.c.l.b16 %v465
    %v1104 = vunpack.c.h.b16 %v465
    %v1105 = vunpack.c.l.b16 %v466
    %v1106 = vunpack.c.h.b16 %v466
    %v1107 = vunpack.c.l.b16 %v467
    %v1108 = vunpack.c.h.b16 %v467
    %v1109 = vunpack.c.l.b16 %v468
    %v1110 = vunpack.c.h.b16 %v468
    %v1111 = vunpack.c.l.b16 %v469
    %v1112 = vunpack.c.h.b16 %v469
    %v1113 = vunpack.c.l.b16 %v470
    %v1114 = vunpack.c.h.b16 %v470
    %v1115 = vunpack.c.l.b16 %v471
    %v1116 = vunpack.c.h.b16 %v471
    %v1117 = vunpack.c.l.b16 %v472
    %v1118 = vunpack.c.h.b16 %v472
    %v1119 = vunpack.c.l.b16 %v473
    %v1120 = vunpack.c.h.b16 %v473
    %v1121 = vunpack.c.l.b16 %v474
    %v1122 = vunpack.c.h.b16 %v474
    %v1123 = vunpack.c.l.b16 %v475
    %v1124 = vunpack.c.h.b16 %v475
    %v1125 = vunpack.c.l.b16 %v476
    %v1126 = vunpack.c.h.b16 %v476
    %v1127 = vunpack.c.l.b16 %v477
    %v1128 = vunpack.c.h.b16 %v477
    %v1129 = vunpack.c.l.b16 %v478
    %v1130 = vunpack.c.h.b16 %v478
    %v1131 = vunpack.c.l.b16 %v479
    %v1132 = vunpack.c.h.b16 %v479
    %v1133 = vunpack.c.l.b16 %v480
    %v1134 = vunpack.c.h.b16 %v480
    %v1135 = vunpack.c.l.b16 %v481
    %v1136 = vunpack.c.h.b16 %v481
    %v1137 = vunpack.c.l.b16 %v482
    %v1138 = vunpack.c.h.b16 %v482
    %v1139 = vunpack.c.l.b16 %v483
    %v1140 = vunpack.c.h.b16 %v483
    %v1141 = vunpack.c.l.b16 %v484
    %v1142 = vunpack.c.h.b16 %v484
    %v1143 = vunpack.c.l.b16 %v485
    %v1144 = vunpack.c.h.b16 %v485
    %v1145 = vunpack.c.l.b16 %v486
    %v1146 = vunpack.c.h.b16 %v486
    %v1147 = vunpack.c.l.b16 %v487
    %v1148 = vunpack.c.h.b16 %v487
    %v1149 = vunpack.c.l.b16 %v488
    %v1150 = vunpack.c.h.b16 %v488
    %v1151 = vunpack.c.l.b16 %v489
    %v1152 = vunpack.c.h.b16 %v489
    %v1153 = vunpack.c.l.b16 %v490
    %v1154 = vunpack.c.h.b16 %v490
    %v1155 = vunpack.c.l.b16 %v491
    %v1156 = vunpack.c.h.b16 %v491
    %v1157 = vunpack.c.l.b16 %v492
    %v1158 = vunpack.c.h.b16 %v492
    %v1159 = vunpack.c.l.b16 %v493
    %v1160 = vunpack.c.h.b16 %v493
    %v1161 = vunpack.c.l.b16 %v494
    %v1162 = vunpack.c.h.b16 %v494
    %v1163 = vunpack.c.l.b16 %v495
    %v1164 = vunpack.c.h.b16 %v495
    %v1165 = vunpack.c.l.b16 %v496
    %v1166 = vunpack.c.h.b16 %v496
    %v1167 = vunpack.c.l.b16 %v497
    %v1168 = vunpack.c.h.b16 %v497
    %v1169 = vunpack.c.l.b16 %v498
    %v1170 = vunpack.c.h.b16 %v498
    %v1171 = vunpack.c.l.b16 %v499
    %v1172 = vunpack.c.h.b16 %v499
    %v1173 = vunpack.c.l.b16 %v500
    %v1174 = vunpack.c.h.b16 %v500
    %v1175 = vunpack.c.l.b16 %v501
    %v1176 = vunpack.c.h.b16 %v501
    %v1177 = vunpack.c.l.b16 %v502
    %v1178 = vunpack.c.h.b16 %v502
    %v1179 = vunpack.c.l.b16 %v503
    %v1180 = vunpack.c.h.b16 %v503
    %v1181 = vunpack.c.l.b16 %v504
    %v1182 = vunpack.c.h.b16 %v504
    %v1183 = vunpack.c.l.b16 %v505
    %v1184 = vunpack.c.h.b16 %v505
    %v1185 = vunpack.c.l.b16 %v506
    %v1186 = vunpack.c.h.b16 %v506
    %v1187 = vunpack.c.l.b16 %v507
    %v1188 = vunpack.c.h.b16 %v507
    %v1189 = vunpack.c.l.b16 %v508
    %v1190 = vunpack.c.h.b16 %v508
    %v1191 = vunpack.c.l.b16 %v509
    %v1192 = vunpack.c.h.b16 %v509
    %v1193 = vunpack.c.l.b16 %v510
    %v1194 = vunpack.c.h.b16 %v510
    %v1195 = vunpack.c.l.b16 %v511
    %v1196 = vunpack.c.h.b16 %v511
    %v1197 = vunpack.c.l.b16 %v512
    %v1198 = vunpack.c.h.b16 %v512
    %v1199 = vunpack.c.l.b16 %v513
    %v1200 = vunpack.c.h.b16 %v513
    %v1201 = vunpack.c.l.b16 %v514
    %v1202 = vunpack.c.h.b16 %v514
    %v1203 = vunpack.c.l.b16 %v515
    %v1204 = vunpack.c.h.b16 %v515
    %v1205 = vunpack.c.l.b16 %v516
    %v1206 = vunpack.c.h.b16 %v516
    %v1207 = vunpack.c.l.b16 %v517
    %v1208 = vunpack.c.h.b16 %v517
    %v1209 = vunpack.c.l.b16 %v518
    %v1210 = vunpack.c.h.b16 %v518
    %v1211 = vunpack.c.l.b16 %v519
    %v1212 = vunpack.c.h.b16 %v519
    %v1213 = vunpack.c.l.b16 %v520
    %v1214 = vunpack.c.h.b16 %v520
    %v1215 = vunpack.c.l.b16 %v521
    %v1216 = vunpack.c.h.b16 %v521
    %v1217 = vunpack.c.l.b16 %v522
    %v1218 = vunpack.c.h.b16 %v522
    %v1219 = vunpack.c.l.b16 %v523
    %v1220 = vunpack.c.h.b16 %v523
    %v1221 = vunpack.c.l.b16 %v524
    %v1222 = vunpack.c.h.b16 %v524
    %v1223 = vunpack.c.l.b16 %v525
    %v1224 = vunpack.c.h.b16 %v525
    %v1225 = vunpack.c.l.b16 %v526
    %v1226 = vunpack.c.h.b16 %v526
    %v1227 = vunpack.c.l.b16 %v527
    %v1228 = vunpack.c.h.b16 %v527
    %v1229 = vunpack.c.l.b16 %v528
    %v1230 = vunpack.c.h.b16 %v528
    %v1231 = vunpack.c.l.b16 %v529
    %v1232 = vunpack.c.h.b16 %v529
    %v1233 = vunpack.c.l.b16 %v530
    %v1234 = vunpack.c.h.b16 %v530
    %v1235 = vunpack.c.l.b16 %v531
    %v1236 = vunpack.c.h.b16 %v531
    %v1237 = vunpack.c.l.b16 %v532
    %v1238 = vunpack.c.h.b16 %v532
    %v1239 = vunpack.c.l.b16 %v533
    %v1240 = vunpack.c.h.b16 %v533
    %v1241 = vunpack.c.l.b16 %v534
    %v1242 = vunpack.c.h.b16 %v534
    %v1243 = vunpack.c.l.b16 %v535
    %v1244 = vunpack.c.h.b16 %v535
    %v1245 = vunpack.c.l.b16 %v536
    %v1246 = vunpack.c.h.b16 %v536
    %v1247 = vunpack.c.l.b16 %v537
    %v1248 = vunpack.c.h.b16 %v537
    %v1249 = vunpack.c.l.b16 %v538
    %v1250 = vunpack.c.h.b16 %v538
    %v1251 = vunpack.c.l.b16 %v539
    %v1252 = vunpack.c.h.b16 %v539
    %v1253 = vunpack.c.l.b16 %v540
    %v1254 = vunpack.c.h.b16 %v540
    %v1255 = vunpack.c.l.b16 %v541
    %v1256 = vunpack.c.h.b16 %v541
    %v1257 = vunpack.c.l.b16 %v542
    %v1258 = vunpack.c.h.b16 %v542
    %v1259 = vunpack.c.l.b16 %v543
    %v1260 = vunpack.c.h.b16 %v543
    %v1261 = vunpack.c.l.b16 %v544
    %v1262 = vunpack.c.h.b16 %v544
    %v1263 = vunpack.c.l.b16 %v545
    %v1264 = vunpack.c.h.b16 %v545
    %v1265 = vunpack.c.l.b16 %v546
    %v1266 = vunpack.c.h.b16 %v546
    %v1267 = vunpack.c.l.b16 %v547
    %v1268 = vunpack.c.h.b16 %v547
    %v1269 = vunpack.c.l.b16 %v548
    %v1270 = vunpack.c.h.b16 %v548
    %v1271 = vunpack.c.l.b16 %v549
    %v1272 = vunpack.c.h.b16 %v549
    %v1273 = vunpack.c.l.b16 %v550
    %v1274 = vunpack.c.h.b16 %v550
    %v1275 = vunpack.c.l.b16 %v551
    %v1276 = vunpack.c.h.b16 %v551
    %v1277 = vunpack.c.l.b16 %v552
    %v1278 = vunpack.c.h.b16 %v552
    %v1279 = vunpack.c.l.b16 %v553
    %v1280 = vunpack.c.h.b16 %v553
    %v1281 = vunpack.c.l.b16 %v554
    %v1282 = vunpack.c.h.b16 %v554
    %v1283 = vunpack.c.l.b16 %v555
    %v1284 = vunpack.c.h.b16 %v555
    %v1285 = vunpack.c.l.b16 %v556
    %v1286 = vunpack.c.h.b16 %v556
    %v1287 = vunpack.c.l.b16 %v557
    %v1288 = vunpack.c.h.b16 %v557
    %v1289 = vunpack.c.l.b16 %v558
    %v1290 = vunpack.c.h.b16 %v558
    %v1291 = vunpack.c.l.b16 %v559
    %v1292 = vunpack.c.h.b16 %v559
    %v1293 = vunpack.c.l.b16 %v560
    %v1294 = vunpack.c.h.b16 %v560
    %v1295 = vunpack.c.l.b16 %v561
    %v1296 = vunpack.c.h.b16 %v561
    %v1297 = vunpack.c.l.b16 %v562
    %v1298 = vunpack.c.h.b16 %v562
    %v1299 = vunpack.c.l.b16 %v563
    %v1300 = vunpack.c.h.b16 %v563
    %v1301 = vunpack.c.l.b16 %v564
    %v1302 = vunpack.c.h.b16 %v564
    %v1303 = vunpack.c.l.b16 %v565
    %v1304 = vunpack.c.h.b16 %v565
    %v1305 = vunpack.c.l.b16 %v566
    %v1306 = vunpack.c.h.b16 %v566
    %v1307 = vunpack.c.l.b16 %v567
    %v1308 = vunpack.c.h.b16 %v567
    %v1309 = vunpack.c.l.b16 %v568
    %v1310 = vunpack.c.h.b16 %v568
    %v1311 = vunpack.c.l.b16 %v569
    %v1312 = vunpack.c.h.b16 %v569
    %v1313 = vunpack.c.l.b16 %v570
    %v1314 = vunpack.c.h.b16 %v570
    %v1315 = vunpack.c.l.b16 %v571
    %v1316 = vunpack.c.h.b16 %v571
    %v1317 = vunpack.c.l.b16 %v572
    %v1318 = vunpack.c.h.b16 %v572
    %v1319 = vunpack.c.l.b16 %v573
    %v1320 = vunpack.c.h.b16 %v573
    %v1321 = vunpack.c.l.b16 %v574
    %v1322 = vunpack.c.h.b16 %v574
    %v1323 = vunpack.c.l.b16 %v575
    %v1324 = vunpack.c.h.b16 %v575
    %v1325 = vunpack.c.l.b16 %v576
    %v1326 = vunpack.c.h.b16 %v576
    %v1327 = vunpack.c.l.b16 %v577
    %v1328 = vunpack.c.h.b16 %v577
    %v1329 = vunpack.c.l.b16 %v578
    %v1330 = vunpack.c.h.b16 %v578
    %v1331 = vunpack.c.l.b16 %v579
    %v1332 = vunpack.c.h.b16 %v579
    %v1333 = vunpack.c.l.b16 %v580
    %v1334 = vunpack.c.h.b16 %v580
    %v1335 = vunpack.c.l.b16 %v581
    %v1336 = vunpack.c.h.b16 %v581
    %v1337 = vunpack.c.l.b16 %v582
    %v1338 = vunpack.c.h.b16 %v582
    %v1339 = vunpack.c.l.b16 %v583
    %v1340 = vunpack.c.h.b16 %v583
    %v1341 = vunpack.c.l.b16 %v584
    %v1342 = vunpack.c.h.b16 %v584
    %v1343 = vunpack.c.l.b16 %v585
    %v1344 = vunpack.c.h.b16 %v585
    %v1345 = vunpack.c.l.b16 %v586
    %v1346 = vunpack.c.h.b16 %v586
    %v1347 = vunpack.c.l.b16 %v587
    %v1348 = vunpack.c.h.b16 %v587
    %v1349 = vunpack.c.l.b16 %v588
    %v1350 = vunpack.c.h.b16 %v588
    %v1351 = vunpack.c.l.b16 %v589
    %v1352 = vunpack.c.h.b16 %v589
    %v1353 = vunpack.c.l.b16 %v590
    %v1354 = vunpack.c.h.b16 %v590
    %v1355 = vunpack.c.l.b16 %v591
    %v1356 = vunpack.c.h.b16 %v591
    %v1357 = vunpack.c.l.b16 %v592
    %v1358 = vunpack.c.h.b16 %v592
    %v1359 = vunpack.c.l.b16 %v593
    %v1360 = vunpack.c.h.b16 %v593
    %v1361 = vunpack.c.l.b16 %v594
    %v1362 = vunpack.c.h.b16 %v594
    %v1363 = vunpack.c.l.b16 %v595
    %v1364 = vunpack.c.h.b16 %v595
    %v1365 = vunpack.c.l.b16 %v596
    %v1366 = vunpack.c.h.b16 %v596
    %v1367 = vunpack.c.l.b16 %v597
    %v1368 = vunpack.c.h.b16 %v597
    %v1369 = vunpack.c.l.b16 %v598
    %v1370 = vunpack.c.h.b16 %v598
    %v1371 = vunpack.c.l.b16 %v599
    %v1372 = vunpack.c.h.b16 %v599
    %v1373 = vunpack.c.l.b16 %v600
    %v1374 = vunpack.c.h.b16 %v600
    %v1375 = vunpack.c.l.b16 %v601
    %v1376 = vunpack.c.h.b16 %v601
    %v1377 = vunpack.c.l.b16 %v602
    %v1378 = vunpack.c.h.b16 %v602
    %v1379 = vunpack.c.l.b16 %v603
    %v1380 = vunpack.c.h.b16 %v603
    %v1381 = vunpack.c.l.b16 %v604
    %v1382 = vunpack.c.h.b16 %v604
    %v1383 = vunpack.c.l.b16 %v605
    %v1384 = vunpack.c.h.b16 %v605
    %v1385 = vunpack.c.l.b16 %v606
    %v1386 = vunpack.c.h.b16 %v606
    %v1387 = vunpack.c.l.b16 %v607
    %v1388 = vunpack.c.h.b16 %v607
    %v1389 = vunpack.c.l.b16 %v608
    %v1390 = vunpack.c.h.b16 %v608
    %v1391 = vunpack.c.l.b16 %v609
    %v1392 = vunpack.c.h.b16 %v609
    %v1393 = vunpack.c.l.b16 %v610
    %v1394 = vunpack.c.h.b16 %v610
    %v1395 = vunpack.c.l.b16 %v611
    %v1396 = vunpack.c.h.b16 %v611
    %v1397 = vunpack.c.l.b16 %v612
    %v1398 = vunpack.c.h.b16 %v612
    %v1399 = vunpack.c.l.b16 %v613
    %v1400 = vunpack.c.h.b16 %v613
    %v1401 = vunpack.c.l.b16 %v614
    %v1402 = vunpack.c.h.b16 %v614
    %v1403 = vunpack.c.l.b16 %v615
    %v1404 = vunpack.c.h.b16 %v615
    %v1405 = vunpack.c.l.b16 %v616
    %v1406 = vunpack.c.h.b16 %v616
    %v1407 = vunpack.c.l.b16 %v617
    %v1408 = vunpack.c.h.b16 %v617
    %v1409 = vunpack.c.l.b16 %v618
    %v1410 = vunpack.c.h.b16 %v618
    %v1411 = vunpack.c.l.b16 %v619
    %v1412 = vunpack.c.h.b16 %v619
    %v1413 = vunpack.c.l.b16 %v620
    %v1414 = vunpack.c.h.b16 %v620
    %v1415 = vunpack.c.l.b16 %v621
    %v1416 = vunpack.c.h.b16 %v621
    %v1417 = vunpack.c.l.b16 %v622
    %v1418 = vunpack.c.h.b16 %v622
    %v1419 = vunpack.c.l.b16 %v623
    %v1420 = vunpack.c.h.b16 %v623
    %v1421 = vunpack.c.l.b16 %v624
    %v1422 = vunpack.c.h.b16 %v624
    %v1423 = vunpack.c.l.b16 %v625
    %v1424 = vunpack.c.h.b16 %v625
    %v1425 = vunpack.c.l.b16 %v626
    %v1426 = vunpack.c.h.b16 %v626
    %v1427 = vunpack.c.l.b16 %v627
    %v1428 = vunpack.c.h.b16 %v627
    %v1429 = vunpack.c.l.b16 %v628
    %v1430 = vunpack.c.h.b16 %v628
    %v1431 = vunpack.c.l.b16 %v629
    %v1432 = vunpack.c.h.b16 %v629
    %v1433 = vunpack.c.l.b16 %v630
    %v1434 = vunpack.c.h.b16 %v630
    %v1435 = vunpack.c.l.b16 %v631
    %v1436 = vunpack.c.h.b16 %v631
    %v1437 = vunpack.c.l.b16 %v632
    %v1438 = vunpack.c.h.b16 %v632
    %v1439 = vunpack.c.l.b16 %v633
    %v1440 = vunpack.c.h.b16 %v633
    %v1441 = vunpack.c.l.b16 %v634
    %v1442 = vunpack.c.h.b16 %v634
    %v1443 = vunpack.c.l.b16 %v635
    %v1444 = vunpack.c.h.b16 %v635
    %v1445 = vunpack.c.l.b16 %v636
    %v1446 = vunpack.c.h.b16 %v636
    %v1447 = vunpack.c.l.b16 %v637
    %v1448 = vunpack.c.h.b16 %v637
    %v1449 = vunpack.c.l.b16 %v638
    %v1450 = vunpack.c.h.b16 %v638
    %v1451 = vunpack.c.l.b16 %v639
    %v1452 = vunpack.c.h.b16 %v639
    %v1453 = vunpack.c.l.b16 %v640
    %v1454 = vunpack.c.h.b16 %v640
    %v1455 = vunpack.c.l.b16 %v641
    %v1456 = vunpack.c.h.b16 %v641
    %v1457 = vunpack.c.l.b16 %v642
    %v1458 = vunpack.c.h.b16 %v642
    %v1459 = vunpack.c.l.b16 %v643
    %v1460 = vunpack.c.h.b16 %v643
    %v1461 = vunpack.c.l.b16 %v644
    %v1462 = vunpack.c.h.b16 %v644
    %v1463 = vunpack.c.l.b16 %v645
    %v1464 = vunpack.c.h.b16 %v645
    %v1465 = vunpack.c.l.b16 %v646
    %v1466 = vunpack.c.h.b16 %v646
    %v1467 = vunpack.c.l.b16 %v647
    %v1468 = vunpack.c.h.b16 %v647
    %v1469 = vunpack.c.l.b16 %v648
    %v1470 = vunpack.c.h.b16 %v648
    %v1471 = vunpack.c.l.b16 %v649
    %v1472 = vunpack.c.h.b16 %v649
    %v1473 = vunpack.c.l.b16 %v650
    %v1474 = vunpack.c.h.b16 %v650
    %v1475 = vunpack.c.l.b16 %v651
    %v1476 = vunpack.c.h.b16 %v651
    %v1477 = vunpack.c.l.b16 %v652
    %v1478 = vunpack.c.h.b16 %v652
    %v1479 = vunpack.c.l.b16 %v653
    %v1480 = vunpack.c.h.b16 %v653
    %v1481 = vunpack.c.l.b16 %v654
    %v1482 = vunpack.c.h.b16 %v654
    %v1483 = vunpack.c.l.b16 %v655
    %v1484 = vunpack.c.h.b16 %v655
    %v1485 = vunpack.c.l.b16 %v656
    %v1486 = vunpack.c.h.b16 %v656
    %v1487 = vunpack.c.l.b16 %v657
    %v1488 = vunpack.c.h.b16 %v657
    %v1489 = vunpack.c.l.b16 %v658
    %v1490 = vunpack.c.h.b16 %v658
    %v1491 = vunpack.c.l.b16 %v659
    %v1492 = vunpack.c.h.b16 %v659
    %v1493 = vunpack.c.l.b16 %v660
    %v1494 = vunpack.c.h.b16 %v660
    %v1495 = vunpack.c.l.b16 %v661
    %v1496 = vunpack.c.h.b16 %v661
    %v1497 = vunpack.c.l.b16 %v662
    %v1498 = vunpack.c.h.b16 %v662
    %v1499 = vunpack.c.l.b16 %v663
    %v1500 = vunpack.c.h.b16 %v663
    %v1501 = vunpack.c.l.b16 %v664
    %v1502 = vunpack.c.h.b16 %v664
    %v1503 = vunpack.c.l.b16 %v665
    %v1504 = vunpack.c.h.b16 %v665
    %v1505 = vunpack.c.l.b16 %v666
    %v1506 = vunpack.c.h.b16 %v666
    %v1507 = vunpack.c.l.b16 %v667
    %v1508 = vunpack.c.h.b16 %v667
    %v1509 = vunpack.c.l.b16 %v668
    %v1510 = vunpack.c.h.b16 %v668
    %v1511 = vunpack.c.l.b16 %v669
    %v1512 = vunpack.c.h.b16 %v669
    %v1513 = vunpack.c.l.b16 %v670
    %v1514 = vunpack.c.h.b16 %v670
    %v1515 = vunpack.c.l.b16 %v671
    %v1516 = vunpack.c.h.b16 %v671
    %v1517 = vunpack.c.l.b16 %v672
    %v1518 = vunpack.c.h.b16 %v672
    %v1519 = vunpack.c.l.b16 %v673
    %v1520 = vunpack.c.h.b16 %v673
    %v1521 = vunpack.c.l.b16 %v674
    %v1522 = vunpack.c.h.b16 %v674
    %v1523 = vunpack.c.l.b16 %v675
    %v1524 = vunpack.c.h.b16 %v675
    %v1525 = vunpack.c.l.b16 %v676
    %v1526 = vunpack.c.h.b16 %v676
    %v1527 = vunpack.c.l.b16 %v677
    %v1528 = vunpack.c.h.b16 %v677
    %v1529 = vunpack.c.l.b16 %v678
    %v1530 = vunpack.c.h.b16 %v678
    %v1531 = vunpack.c.l.b16 %v679
    %v1532 = vunpack.c.h.b16 %v679
    %v1533 = vunpack.c.l.b16 %v680
    %v1534 = vunpack.c.h.b16 %v680
    %v1535 = vunpack.c.l.b16 %v681
    %v1536 = vunpack.c.h.b16 %v681
    %v1537 = vunpack.c.l.b16 %v682
    %v1538 = vunpack.c.h.b16 %v682
    %v1539 = vunpack.c.l.b16 %v683
    %v1540 = vunpack.c.h.b16 %v683
    %v1541 = vunpack.c.l.b16 %v684
    %v1542 = vunpack.c.h.b16 %v684
    %v1543 = vunpack.c.l.b16 %v685
    %v1544 = vunpack.c.h.b16 %v685
    %v1545 = vunpack.c.l.b16 %v686
    %v1546 = vunpack.c.h.b16 %v686
    %v1547 = vunpack.c.l.b16 %v687
    %v1548 = vunpack.c.h.b16 %v687
    %v1549 = vunpack.c.l.b16 %v688
    %v1550 = vunpack.c.h.b16 %v688
    %v1551 = vunpack.c.l.b16 %v689
    %v1552 = vunpack.c.h.b16 %v689
    %v1553 = vunpack.c.l.b16 %v690
    %v1554 = vunpack.c.h.b16 %v690
    %v1555 = vunpack.c.l.b16 %v691
    %v1556 = vunpack.c.h.b16 %v691
    %v1557 = vunpack.c.l.b16 %v692
    %v1558 = vunpack.c.h.b16 %v692
    %v1559 = vunpack.c.l.b16 %v693
    %v1560 = vunpack.c.h.b16 %v693
    %v1561 = vunpack.c.l.b16 %v694
    %v1562 = vunpack.c.h.b16 %v694
    %v1563 = vunpack.c.l.b16 %v695
    %v1564 = vunpack.c.h.b16 %v695
    %v1565 = vunpack.c.l.b16 %v696
    %v1566 = vunpack.c.h.b16 %v696
    %v1567 = vunpack.c.l.b16 %v697
    %v1568 = vunpack.c.h.b16 %v697
    %v1569 = vunpack.c.l.b16 %v698
    %v1570 = vunpack.c.h.b16 %v698
    %v1571 = vunpack.c.l.b16 %v699
    %v1572 = vunpack.c.h.b16 %v699
    %v1573 = vunpack.c.l.b16 %v700
    %v1574 = vunpack.c.h.b16 %v700
    %v1575 = vunpack.c.l.b16 %v701
    %v1576 = vunpack.c.h.b16 %v701
    %v1577 = vunpack.c.l.b16 %v702
    %v1578 = vunpack.c.h.b16 %v702
    %v1579 = vunpack.c.l.b16 %v703
    %v1580 = vunpack.c.h.b16 %v703
    %v1581 = vunpack.c.l.b16 %v704
    %v1582 = vunpack.c.h.b16 %v704
    %v1583 = vunpack.c.l.b16 %v705
    %v1584 = vunpack.c.h.b16 %v705
    %v1585 = vunpack.c.l.b16 %v706
    %v1586 = vunpack.c.h.b16 %v706
    %v1587 = vunpack.c.l.b16 %v707
    %v1588 = vunpack.c.h.b16 %v707
    %v1589 = vunpack.c.l.b16 %v708
    %v1590 = vunpack.c.h.b16 %v708
    %v1591 = vunpack.c.l.b16 %v709
    %v1592 = vunpack.c.h.b16 %v709
    %v1593 = vunpack.c.l.b16 %v710
    %v1594 = vunpack.c.h.b16 %v710
    %v1595 = vunpack.c.l.b16 %v711
    %v1596 = vunpack.c.h.b16 %v711
    %v1597 = vunpack.c.l.b16 %v712
    %v1598 = vunpack.c.h.b16 %v712
    %v1599 = vunpack.c.l.b16 %v713
    %v1600 = vunpack.c.h.b16 %v713
    %v1601 = vunpack.c.l.b16 %v714
    %v1602 = vunpack.c.h.b16 %v714
    %v1603 = vunpack.c.l.b16 %v715
    %v1604 = vunpack.c.h.b16 %v715
    %v1605 = vunpack.c.l.b16 %v716
    %v1606 = vunpack.c.h.b16 %v716
    %v1607 = vunpack.c.l.b16 %v717
    %v1608 = vunpack.c.h.b16 %v717
    %v1609 = vunpack.c.l.b16 %v718
    %v1610 = vunpack.c.h.b16 %v718
    %v1611 = vunpack.c.l.b16 %v719
    %v1612 = vunpack.c.h.b16 %v719
    %v1613 = vunpack.c.l.b16 %v720
    %v1614 = vunpack.c.h.b16 %v720
    %v1615 = vunpack.c.l.b16 %v721
    %v1616 = vunpack.c.h.b16 %v721
    %v1617 = vunpack.c.l.b16 %v722
    %v1618 = vunpack.c.h.b16 %v722
    %v1619 = vpack.c.b16 %v1049, %v1043
    %v1620 = vpack.c.b16 %v1050, %v1044
    %v1621 = vpack.c.b16 %v1051, %v1045
    %v1622 = vpack.c.b16 %v1052, %v1046
    %v1623 = vpack.c.b16 %v1053, %v1047
    %v1624 = vpack.c.b16 %v1054, %v1048
    %v1625 = vpack.c.b16 %v1061, %v1055
    %v1626 = vpack.c.b16 %v1062, %v1056
    %v1627 = vpack.c.b16 %v1063, %v1057
    %v1628 = vpack.c.b16 %v1064, %v1058
    %v1629 = vpack.c.b16 %v1065, %v1059
    %v1630 = vpack.c.b16 %v1066, %v1060
    %v1631 = vpack.c.b16 %v1073, %v1067
    %v1632 = vpack.c.b16 %v1074, %v1068
    %v1633 = vpack.c.b16 %v1075, %v1069
    %v1634 = vpack.c.b16 %v1076, %v1070
    %v1635 = vpack.c.b16 %v1077, %v1071
    %v1636 = vpack.c.b16 %v1078, %v1072
    %v1637 = vpack.c.b16 %v1085, %v1079
    %v1638 = vpack.c.b16 %v1086, %v1080
    %v1639 = vpack.c.b16 %v1087, %v1081
    %v1640 = vpack.c.b16 %v1088, %v1082
    %v1641 = vpack.c.b16 %v1089, %v1083
    %v1642 = vpack.c.b16 %v1090, %v1084
    %v1643 = vpack.c.b16 %v1097, %v1091
    %v1644 = vpack.c.b16 %v1098, %v1092
    %v1645 = vpack.c.b16 %v1099, %v1093
    %v1646 = vpack.c.b16 %v1100, %v1094
    %v1647 = vpack.c.b16 %v1101, %v1095
    %v1648 = vpack.c.b16 %v1102, %v1096
    %v1649 = vpack.c.b16 %v1109, %v1103
    %v1650 = vpack.c.b16 %v1110, %v1104
    %v1651 = vpack.c.b16 %v1111, %v1105
    %v1652 = vpack.c.b16 %v1112, %v1106
    %v1653 = vpack.c.b16 %v1113, %v1107
    %v1654 = vpack.c.b16 %v1114, %v1108
    %v1655 = vpack.c.b16 %v1121, %v1115
    %v1656 = vpack.c.b16 %v1122, %v1116
    %v1657 = vpack.c.b16 %v1123, %v1117
    %v1658 = vpack.c.b16 %v1124, %v1118
    %v1659 = vpack.c.b16 %v1125, %v1119
    %v1660 = vpack.c.b16 %v1126, %v1120
    %v1661 = vpack.c.b16 %v1133, %v1127
    %v1662 = vpack.c.b16 %v1134, %v1128
    %v1663 = vpack.c.b16 %v1135, %v1129
    %v1664 = vpack.c.b16 %v1136, %v1130
    %v1665 = vpack.c.b16 %v1137, %v1131
    %v1666 = vpack.c.b16 %v1138, %v1132
    %v1667 = vpack.c.b16 %v1145, %v1139
    %v1668 = vpack.c.b16 %v1146, %v1140
    %v1669 = vpack.c.b16 %v1147, %v1141
    %v1670 = vpack.c.b16 %v1148, %v1142
    %v1671 = vpack.c.b16 %v1149, %v1143
    %v1672 = vpack.c.b16 %v1150, %v1144
    %v1673 = vpack.c.b16 %v1157, %v1151
    %v1674 = vpack.c.b16 %v1158, %v1152
    %v1675 = vpack.c.b16 %v1159, %v1153
    %v1676 = vpack.c.b16 %v1160, %v1154
    %v1677 = vpack.c.b16 %v1161, %v1155
    %v1678 = vpack.c.b16 %v1162, %v1156
    %v1679 = vpack.c.b16 %v1169, %v1163
    %v1680 = vpack.c.b16 %v1170, %v1164
    %v1681 = vpack.c.b16 %v1171, %v1165
    %v1682 = vpack.c.b16 %v1172, %v1166
    %v1683 = vpack.c.b16 %v1173, %v1167
    %v1684 = vpack.c.b16 %v1174, %v1168
    %v1685 = vpack.c.b16 %v1181, %v1175
    %v1686 = vpack.c.b16 %v1182, %v1176
    %v1687 = vpack.c.b16 %v1183, %v1177
    %v1688 = vpack.c.b16 %v1184, %v1178
    %v1689 = vpack.c.b16 %v1185, %v1179
    %v1690 = vpack.c.b16 %v1186, %v1180
    %v1691 = vpack.c.b16 %v1193, %v1187
    %v1692 = vpack.c.b16 %v1194, %v1188
    %v1693 = vpack.c.b16 %v1195, %v1189
    %v1694 = vpack.c.b16 %v1196, %v1190
    %v1695 = vpack.c.b16 %v1197, %v1191
    %v1696 = vpack.c.b16 %v1198, %v1192
    %v1697 = vpack.c.b16 %v1205, %v1199
    %v1698 = vpack.c.b16 %v1206, %v1200
    %v1699 = vpack.c.b16 %v1207, %v1201
    %v1700 = vpack.c.b16 %v1208, %v1202
    %v1701 = vpack.c.b16 %v1209, %v1203
    %v1702 = vpack.c.b16 %v1210, %v1204
    %v1703 = vpack.c.b16 %v1217, %v1211
    %v1704 = vpack.c.b16 %v1218, %v1212
    %v1705 = vpack.c.b16 %v1219, %v1213
    %v1706 = vpack.c.b16 %v1220, %v1214
    %v1707 = vpack.c.b16 %v1221, %v1215
    %v1708 = vpack.c.b16 %v1222, %v1216
    %v1709 = vpack.c.b16 %v1229, %v1223
    %v1710 = vpack.c.b16 %v1230, %v1224
    %v1711 = vpack.c.b16 %v1231, %v1225
    %v1712 = vpack.c.b16 %v1232, %v1226
    %v1713 = vpack.c.b16 %v1233, %v1227
    %v1714 = vpack.c.b16 %v1234, %v1228
    %v1715 = vpack.c.b16 %v1241, %v1235
    %v1716 = vpack.c.b16 %v1242, %v1236
    %v1717 = vpack.c.b16 %v1243, %v1237
    %v1718 = vpack.c.b16 %v1244, %v1238
    %v1719 = vpack.c.b16 %v1245, %v1239
    %v1720 = vpack.c.b16 %v1246, %v1240
    %v1721 = vpack.c.b16 %v1253, %v1247
    %v1722 = vpack.c.b16 %v1254, %v1248
    %v1723 = vpack.c.b16 %v1255, %v1249
    %v1724 = vpack.c.b16 %v1256, %v1250
    %v1725 = vpack.c.b16 %v1257, %v1251
    %v1726 = vpack.c.b16 %v1258, %v1252
    %v1727 = vpack.c.b16 %v1265, %v1259
    %v1728 = vpack.c.b16 %v1266, %v1260
    %v1729 = vpack.c.b16 %v1267, %v1261
    %v1730 = vpack.c.b16 %v1268, %v1262
    %v1731 = vpack.c.b16 %v1269, %v1263
    %v1732 = vpack.c.b16 %v1270, %v1264
    %v1733 = vpack.c.b16 %v1277, %v1271
    %v1734 = vpack.c.b16 %v1278, %v1272
    %v1735 = vpack.c.b16 %v1279, %v1273
    %v1736 = vpack.c.b16 %v1280, %v1274
    %v1737 = vpack.c.b16 %v1281, %v1275
    %v1738 = vpack.c.b16 %v1282, %v1276
    %v1739 = vpack.c.b16 %v1289, %v1283
    %v1740 = vpack.c.b16 %v1290, %v1284
    %v1741 = vpack.c.b16 %v1291, %v1285
    %v1742 = vpack.c.b16 %v1292, %v1286
    %v1743 = vpack.c.b16 %v1293, %v1287
    %v1744 = vpack.c.b16 %v1294, %v1288
    %v1745 = vpack.c.b16 %v1301, %v1295
    %v1746 = vpack.c.b16 %v1302, %v1296
    %v1747 = vpack.c.b16 %v1303, %v1297
    %v1748 = vpack.c.b16 %v1304, %v1298
    %v1749 = vpack.c.b16 %v1305, %v1299
    %v1750 = vpack.c.b16 %v1306, %v1300
    %v1751 = vpack.c.b16 %v1313, %v1307
    %v1752 = vpack.c.b16 %v1314, %v1308
    %v1753 = vpack.c.b16 %v1315, %v1309
    %v1754 = vpack.c.b16 %v1316, %v1310
    %v1755 = vpack.c.b16 %v1317, %v1311
    %v1756 = vpack.c.b16 %v1318, %v1312
    %v1757 = vpack.c.b16 %v1325, %v1319
    %v1758 = vpack.c.b16 %v1326, %v1320
    %v1759 = vpack.c.b16 %v1327, %v1321
    %v1760 = vpack.c.b16 %v1328, %v1322
    %v1761 = vpack.c.b16 %v1329, %v1323
    %v1762 = vpack.c.b16 %v1330, %v1324
    %v1763 = vpack.c.b16 %v1337, %v1331
    %v1764 = vpack.c.b16 %v1338, %v1332
    %v1765 = vpack.c.b16 %v1339, %v1333
    %v1766 = vpack.c.b16 %v1340, %v1334
    %v1767 = vpack.c.b16 %v1341, %v1335
    %v1768 = vpack.c.b16 %v1342, %v1336
    %v1769 = vpack.c.b16 %v1349, %v1343
    %v1770 = vpack.c.b16 %v1350, %v1344
    %v1771 = vpack.c.b16 %v1351, %v1345
    %v1772 = vpack.c.b16 %v1352, %v1346
    %v1773 = vpack.c.b16 %v1353, %v1347
    %v1774 = vpack.c.b16 %v1354, %v1348
    %v1775 = vpack.c.b16 %v1361, %v1355
    %v1776 = vpack.c.b16 %v1362, %v1356
    %v1777 = vpack.c.b16 %v1363, %v1357
    %v1778 = vpack.c.b16 %v1364, %v1358
    %v1779 = vpack.c.b16 %v1365, %v1359
    %v1780 = vpack.c.b16 %v1366, %v1360
    %v1781 = vpack.c.b16 %v1373, %v1367
    %v1782 = vpack.c.b16 %v1374, %v1368
    %v1783 = vpack.c.b16 %v1375, %v1369
    %v1784 = vpack.c.b16 %v1376, %v1370
    %v1785 = vpack.c.b16 %v1377, %v1371
    %v1786 = vpack.c.b16 %v1378, %v1372
    %v1787 = vpack.c.b16 %v1385, %v1379
    %v1788 = vpack.c.b16 %v1386, %v1380
    %v1789 = vpack.c.b16 %v1387, %v1381
    %v1790 = vpack.c.b16 %v1388, %v1382
    %v1791 = vpack.c.b16 %v1389, %v1383
    %v1792 = vpack.c.b16 %v1390, %v1384
    %v1793 = vpack.c.b16 %v1397, %v1391
    %v1794 = vpack.c.b16 %v1398, %v1392
    %v1795 = vpack.c.b16 %v1399, %v1393
    %v1796 = vpack.c.b16 %v1400, %v1394
    %v1797 = vpack.c.b16 %v1401, %v1395
    %v1798 = vpack.c.b16 %v1402, %v1396
    %v1799 = vpack.c.b16 %v1409, %v1403
    %v1800 = vpack.c.b16 %v1410, %v1404
    %v1801 = vpack.c.b16 %v1411, %v1405
    %v1802 = vpack.c.b16 %v1412, %v1406
    %v1803 = vpack.c.b16 %v1413, %v1407
    %v1804 = vpack.c.b16 %v1414, %v1408
    %v1805 = vpack.c.b16 %v1421, %v1415
    %v1806 = vpack.c.b16 %v1422, %v1416
    %v1807 = vpack.c.b16 %v1423, %v1417
    %v1808 = vpack.c.b16 %v1424, %v1418
    %v1809 = vpack.c.b16 %v1425, %v1419
    %v1810 = vpack.c.b16 %v1426, %v1420
    %v1811 = vpack.c.b16 %v1433, %v1427
    %v1812 = vpack.c.b16 %v1434, %v1428
    %v1813 = vpack.c.b16 %v1435, %v1429
    %v1814 = vpack.c.b16 %v1436, %v1430
    %v1815 = vpack.c.b16 %v1437, %v1431
    %v1816 = vpack.c.b16 %v1438, %v1432
    %v1817 = vpack.c.b16 %v1445, %v1439
    %v1818 = vpack.c.b16 %v1446, %v1440
    %v1819 = vpack.c.b16 %v1447, %v1441
    %v1820 = vpack.c.b16 %v1448, %v1442
    %v1821 = vpack.c.b16 %v1449, %v1443
    %v1822 = vpack.c.b16 %v1450, %v1444
    %v1823 = vpack.c.b16 %v1457, %v1451
    %v1824 = vpack.c.b16 %v1458, %v1452
    %v1825 = vpack.c.b16 %v1459, %v1453
    %v1826 = vpack.c.b16 %v1460, %v1454
    %v1827 = vpack.c.b16 %v1461, %v1455
    %v1828 = vpack.c.b16 %v1462, %v1456
    %v1829 = vpack.c.b16 %v1469, %v1463
    %v1830 = vpack.c.b16 %v1470, %v1464
    %v1831 = vpack.c.b16 %v1471, %v1465
    %v1832 = vpack.c.b16 %v1472, %v1466
    %v1833 = vpack.c.b16 %v1473, %v1467
    %v1834 = vpack.c.b16 %v1474, %v1468
    %v1835 = vpack.c.b16 %v1481, %v1475
    %v1836 = vpack.c.b16 %v1482, %v1476
    %v1837 = vpack.c.b16 %v1483, %v1477
    %v1838 = vpack.c.b16 %v1484, %v1478
    %v1839 = vpack.c.b16 %v1485, %v1479
    %v1840 = vpack.c.b16 %v1486, %v1480
    %v1841 = vpack.c.b16 %v1493, %v1487
    %v1842 = vpack.c.b16 %v1494, %v1488
    %v1843 = vpack.c.b16 %v1495, %v1489
    %v1844 = vpack.c.b16 %v1496, %v1490
    %v1845 = vpack.c.b16 %v1497, %v1491
    %v1846 = vpack.c.b16 %v1498, %v1492
    %v1847 = vpack.c.b16 %v1505, %v1499
    %v1848 = vpack.c.b16 %v1506, %v1500
    %v1849 = vpack.c.b16 %v1507, %v1501
    %v1850 = vpack.c.b16 %v1508, %v1502
    %v1851 = vpack.c.b16 %v1509, %v1503
    %v1852 = vpack.c.b16 %v1510, %v1504
    %v1853 = vpack.c.b16 %v1517, %v1511
    %v1854 = vpack.c.b16 %v1518, %v1512
    %v1855 = vpack.c.b16 %v1519, %v1513
    %v1856 = vpack.c.b16 %v1520, %v1514
    %v1857 = vpack.c.b16 %v1521, %v1515
    %v1858 = vpack.c.b16 %v1522, %v1516
    %v1859 = vpack.c.b16 %v1529, %v1523
    %v1860 = vpack.c.b16 %v1530, %v1524
    %v1861 = vpack.c.b16 %v1531, %v1525
    %v1862 = vpack.c.b16 %v1532, %v1526
    %v1863 = vpack.c.b16 %v1533, %v1527
    %v1864 = vpack.c.b16 %v1534, %v1528
    %v1865 = vpack.c.b16 %v1541, %v1535
    %v1866 = vpack.c.b16 %v1542, %v1536
    %v1867 = vpack.c.b16 %v1543, %v1537
    %v1868 = vpack.c.b16 %v1544, %v1538
    %v1869 = vpack.c.b16 %v1545, %v1539
    %v1870 = vpack.c.b16 %v1546, %v1540
    %v1871 = vpack.c.b16 %v1553, %v1547
    %v1872 = vpack.c.b16 %v1554, %v1548
    %v1873 = vpack.c.b16 %v1555, %v1549
    %v1874 = vpack.c.b16 %v1556, %v1550
    %v1875 = vpack.c.b16 %v1557, %v1551
    %v1876 = vpack.c.b16 %v1558, %v1552
    %v1877 = vpack.c.b16 %v1565, %v1559
    %v1878 = vpack.c.b16 %v1566, %v1560
    %v1879 = vpack.c.b16 %v1567, %v1561
    %v1880 = vpack.c.b16 %v1568, %v1562
    %v1881 = vpack.c.b16 %v1569, %v1563
    %v1882 = vpack.c.b16 %v1570, %v1564
    %v1883 = vpack.c.b16 %v1577, %v1571
    %v1884 = vpack.c.b16 %v1578, %v1572
    %v1885 = vpack.c.b16 %v1579, %v1573
    %v1886 = vpack.c.b16 %v1580, %v1574
    %v1887 = vpack.c.b16 %v1581, %v1575
    %v1888 = vpack.c.b16 %v1582, %v1576
    %v1889 = vpack.c.b16 %v1589, %v1583
    %v1890 = vpack.c.b16 %v1590, %v1584
    %v1891 = vpack.c.b16 %v1591, %v1585
    %v1892 = vpack.c.b16 %v1592, %v1586
    %v1893 = vpack.c.b16 %v1593, %v1587
    %v1894 = vpack.c.b16 %v1594, %v1588
    %v1895 = vpack.c.b16 %v1601, %v1595
    %v1896 = vpack.c.b16 %v1602, %v1596
    %v1897 = vpack.c.b16 %v1603, %v1597
    %v1898 = vpack.c.b16 %v1604, %v1598
    %v1899 = vpack.c.b16 %v1605, %v1599
    %v1900 = vpack.c.b16 %v1606, %v1600
    %v1901 = vpack.c.b16 %v1613, %v1607
    %v1902 = vpack.c.b16 %v1614, %v1608
    %v1903 = vpack.c.b16 %v1615, %v1609
    %v1904 = vpack.c.b16 %v1616, %v1610
    %v1905 = vpack.c.b16 %v1617, %v1611
    %v1906 = vpack.c.b16 %v1618, %v1612
    %2195 = vmatprep.subr.bf16.mxu0 %v1620
    %2196 = vmatpush1.bf16.msra.mxu0 %v1619
    %2197 = vmatprep.subr.bf16.mxu0 %v1626
    %2198 = vmatpush1.bf16.msra.mxu0 %v1625
    %2199 = vmatprep.subr.bf16.mxu0 %v1632
    %2200 = vmatpush1.bf16.msra.mxu0 %v1631
    %2201 = vmatprep.subr.bf16.mxu0 %v1638
    %2202 = vmatpush1.bf16.msra.mxu0 %v1637
    %2203 = vmatprep.subr.bf16.mxu0 %v1644
    %2204 = vmatpush1.bf16.msra.mxu0 %v1643
    %2205 = vmatprep.subr.bf16.mxu0 %v1650
    %2206 = vmatpush1.bf16.msra.mxu0 %v1649
    %2207 = vmatprep.subr.bf16.mxu0 %v1656
    %2208 = vmatpush1.bf16.msra.mxu0 %v1655
    %2209 = vmatprep.subr.bf16.mxu0 %v1662
    %2210 = vmatpush1.bf16.msra.mxu0 %v1661
    %2211 = vmatprep.subr.bf16.mxu0 %v1668
    %2212 = vmatpush1.bf16.msra.mxu0 %v1667
    %2213 = vmatprep.subr.bf16.mxu0 %v1674
    %2214 = vmatpush1.bf16.msra.mxu0 %v1673
    %2215 = vmatprep.subr.bf16.mxu0 %v1680
    %2216 = vmatpush1.bf16.msra.mxu0 %v1679
    %2217 = vmatprep.subr.bf16.mxu0 %v1686
    %2218 = vmatpush1.bf16.msra.mxu0 %v1685
    %2219 = vmatprep.subr.bf16.mxu0 %v1692
    %2220 = vmatpush1.bf16.msra.mxu0 %v1691
    %2221 = vmatprep.subr.bf16.mxu0 %v1698
    %2222 = vmatpush1.bf16.msra.mxu0 %v1697
    %2223 = vmatprep.subr.bf16.mxu0 %v1704
    %2224 = vmatpush1.bf16.msra.mxu0 %v1703
    %2225 = vmatprep.subr.bf16.mxu0 %v1710
    %2226 = vmatpush1.bf16.msra.mxu0 %v1709
    %2227 = vmatprep.mubr.bf16.mxu0 %v430
    %2228 = vmatmul.mubr.bf16.gmra.mrb[0].mxu0 %v429
    %v2229 = vpop.f32.mrb[0].mxu0
    %v2230 = vadd.f32 %v728, %v2229
    %v2231 = vpop.f32.mrb[0].mxu0
    %v2232 = vadd.f32 %v732, %v2231
    %v2233 = vpop.f32.mrb[0].mxu0
    %v2234 = vpop.f32.mrb[0].mxu0
    %2235 = vdwg.mxu0
    %2236 = vmatprep.subr.bf16.mxu0 %v1716
    %2237 = vmatpush1.bf16.msra.mxu0 %v1715
    %2238 = vmatprep.subr.bf16.mxu0 %v1722
    %2239 = vmatpush1.bf16.msra.mxu0 %v1721
    %2240 = vmatprep.subr.bf16.mxu0 %v1728
    %2241 = vmatpush1.bf16.msra.mxu0 %v1727
    %2242 = vmatprep.subr.bf16.mxu0 %v1734
    %2243 = vmatpush1.bf16.msra.mxu0 %v1733
    %2244 = vmatprep.subr.bf16.mxu0 %v1740
    %2245 = vmatpush1.bf16.msra.mxu0 %v1739
    %2246 = vmatprep.subr.bf16.mxu0 %v1746
    %2247 = vmatpush1.bf16.msra.mxu0 %v1745
    %2248 = vmatprep.subr.bf16.mxu0 %v1752
    %2249 = vmatpush1.bf16.msra.mxu0 %v1751
    %2250 = vmatprep.subr.bf16.mxu0 %v1758
    %2251 = vmatpush1.bf16.msra.mxu0 %v1757
    %2252 = vmatprep.subr.bf16.mxu0 %v1764
    %2253 = vmatpush1.bf16.msra.mxu0 %v1763
    %2254 = vmatprep.subr.bf16.mxu0 %v1770
    %2255 = vmatpush1.bf16.msra.mxu0 %v1769
    %2256 = vmatprep.subr.bf16.mxu0 %v1776
    %2257 = vmatpush1.bf16.msra.mxu0 %v1775
    %2258 = vmatprep.subr.bf16.mxu0 %v1782
    %2259 = vmatpush1.bf16.msra.mxu0 %v1781
    %2260 = vmatprep.subr.bf16.mxu0 %v1788
    %2261 = vmatpush1.bf16.msra.mxu0 %v1787
    %2262 = vmatprep.subr.bf16.mxu0 %v1794
    %2263 = vmatpush1.bf16.msra.mxu0 %v1793
    %2264 = vmatprep.subr.bf16.mxu0 %v1800
    %2265 = vmatpush1.bf16.msra.mxu0 %v1799
    %2266 = vmatprep.subr.bf16.mxu0 %v1806
    %2267 = vmatpush1.bf16.msra.mxu0 %v1805
    %2268 = vmatprep.mubr.bf16.mxu0 %v432
    %2269 = vmatmul.mubr.bf16.gmra.mrb[0].mxu0 %v431
    %v2270 = vpop.f32.mrb[0].mxu0
    %v2271 = vadd.f32 %v2230, %v2270
    %v2272 = vpop.f32.mrb[0].mxu0
    %v2273 = vadd.f32 %v2232, %v2272
    %v2274 = vpop.f32.mrb[0].mxu0
    %v2275 = vpop.f32.mrb[0].mxu0
    %2276 = vdwg.mxu0
    %2277 = vmatprep.subr.bf16.mxu0 %v1812
    %2278 = vmatpush1.bf16.msra.mxu0 %v1811
    %2279 = vmatprep.subr.bf16.mxu0 %v1818
    %2280 = vmatpush1.bf16.msra.mxu0 %v1817
    %2281 = vmatprep.subr.bf16.mxu0 %v1824
    %2282 = vmatpush1.bf16.msra.mxu0 %v1823
    %2283 = vmatprep.subr.bf16.mxu0 %v1830
    %2284 = vmatpush1.bf16.msra.mxu0 %v1829
    %2285 = vmatprep.subr.bf16.mxu0 %v1836
    %2286 = vmatpush1.bf16.msra.mxu0 %v1835
    %2287 = vmatprep.subr.bf16.mxu0 %v1842
    %2288 = vmatpush1.bf16.msra.mxu0 %v1841
    %2289 = vmatprep.subr.bf16.mxu0 %v1848
    %2290 = vmatpush1.bf16.msra.mxu0 %v1847
    %2291 = vmatprep.subr.bf16.mxu0 %v1854
    %2292 = vmatpush1.bf16.msra.mxu0 %v1853
    %2293 = vmatprep.subr.bf16.mxu0 %v1860
    %2294 = vmatpush1.bf16.msra.mxu0 %v1859
    %2295 = vmatprep.subr.bf16.mxu0 %v1866
    %2296 = vmatpush1.bf16.msra.mxu0 %v1865
    %2297 = vmatprep.subr.bf16.mxu0 %v1872
    %2298 = vmatpush1.bf16.msra.mxu0 %v1871
    %2299 = vmatprep.subr.bf16.mxu0 %v1878
    %2300 = vmatpush1.bf16.msra.mxu0 %v1877
    %2301 = vmatprep.subr.bf16.mxu0 %v1884
    %2302 = vmatpush1.bf16.msra.mxu0 %v1883
    %2303 = vmatprep.subr.bf16.mxu0 %v1890
    %2304 = vmatpush1.bf16.msra.mxu0 %v1889
    %2305 = vmatprep.subr.bf16.mxu0 %v1896
    %2306 = vmatpush1.bf16.msra.mxu0 %v1895
    %2307 = vmatprep.subr.bf16.mxu0 %v1902
    %2308 = vmatpush1.bf16.msra.mxu0 %v1901
    %2309 = vmatprep.mubr.bf16.mxu0 %v434
    %2310 = vmatmul.mubr.bf16.gmra.mrb[0].mxu0 %v433
    %v2311 = vpop.f32.mrb[0].mxu0
    %v2312 = vadd.f32 %v2271, %v2311
    %v2313 = vpop.f32.mrb[0].mxu0
    %v2314 = vadd.f32 %v2273, %v2313
    %v2315 = vpop.f32.mrb[0].mxu0
    %v2316 = vpop.f32.mrb[0].mxu0
    %2317 = vdwg.mxu0
    %2318 = vmatprep.subr.bf16.mxu0 %v1622
    %2319 = vmatpush1.bf16.msra.mxu0 %v1621
    %2320 = vmatprep.subr.bf16.mxu0 %v1628
    %2321 = vmatpush1.bf16.msra.mxu0 %v1627
    %2322 = vmatprep.subr.bf16.mxu0 %v1634
    %2323 = vmatpush1.bf16.msra.mxu0 %v1633
    %2324 = vmatprep.subr.bf16.mxu0 %v1640
    %2325 = vmatpush1.bf16.msra.mxu0 %v1639
    %2326 = vmatprep.subr.bf16.mxu0 %v1646
    %2327 = vmatpush1.bf16.msra.mxu0 %v1645
    %2328 = vmatprep.subr.bf16.mxu0 %v1652
    %2329 = vmatpush1.bf16.msra.mxu0 %v1651
    %2330 = vmatprep.subr.bf16.mxu0 %v1658
    %2331 = vmatpush1.bf16.msra.mxu0 %v1657
    %2332 = vmatprep.subr.bf16.mxu0 %v1664
    %2333 = vmatpush1.bf16.msra.mxu0 %v1663
    %2334 = vmatprep.subr.bf16.mxu0 %v1670
    %2335 = vmatpush1.bf16.msra.mxu0 %v1669
    %2336 = vmatprep.subr.bf16.mxu0 %v1676
    %2337 = vmatpush1.bf16.msra.mxu0 %v1675
    %2338 = vmatprep.subr.bf16.mxu0 %v1682
    %2339 = vmatpush1.bf16.msra.mxu0 %v1681
    %2340 = vmatprep.subr.bf16.mxu0 %v1688
    %2341 = vmatpush1.bf16.msra.mxu0 %v1687
    %2342 = vmatprep.subr.bf16.mxu0 %v1694
    %2343 = vmatpush1.bf16.msra.mxu0 %v1693
    %2344 = vmatprep.subr.bf16.mxu0 %v1700
    %2345 = vmatpush1.bf16.msra.mxu0 %v1699
    %2346 = vmatprep.subr.bf16.mxu0 %v1706
    %2347 = vmatpush1.bf16.msra.mxu0 %v1705
    %2348 = vmatprep.subr.bf16.mxu0 %v1712
    %2349 = vmatpush1.bf16.msra.mxu0 %v1711
    %2350 = vmatprep.mubr.bf16.mxu0 %v430
    %2351 = vmatmul.mubr.bf16.gmra.mrb[0].mxu0 %v429
    %v2352 = vpop.f32.mrb[0].mxu0
    %v2353 = vadd.f32 %v736, %v2352
    %v2354 = vpop.f32.mrb[0].mxu0
    %v2355 = vadd.f32 %v740, %v2354
    %v2356 = vpop.f32.mrb[0].mxu0
    %v2357 = vpop.f32.mrb[0].mxu0
    %2358 = vdwg.mxu0
    %2359 = vmatprep.subr.bf16.mxu0 %v1718
    %2360 = vmatpush1.bf16.msra.mxu0 %v1717
    %2361 = vmatprep.subr.bf16.mxu0 %v1724
    %2362 = vmatpush1.bf16.msra.mxu0 %v1723
    %2363 = vmatprep.subr.bf16.mxu0 %v1730
    %2364 = vmatpush1.bf16.msra.mxu0 %v1729
    %2365 = vmatprep.subr.bf16.mxu0 %v1736
    %2366 = vmatpush1.bf16.msra.mxu0 %v1735
    %2367 = vmatprep.subr.bf16.mxu0 %v1742
    %2368 = vmatpush1.bf16.msra.mxu0 %v1741
    %2369 = vmatprep.subr.bf16.mxu0 %v1748
    %2370 = vmatpush1.bf16.msra.mxu0 %v1747
    %2371 = vmatprep.subr.bf16.mxu0 %v1754
    %2372 = vmatpush1.bf16.msra.mxu0 %v1753
    %2373 = vmatprep.subr.bf16.mxu0 %v1760
    %2374 = vmatpush1.bf16.msra.mxu0 %v1759
    %2375 = vmatprep.subr.bf16.mxu0 %v1766
    %2376 = vmatpush1.bf16.msra.mxu0 %v1765
    %2377 = vmatprep.subr.bf16.mxu0 %v1772
    %2378 = vmatpush1.bf16.msra.mxu0 %v1771
    %2379 = vmatprep.subr.bf16.mxu0 %v1778
    %2380 = vmatpush1.bf16.msra.mxu0 %v1777
    %2381 = vmatprep.subr.bf16.mxu0 %v1784
    %2382 = vmatpush1.bf16.msra.mxu0 %v1783
    %2383 = vmatprep.subr.bf16.mxu0 %v1790
    %2384 = vmatpush1.bf16.msra.mxu0 %v1789
    %2385 = vmatprep.subr.bf16.mxu0 %v1796
    %2386 = vmatpush1.bf16.msra.mxu0 %v1795
    %2387 = vmatprep.subr.bf16.mxu0 %v1802
    %2388 = vmatpush1.bf16.msra.mxu0 %v1801
    %2389 = vmatprep.subr.bf16.mxu0 %v1808
    %2390 = vmatpush1.bf16.msra.mxu0 %v1807
    %2391 = vmatprep.mubr.bf16.mxu0 %v432
    %2392 = vmatmul.mubr.bf16.gmra.mrb[0].mxu0 %v431
    %v2393 = vpop.f32.mrb[0].mxu0
    %v2394 = vadd.f32 %v2353, %v2393
    %v2395 = vpop.f32.mrb[0].mxu0
    %v2396 = vadd.f32 %v2355, %v2395
    %v2397 = vpop.f32.mrb[0].mxu0
    %v2398 = vpop.f32.mrb[0].mxu0
    %2399 = vdwg.mxu0
    %2400 = vmatprep.subr.bf16.mxu0 %v1814
    %2401 = vmatpush1.bf16.msra.mxu0 %v1813
    %2402 = vmatprep.subr.bf16.mxu0 %v1820
    %2403 = vmatpush1.bf16.msra.mxu0 %v1819
    %2404 = vmatprep.subr.bf16.mxu0 %v1826
    %2405 = vmatpush1.bf16.msra.mxu0 %v1825
    %2406 = vmatprep.subr.bf16.mxu0 %v1832
    %2407 = vmatpush1.bf16.msra.mxu0 %v1831
    %2408 = vmatprep.subr.bf16.mxu0 %v1838
    %2409 = vmatpush1.bf16.msra.mxu0 %v1837
    %2410 = vmatprep.subr.bf16.mxu0 %v1844
    %2411 = vmatpush1.bf16.msra.mxu0 %v1843
    %2412 = vmatprep.subr.bf16.mxu0 %v1850
    %2413 = vmatpush1.bf16.msra.mxu0 %v1849
    %2414 = vmatprep.subr.bf16.mxu0 %v1856
    %2415 = vmatpush1.bf16.msra.mxu0 %v1855
    %2416 = vmatprep.subr.bf16.mxu0 %v1862
    %2417 = vmatpush1.bf16.msra.mxu0 %v1861
    %2418 = vmatprep.subr.bf16.mxu0 %v1868
    %2419 = vmatpush1.bf16.msra.mxu0 %v1867
    %2420 = vmatprep.subr.bf16.mxu0 %v1874
    %2421 = vmatpush1.bf16.msra.mxu0 %v1873
    %2422 = vmatprep.subr.bf16.mxu0 %v1880
    %2423 = vmatpush1.bf16.msra.mxu0 %v1879
    %2424 = vmatprep.subr.bf16.mxu0 %v1886
    %2425 = vmatpush1.bf16.msra.mxu0 %v1885
    %2426 = vmatprep.subr.bf16.mxu0 %v1892
    %2427 = vmatpush1.bf16.msra.mxu0 %v1891
    %2428 = vmatprep.subr.bf16.mxu0 %v1898
    %2429 = vmatpush1.bf16.msra.mxu0 %v1897
    %2430 = vmatprep.subr.bf16.mxu0 %v1904
    %2431 = vmatpush1.bf16.msra.mxu0 %v1903
    %2432 = vmatprep.mubr.bf16.mxu0 %v434
    %2433 = vmatmul.mubr.bf16.gmra.mrb[0].mxu0 %v433
    %v2434 = vpop.f32.mrb[0].mxu0
    %v2435 = vadd.f32 %v2394, %v2434
    %v2436 = vpop.f32.mrb[0].mxu0
    %v2437 = vadd.f32 %v2396, %v2436
    %v2438 = vpop.f32.mrb[0].mxu0
    %v2439 = vpop.f32.mrb[0].mxu0
    %2440 = vdwg.mxu0
    %2441 = vmatprep.subr.bf16.mxu0 %v1624
    %2442 = vmatpush1.bf16.msra.mxu0 %v1623
    %2443 = vmatprep.subr.bf16.mxu0 %v1630
    %2444 = vmatpush1.bf16.msra.mxu0 %v1629
    %2445 = vmatprep.subr.bf16.mxu0 %v1636
    %2446 = vmatpush1.bf16.msra.mxu0 %v1635
    %2447 = vmatprep.subr.bf16.mxu0 %v1642
    %2448 = vmatpush1.bf16.msra.mxu0 %v1641
    %2449 = vmatprep.subr.bf16.mxu0 %v1648
    %2450 = vmatpush1.bf16.msra.mxu0 %v1647
    %2451 = vmatprep.subr.bf16.mxu0 %v1654
    %2452 = vmatpush1.bf16.msra.mxu0 %v1653
    %2453 = vmatprep.subr.bf16.mxu0 %v1660
    %2454 = vmatpush1.bf16.msra.mxu0 %v1659
    %2455 = vmatprep.subr.bf16.mxu0 %v1666
    %2456 = vmatpush1.bf16.msra.mxu0 %v1665
    %2457 = vmatprep.subr.bf16.mxu0 %v1672
    %2458 = vmatpush1.bf16.msra.mxu0 %v1671
    %2459 = vmatprep.subr.bf16.mxu0 %v1678
    %2460 = vmatpush1.bf16.msra.mxu0 %v1677
    %2461 = vmatprep.subr.bf16.mxu0 %v1684
    %2462 = vmatpush1.bf16.msra.mxu0 %v1683
    %2463 = vmatprep.subr.bf16.mxu0 %v1690
    %2464 = vmatpush1.bf16.msra.mxu0 %v1689
    %2465 = vmatprep.subr.bf16.mxu0 %v1696
    %2466 = vmatpush1.bf16.msra.mxu0 %v1695
    %2467 = vmatprep.subr.bf16.mxu0 %v1702
    %2468 = vmatpush1.bf16.msra.mxu0 %v1701
    %2469 = vmatprep.subr.bf16.mxu0 %v1708
    %2470 = vmatpush1.bf16.msra.mxu0 %v1707
    %2471 = vmatprep.subr.bf16.mxu0 %v1714
    %2472 = vmatpush1.bf16.msra.mxu0 %v1713
    %2473 = vmatprep.mubr.bf16.mxu0 %v430
    %2474 = vmatmul.mubr.bf16.gmra.mrb[0].mxu0 %v429
    %v2475 = vpop.f32.mrb[0].mxu0
    %v2476 = vadd.f32 %v744, %v2475
    %v2477 = vpop.f32.mrb[0].mxu0
    %v2478 = vadd.f32 %v748, %v2477
    %v2479 = vpop.f32.mrb[0].mxu0
    %v2480 = vpop.f32.mrb[0].mxu0
    %2481 = vdwg.mxu0
    %2482 = vmatprep.subr.bf16.mxu0 %v1720
    %2483 = vmatpush1.bf16.msra.mxu0 %v1719
    %2484 = vmatprep.subr.bf16.mxu0 %v1726
    %2485 = vmatpush1.bf16.msra.mxu0 %v1725
    %2486 = vmatprep.subr.bf16.mxu0 %v1732
    %2487 = vmatpush1.bf16.msra.mxu0 %v1731
    %2488 = vmatprep.subr.bf16.mxu0 %v1738
    %2489 = vmatpush1.bf16.msra.mxu0 %v1737
    %2490 = vmatprep.subr.bf16.mxu0 %v1744
    %2491 = vmatpush1.bf16.msra.mxu0 %v1743
    %2492 = vmatprep.subr.bf16.mxu0 %v1750
    %2493 = vmatpush1.bf16.msra.mxu0 %v1749
    %2494 = vmatprep.subr.bf16.mxu0 %v1756
    %2495 = vmatpush1.bf16.msra.mxu0 %v1755
    %2496 = vmatprep.subr.bf16.mxu0 %v1762
    %2497 = vmatpush1.bf16.msra.mxu0 %v1761
    %2498 = vmatprep.subr.bf16.mxu0 %v1768
    %2499 = vmatpush1.bf16.msra.mxu0 %v1767
    %2500 = vmatprep.subr.bf16.mxu0 %v1774
    %2501 = vmatpush1.bf16.msra.mxu0 %v1773
    %2502 = vmatprep.subr.bf16.mxu0 %v1780
    %2503 = vmatpush1.bf16.msra.mxu0 %v1779
    %2504 = vmatprep.subr.bf16.mxu0 %v1786
    %2505 = vmatpush1.bf16.msra.mxu0 %v1785
    %2506 = vmatprep.subr.bf16.mxu0 %v1792
    %2507 = vmatpush1.bf16.msra.mxu0 %v1791
    %2508 = vmatprep.subr.bf16.mxu0 %v1798
    %2509 = vmatpush1.bf16.msra.mxu0 %v1797
    %2510 = vmatprep.subr.bf16.mxu0 %v1804
    %2511 = vmatpush1.bf16.msra.mxu0 %v1803
    %2512 = vmatprep.subr.bf16.mxu0 %v1810
    %2513 = vmatpush1.bf16.msra.mxu0 %v1809
    %2514 = vmatprep.mubr.bf16.mxu0 %v432
    %2515 = vmatmul.mubr.bf16.gmra.mrb[0].mxu0 %v431
    %v2516 = vpop.f32.mrb[0].mxu0
    %v2517 = vadd.f32 %v2476, %v2516
    %v2518 = vpop.f32.mrb[0].mxu0
    %v2519 = vadd.f32 %v2478, %v2518
    %v2520 = vpop.f32.mrb[0].mxu0
    %v2521 = vpop.f32.mrb[0].mxu0
    %2522 = vdwg.mxu0
    %2523 = vmatprep.subr.bf16.mxu0 %v1816
    %2524 = vmatpush1.bf16.msra.mxu0 %v1815
    %2525 = vmatprep.subr.bf16.mxu0 %v1822
    %2526 = vmatpush1.bf16.msra.mxu0 %v1821
    %2527 = vmatprep.subr.bf16.mxu0 %v1828
    %2528 = vmatpush1.bf16.msra.mxu0 %v1827
    %2529 = vmatprep.subr.bf16.mxu0 %v1834
    %2530 = vmatpush1.bf16.msra.mxu0 %v1833
    %2531 = vmatprep.subr.bf16.mxu0 %v1840
    %2532 = vmatpush1.bf16.msra.mxu0 %v1839
    %2533 = vmatprep.subr.bf16.mxu0 %v1846
    %2534 = vmatpush1.bf16.msra.mxu0 %v1845
    %2535 = vmatprep.subr.bf16.mxu0 %v1852
    %2536 = vmatpush1.bf16.msra.mxu0 %v1851
    %2537 = vmatprep.subr.bf16.mxu0 %v1858
    %2538 = vmatpush1.bf16.msra.mxu0 %v1857
    %2539 = vmatprep.subr.bf16.mxu0 %v1864
    %2540 = vmatpush1.bf16.msra.mxu0 %v1863
    %2541 = vmatprep.subr.bf16.mxu0 %v1870
    %2542 = vmatpush1.bf16.msra.mxu0 %v1869
    %2543 = vmatprep.subr.bf16.mxu0 %v1876
    %2544 = vmatpush1.bf16.msra.mxu0 %v1875
    %2545 = vmatprep.subr.bf16.mxu0 %v1882
    %2546 = vmatpush1.bf16.msra.mxu0 %v1881
    %2547 = vmatprep.subr.bf16.mxu0 %v1888
    %2548 = vmatpush1.bf16.msra.mxu0 %v1887
    %2549 = vmatprep.subr.bf16.mxu0 %v1894
    %2550 = vmatpush1.bf16.msra.mxu0 %v1893
    %2551 = vmatprep.subr.bf16.mxu0 %v1900
    %2552 = vmatpush1.bf16.msra.mxu0 %v1899
    %2553 = vmatprep.subr.bf16.mxu0 %v1906
    %2554 = vmatpush1.bf16.msra.mxu0 %v1905
    %2555 = vmatprep.mubr.bf16.mxu0 %v434
    %2556 = vmatmul.mubr.bf16.gmra.mrb[0].mxu0 %v433
    %v2557 = vpop.f32.mrb[0].mxu0
    %v2558 = vadd.f32 %v2517, %v2557
    %v2559 = vpop.f32.mrb[0].mxu0
    %v2560 = vadd.f32 %v2519, %v2559
    %v2561 = vpop.f32.mrb[0].mxu0
    %v2562 = vpop.f32.mrb[0].mxu0
    %2563 = vdwg.mxu0
    %v2564 = vmax.f32 %v2312, 0.0
    %v2565 = vmax.f32 %v2314, 0.0
    %v2566 = vmax.f32 %v2435, 0.0
    %v2567 = vmax.f32 %v2437, 0.0
    %v2568 = vmax.f32 %v2558, 0.0
    %v2569 = vmax.f32 %v2560, 0.0
    %v2570 = vpack.c.bf16 %v2564, %v2564
    %v2571 = vpack.c.bf16 %v2565, %v2565
    %v2572 = vpack.c.bf16 %v2566, %v2566
    %v2573 = vpack.c.bf16 %v2567, %v2567
    %v2574 = vpack.c.bf16 %v2568, %v2568
    %v2575 = vpack.c.bf16 %v2569, %v2569
    %v2576 = vld [vmem:[#allocation11] sm:$0xff]
    %v2577 = vld [vmem:[#allocation11 + $0x8] sm:$0xff]
    %v2578 = vld [vmem:[#allocation11 + $0x10] sm:$0xff]
    %v2579 = vld [vmem:[#allocation11 + $0x18] sm:$0xff]
    %v2580 = vld [vmem:[#allocation11 + $0x20] sm:$0xff]
    %v2581 = vld [vmem:[#allocation11 + $0x28] sm:$0xff]
    %v2582 = vld [vmem:[#allocation11 + $0x30] sm:$0xff]
    %v2583 = vld [vmem:[#allocation11 + $0x38] sm:$0xff]
    %v2584 = vld [vmem:[#allocation11 + $0x40] sm:$0xff]
    %v2585 = vld [vmem:[#allocation11 + $0x48] sm:$0xff]
    %v2586 = vld [vmem:[#allocation11 + $0x50] sm:$0xff]
    %v2587 = vld [vmem:[#allocation11 + $0x58] sm:$0xff]
    %v2588 = vld [vmem:[#allocation11 + $0x60] sm:$0xff]
    %v2589 = vld [vmem:[#allocation11 + $0x68] sm:$0xff]
    %v2590 = vld [vmem:[#allocation11 + $0x70] sm:$0xff]
    %v2591 = vld [vmem:[#allocation11 + $0x78] sm:$0xff]
    %v2592 = vld [vmem:[#allocation11 + $0x80] sm:$0xff]
    %v2593 = vld [vmem:[#allocation11 + $0x88] sm:$0xff]
    %v2594 = vld [vmem:[#allocation11 + $0x90] sm:$0xff]
    %v2595 = vld [vmem:[#allocation11 + $0x98] sm:$0xff]
    %v2596 = vld [vmem:[#allocation11 + $0xa0] sm:$0xff]
    %v2597 = vld [vmem:[#allocation11 + $0xa8] sm:$0xff]
    %v2598 = vld [vmem:[#allocation11 + $0xb0] sm:$0xff]
    %v2599 = vld [vmem:[#allocation11 + $0xb8] sm:$0xff]
    %v2600 = vld [vmem:[#allocation11 + $0xc0] sm:$0xff]
    %v2601 = vld [vmem:[#allocation11 + $0xc8] sm:$0xff]
    %v2602 = vld [vmem:[#allocation11 + $0xd0] sm:$0xff]
    %v2603 = vld [vmem:[#allocation11 + $0xd8] sm:$0xff]
    %v2604 = vld [vmem:[#allocation11 + $0xe0] sm:$0xff]
    %v2605 = vld [vmem:[#allocation11 + $0xe8] sm:$0xff]
    %v2606 = vld [vmem:[#allocation11 + $0xf0] sm:$0xff]
    %v2607 = vld [vmem:[#allocation11 + $0xf8] sm:$0xff]
    %v2608 = vld [vmem:[#allocation11 + $0x100] sm:$0xff]
    %v2609 = vld [vmem:[#allocation11 + $0x108] sm:$0xff]
    %v2610 = vld [vmem:[#allocation11 + $0x110] sm:$0xff]
    %v2611 = vld [vmem:[#allocation11 + $0x118] sm:$0xff]
    %v2612 = vld [vmem:[#allocation11 + $0x120] sm:$0xff]
    %v2613 = vld [vmem:[#allocation11 + $0x128] sm:$0xff]
    %v2614 = vld [vmem:[#allocation11 + $0x130] sm:$0xff]
    %v2615 = vld [vmem:[#allocation11 + $0x138] sm:$0xff]
    %v2616 = vld [vmem:[#allocation11 + $0x140] sm:$0xff]
    %v2617 = vld [vmem:[#allocation11 + $0x148] sm:$0xff]
    %v2618 = vld [vmem:[#allocation11 + $0x150] sm:$0xff]
    %v2619 = vld [vmem:[#allocation11 + $0x158] sm:$0xff]
    %v2620 = vld [vmem:[#allocation11 + $0x160] sm:$0xff]
    %v2621 = vld [vmem:[#allocation11 + $0x168] sm:$0xff]
    %v2622 = vld [vmem:[#allocation11 + $0x170] sm:$0xff]
    %v2623 = vld [vmem:[#allocation11 + $0x178] sm:$0xff]
    %v2624 = vld [vmem:[#allocation11 + $0x180] sm:$0xff]
    %v2625 = vld [vmem:[#allocation11 + $0x188] sm:$0xff]
    %v2626 = vld [vmem:[#allocation11 + $0x190] sm:$0xff]
    %v2627 = vld [vmem:[#allocation11 + $0x198] sm:$0xff]
    %v2628 = vld [vmem:[#allocation11 + $0x1a0] sm:$0xff]
    %v2629 = vld [vmem:[#allocation11 + $0x1a8] sm:$0xff]
    %v2630 = vld [vmem:[#allocation11 + $0x1b0] sm:$0xff]
    %v2631 = vld [vmem:[#allocation11 + $0x1b8] sm:$0xff]
    %v2632 = vld [vmem:[#allocation11 + $0x1c0] sm:$0xff]
    %v2633 = vld [vmem:[#allocation11 + $0x1c8] sm:$0xff]
    %v2634 = vld [vmem:[#allocation11 + $0x1d0] sm:$0xff]
    %v2635 = vld [vmem:[#allocation11 + $0x1d8] sm:$0xff]
    %v2636 = vld [vmem:[#allocation11 + $0x1e0] sm:$0xff]
    %v2637 = vld [vmem:[#allocation11 + $0x1e8] sm:$0xff]
    %v2638 = vld [vmem:[#allocation11 + $0x1f0] sm:$0xff]
    %v2639 = vld [vmem:[#allocation11 + $0x1f8] sm:$0xff]
    %v2640 = vld [vmem:[#allocation11 + $0x200] sm:$0xff]
    %v2641 = vld [vmem:[#allocation11 + $0x208] sm:$0xff]
    %v2642 = vld [vmem:[#allocation11 + $0x210] sm:$0xff]
    %v2643 = vld [vmem:[#allocation11 + $0x218] sm:$0xff]
    %v2644 = vld [vmem:[#allocation11 + $0x220] sm:$0xff]
    %v2645 = vld [vmem:[#allocation11 + $0x228] sm:$0xff]
    %v2646 = vld [vmem:[#allocation11 + $0x230] sm:$0xff]
    %v2647 = vld [vmem:[#allocation11 + $0x238] sm:$0xff]
    %v2648 = vld [vmem:[#allocation11 + $0x240] sm:$0xff]
    %v2649 = vld [vmem:[#allocation11 + $0x248] sm:$0xff]
    %v2650 = vld [vmem:[#allocation11 + $0x250] sm:$0xff]
    %v2651 = vld [vmem:[#allocation11 + $0x258] sm:$0xff]
    %v2652 = vld [vmem:[#allocation11 + $0x260] sm:$0xff]
    %v2653 = vld [vmem:[#allocation11 + $0x268] sm:$0xff]
    %v2654 = vld [vmem:[#allocation11 + $0x270] sm:$0xff]
    %v2655 = vld [vmem:[#allocation11 + $0x278] sm:$0xff]
    %v2656 = vld [vmem:[#allocation11 + $0x280] sm:$0xff]
    %v2657 = vld [vmem:[#allocation11 + $0x288] sm:$0xff]
    %v2658 = vld [vmem:[#allocation11 + $0x290] sm:$0xff]
    %v2659 = vld [vmem:[#allocation11 + $0x298] sm:$0xff]
    %v2660 = vld [vmem:[#allocation11 + $0x2a0] sm:$0xff]
    %v2661 = vld [vmem:[#allocation11 + $0x2a8] sm:$0xff]
    %v2662 = vld [vmem:[#allocation11 + $0x2b0] sm:$0xff]
    %v2663 = vld [vmem:[#allocation11 + $0x2b8] sm:$0xff]
    %v2664 = vld [vmem:[#allocation11 + $0x2c0] sm:$0xff]
    %v2665 = vld [vmem:[#allocation11 + $0x2c8] sm:$0xff]
    %v2666 = vld [vmem:[#allocation11 + $0x2d0] sm:$0xff]
    %v2667 = vld [vmem:[#allocation11 + $0x2d8] sm:$0xff]
    %v2668 = vld [vmem:[#allocation11 + $0x2e0] sm:$0xff]
    %v2669 = vld [vmem:[#allocation11 + $0x2e8] sm:$0xff]
    %v2670 = vld [vmem:[#allocation11 + $0x2f0] sm:$0xff]
    %v2671 = vld [vmem:[#allocation11 + $0x2f8] sm:$0xff]
    %v2672 = vld [vmem:[#allocation12] sm:$0x3]
    %v2674 = vlaneseq
    %v2675 = vshrl.u32 %v2674, 7
    %v2676 = vsub.s32 0, %v2675
    %v2677 = vrot.slane %v2672, %v2676
    %v2678 = vlaneseq
    %v2679 = vshrl.u32 %v2678, 7
    %v2680 = vsub.s32 1, %v2679
    %v2681 = vrot.slane %v2672, %v2680
    %v2780 = vunpack.c.l.b16 %v2576
    %v2781 = vunpack.c.h.b16 %v2576
    %v2782 = vunpack.c.l.b16 %v2577
    %v2783 = vunpack.c.h.b16 %v2577
    %v2784 = vunpack.c.l.b16 %v2578
    %v2785 = vunpack.c.h.b16 %v2578
    %v2786 = vunpack.c.l.b16 %v2579
    %v2787 = vunpack.c.h.b16 %v2579
    %v2788 = vunpack.c.l.b16 %v2580
    %v2789 = vunpack.c.h.b16 %v2580
    %v2790 = vunpack.c.l.b16 %v2581
    %v2791 = vunpack.c.h.b16 %v2581
    %v2792 = vunpack.c.l.b16 %v2582
    %v2793 = vunpack.c.h.b16 %v2582
    %v2794 = vunpack.c.l.b16 %v2583
    %v2795 = vunpack.c.h.b16 %v2583
    %v2796 = vunpack.c.l.b16 %v2584
    %v2797 = vunpack.c.h.b16 %v2584
    %v2798 = vunpack.c.l.b16 %v2585
    %v2799 = vunpack.c.h.b16 %v2585
    %v2800 = vunpack.c.l.b16 %v2586
    %v2801 = vunpack.c.h.b16 %v2586
    %v2802 = vunpack.c.l.b16 %v2587
    %v2803 = vunpack.c.h.b16 %v2587
    %v2804 = vunpack.c.l.b16 %v2588
    %v2805 = vunpack.c.h.b16 %v2588
    %v2806 = vunpack.c.l.b16 %v2589
    %v2807 = vunpack.c.h.b16 %v2589
    %v2808 = vunpack.c.l.b16 %v2590
    %v2809 = vunpack.c.h.b16 %v2590
    %v2810 = vunpack.c.l.b16 %v2591
    %v2811 = vunpack.c.h.b16 %v2591
    %v2812 = vunpack.c.l.b16 %v2592
    %v2813 = vunpack.c.h.b16 %v2592
    %v2814 = vunpack.c.l.b16 %v2593
    %v2815 = vunpack.c.h.b16 %v2593
    %v2816 = vunpack.c.l.b16 %v2594
    %v2817 = vunpack.c.h.b16 %v2594
    %v2818 = vunpack.c.l.b16 %v2595
    %v2819 = vunpack.c.h.b16 %v2595
    %v2820 = vunpack.c.l.b16 %v2596
    %v2821 = vunpack.c.h.b16 %v2596
    %v2822 = vunpack.c.l.b16 %v2597
    %v2823 = vunpack.c.h.b16 %v2597
    %v2824 = vunpack.c.l.b16 %v2598
    %v2825 = vunpack.c.h.b16 %v2598
    %v2826 = vunpack.c.l.b16 %v2599
    %v2827 = vunpack.c.h.b16 %v2599
    %v2828 = vunpack.c.l.b16 %v2600
    %v2829 = vunpack.c.h.b16 %v2600
    %v2830 = vunpack.c.l.b16 %v2601
    %v2831 = vunpack.c.h.b16 %v2601
    %v2832 = vunpack.c.l.b16 %v2602
    %v2833 = vunpack.c.h.b16 %v2602
    %v2834 = vunpack.c.l.b16 %v2603
    %v2835 = vunpack.c.h.b16 %v2603
    %v2836 = vunpack.c.l.b16 %v2604
    %v2837 = vunpack.c.h.b16 %v2604
    %v2838 = vunpack.c.l.b16 %v2605
    %v2839 = vunpack.c.h.b16 %v2605
    %v2840 = vunpack.c.l.b16 %v2606
    %v2841 = vunpack.c.h.b16 %v2606
    %v2842 = vunpack.c.l.b16 %v2607
    %v2843 = vunpack.c.h.b16 %v2607
    %v2844 = vunpack.c.l.b16 %v2608
    %v2845 = vunpack.c.h.b16 %v2608
    %v2846 = vunpack.c.l.b16 %v2609
    %v2847 = vunpack.c.h.b16 %v2609
    %v2848 = vunpack.c.l.b16 %v2610
    %v2849 = vunpack.c.h.b16 %v2610
    %v2850 = vunpack.c.l.b16 %v2611
    %v2851 = vunpack.c.h.b16 %v2611
    %v2852 = vunpack.c.l.b16 %v2612
    %v2853 = vunpack.c.h.b16 %v2612
    %v2854 = vunpack.c.l.b16 %v2613
    %v2855 = vunpack.c.h.b16 %v2613
    %v2856 = vunpack.c.l.b16 %v2614
    %v2857 = vunpack.c.h.b16 %v2614
    %v2858 = vunpack.c.l.b16 %v2615
    %v2859 = vunpack.c.h.b16 %v2615
    %v2860 = vunpack.c.l.b16 %v2616
    %v2861 = vunpack.c.h.b16 %v2616
    %v2862 = vunpack.c.l.b16 %v2617
    %v2863 = vunpack.c.h.b16 %v2617
    %v2864 = vunpack.c.l.b16 %v2618
    %v2865 = vunpack.c.h.b16 %v2618
    %v2866 = vunpack.c.l.b16 %v2619
    %v2867 = vunpack.c.h.b16 %v2619
    %v2868 = vunpack.c.l.b16 %v2620
    %v2869 = vunpack.c.h.b16 %v2620
    %v2870 = vunpack.c.l.b16 %v2621
    %v2871 = vunpack.c.h.b16 %v2621
    %v2872 = vunpack.c.l.b16 %v2622
    %v2873 = vunpack.c.h.b16 %v2622
    %v2874 = vunpack.c.l.b16 %v2623
    %v2875 = vunpack.c.h.b16 %v2623
    %v2876 = vunpack.c.l.b16 %v2624
    %v2877 = vunpack.c.h.b16 %v2624
    %v2878 = vunpack.c.l.b16 %v2625
    %v2879 = vunpack.c.h.b16 %v2625
    %v2880 = vunpack.c.l.b16 %v2626
    %v2881 = vunpack.c.h.b16 %v2626
    %v2882 = vunpack.c.l.b16 %v2627
    %v2883 = vunpack.c.h.b16 %v2627
    %v2884 = vunpack.c.l.b16 %v2628
    %v2885 = vunpack.c.h.b16 %v2628
    %v2886 = vunpack.c.l.b16 %v2629
    %v2887 = vunpack.c.h.b16 %v2629
    %v2888 = vunpack.c.l.b16 %v2630
    %v2889 = vunpack.c.h.b16 %v2630
    %v2890 = vunpack.c.l.b16 %v2631
    %v2891 = vunpack.c.h.b16 %v2631
    %v2892 = vunpack.c.l.b16 %v2632
    %v2893 = vunpack.c.h.b16 %v2632
    %v2894 = vunpack.c.l.b16 %v2633
    %v2895 = vunpack.c.h.b16 %v2633
    %v2896 = vunpack.c.l.b16 %v2634
    %v2897 = vunpack.c.h.b16 %v2634
    %v2898 = vunpack.c.l.b16 %v2635
    %v2899 = vunpack.c.h.b16 %v2635
    %v2900 = vunpack.c.l.b16 %v2636
    %v2901 = vunpack.c.h.b16 %v2636
    %v2902 = vunpack.c.l.b16 %v2637
    %v2903 = vunpack.c.h.b16 %v2637
    %v2904 = vunpack.c.l.b16 %v2638
    %v2905 = vunpack.c.h.b16 %v2638
    %v2906 = vunpack.c.l.b16 %v2639
    %v2907 = vunpack.c.h.b16 %v2639
    %v2908 = vunpack.c.l.b16 %v2640
    %v2909 = vunpack.c.h.b16 %v2640
    %v2910 = vunpack.c.l.b16 %v2641
    %v2911 = vunpack.c.h.b16 %v2641
    %v2912 = vunpack.c.l.b16 %v2642
    %v2913 = vunpack.c.h.b16 %v2642
    %v2914 = vunpack.c.l.b16 %v2643
    %v2915 = vunpack.c.h.b16 %v2643
    %v2916 = vunpack.c.l.b16 %v2644
    %v2917 = vunpack.c.h.b16 %v2644
    %v2918 = vunpack.c.l.b16 %v2645
    %v2919 = vunpack.c.h.b16 %v2645
    %v2920 = vunpack.c.l.b16 %v2646
    %v2921 = vunpack.c.h.b16 %v2646
    %v2922 = vunpack.c.l.b16 %v2647
    %v2923 = vunpack.c.h.b16 %v2647
    %v2924 = vunpack.c.l.b16 %v2648
    %v2925 = vunpack.c.h.b16 %v2648
    %v2926 = vunpack.c.l.b16 %v2649
    %v2927 = vunpack.c.h.b16 %v2649
    %v2928 = vunpack.c.l.b16 %v2650
    %v2929 = vunpack.c.h.b16 %v2650
    %v2930 = vunpack.c.l.b16 %v2651
    %v2931 = vunpack.c.h.b16 %v2651
    %v2932 = vunpack.c.l.b16 %v2652
    %v2933 = vunpack.c.h.b16 %v2652
    %v2934 = vunpack.c.l.b16 %v2653
    %v2935 = vunpack.c.h.b16 %v2653
    %v2936 = vunpack.c.l.b16 %v2654
    %v2937 = vunpack.c.h.b16 %v2654
    %v2938 = vunpack.c.l.b16 %v2655
    %v2939 = vunpack.c.h.b16 %v2655
    %v2940 = vunpack.c.l.b16 %v2656
    %v2941 = vunpack.c.h.b16 %v2656
    %v2942 = vunpack.c.l.b16 %v2657
    %v2943 = vunpack.c.h.b16 %v2657
    %v2944 = vunpack.c.l.b16 %v2658
    %v2945 = vunpack.c.h.b16 %v2658
    %v2946 = vunpack.c.l.b16 %v2659
    %v2947 = vunpack.c.h.b16 %v2659
    %v2948 = vunpack.c.l.b16 %v2660
    %v2949 = vunpack.c.h.b16 %v2660
    %v2950 = vunpack.c.l.b16 %v2661
    %v2951 = vunpack.c.h.b16 %v2661
    %v2952 = vunpack.c.l.b16 %v2662
    %v2953 = vunpack.c.h.b16 %v2662
    %v2954 = vunpack.c.l.b16 %v2663
    %v2955 = vunpack.c.h.b16 %v2663
    %v2956 = vunpack.c.l.b16 %v2664
    %v2957 = vunpack.c.h.b16 %v2664
    %v2958 = vunpack.c.l.b16 %v2665
    %v2959 = vunpack.c.h.b16 %v2665
    %v2960 = vunpack.c.l.b16 %v2666
    %v2961 = vunpack.c.h.b16 %v2666
    %v2962 = vunpack.c.l.b16 %v2667
    %v2963 = vunpack.c.h.b16 %v2667
    %v2964 = vunpack.c.l.b16 %v2668
    %v2965 = vunpack.c.h.b16 %v2668
    %v2966 = vunpack.c.l.b16 %v2669
    %v2967 = vunpack.c.h.b16 %v2669
    %v2968 = vunpack.c.l.b16 %v2670
    %v2969 = vunpack.c.h.b16 %v2670
    %v2970 = vunpack.c.l.b16 %v2671
    %v2971 = vunpack.c.h.b16 %v2671
    %v2972 = vpack.c.b16 %v2782, %v2780
    %v2973 = vpack.c.b16 %v2783, %v2781
    %v2974 = vpack.c.b16 %v2786, %v2784
    %v2975 = vpack.c.b16 %v2787, %v2785
    %v2976 = vpack.c.b16 %v2790, %v2788
    %v2977 = vpack.c.b16 %v2791, %v2789
    %v2978 = vpack.c.b16 %v2794, %v2792
    %v2979 = vpack.c.b16 %v2795, %v2793
    %v2980 = vpack.c.b16 %v2798, %v2796
    %v2981 = vpack.c.b16 %v2799, %v2797
    %v2982 = vpack.c.b16 %v2802, %v2800
    %v2983 = vpack.c.b16 %v2803, %v2801
    %v2984 = vpack.c.b16 %v2806, %v2804
    %v2985 = vpack.c.b16 %v2807, %v2805
    %v2986 = vpack.c.b16 %v2810, %v2808
    %v2987 = vpack.c.b16 %v2811, %v2809
    %v2988 = vpack.c.b16 %v2814, %v2812
    %v2989 = vpack.c.b16 %v2815, %v2813
    %v2990 = vpack.c.b16 %v2818, %v2816
    %v2991 = vpack.c.b16 %v2819, %v2817
    %v2992 = vpack.c.b16 %v2822, %v2820
    %v2993 = vpack.c.b16 %v2823, %v2821
    %v2994 = vpack.c.b16 %v2826, %v2824
    %v2995 = vpack.c.b16 %v2827, %v2825
    %v2996 = vpack.c.b16 %v2830, %v2828
    %v2997 = vpack.c.b16 %v2831, %v2829
    %v2998 = vpack.c.b16 %v2834, %v2832
    %v2999 = vpack.c.b16 %v2835, %v2833
    %v3000 = vpack.c.b16 %v2838, %v2836
    %v3001 = vpack.c.b16 %v2839, %v2837
    %v3002 = vpack.c.b16 %v2842, %v2840
    %v3003 = vpack.c.b16 %v2843, %v2841
    %v3004 = vpack.c.b16 %v2846, %v2844
    %v3005 = vpack.c.b16 %v2847, %v2845
    %v3006 = vpack.c.b16 %v2850, %v2848
    %v3007 = vpack.c.b16 %v2851, %v2849
    %v3008 = vpack.c.b16 %v2854, %v2852
    %v3009 = vpack.c.b16 %v2855, %v2853
    %v3010 = vpack.c.b16 %v2858, %v2856
    %v3011 = vpack.c.b16 %v2859, %v2857
    %v3012 = vpack.c.b16 %v2862, %v2860
    %v3013 = vpack.c.b16 %v2863, %v2861
    %v3014 = vpack.c.b16 %v2866, %v2864
    %v3015 = vpack.c.b16 %v2867, %v2865
    %v3016 = vpack.c.b16 %v2870, %v2868
    %v3017 = vpack.c.b16 %v2871, %v2869
    %v3018 = vpack.c.b16 %v2874, %v2872
    %v3019 = vpack.c.b16 %v2875, %v2873
    %v3020 = vpack.c.b16 %v2878, %v2876
    %v3021 = vpack.c.b16 %v2879, %v2877
    %v3022 = vpack.c.b16 %v2882, %v2880
    %v3023 = vpack.c.b16 %v2883, %v2881
    %v3024 = vpack.c.b16 %v2886, %v2884
    %v3025 = vpack.c.b16 %v2887, %v2885
    %v3026 = vpack.c.b16 %v2890, %v2888
    %v3027 = vpack.c.b16 %v2891, %v2889
    %v3028 = vpack.c.b16 %v2894, %v2892
    %v3029 = vpack.c.b16 %v2895, %v2893
    %v3030 = vpack.c.b16 %v2898, %v2896
    %v3031 = vpack.c.b16 %v2899, %v2897
    %v3032 = vpack.c.b16 %v2902, %v2900
    %v3033 = vpack.c.b16 %v2903, %v2901
    %v3034 = vpack.c.b16 %v2906, %v2904
    %v3035 = vpack.c.b16 %v2907, %v2905
    %v3036 = vpack.c.b16 %v2910, %v2908
    %v3037 = vpack.c.b16 %v2911, %v2909
    %v3038 = vpack.c.b16 %v2914, %v2912
    %v3039 = vpack.c.b16 %v2915, %v2913
    %v3040 = vpack.c.b16 %v2918, %v2916
    %v3041 = vpack.c.b16 %v2919, %v2917
    %v3042 = vpack.c.b16 %v2922, %v2920
    %v3043 = vpack.c.b16 %v2923, %v2921
    %v3044 = vpack.c.b16 %v2926, %v2924
    %v3045 = vpack.c.b16 %v2927, %v2925
    %v3046 = vpack.c.b16 %v2930, %v2928
    %v3047 = vpack.c.b16 %v2931, %v2929
    %v3048 = vpack.c.b16 %v2934, %v2932
    %v3049 = vpack.c.b16 %v2935, %v2933
    %v3050 = vpack.c.b16 %v2938, %v2936
    %v3051 = vpack.c.b16 %v2939, %v2937
    %v3052 = vpack.c.b16 %v2942, %v2940
    %v3053 = vpack.c.b16 %v2943, %v2941
    %v3054 = vpack.c.b16 %v2946, %v2944
    %v3055 = vpack.c.b16 %v2947, %v2945
    %v3056 = vpack.c.b16 %v2950, %v2948
    %v3057 = vpack.c.b16 %v2951, %v2949
    %v3058 = vpack.c.b16 %v2954, %v2952
    %v3059 = vpack.c.b16 %v2955, %v2953
    %v3060 = vpack.c.b16 %v2958, %v2956
    %v3061 = vpack.c.b16 %v2959, %v2957
    %v3062 = vpack.c.b16 %v2962, %v2960
    %v3063 = vpack.c.b16 %v2963, %v2961
    %v3064 = vpack.c.b16 %v2966, %v2964
    %v3065 = vpack.c.b16 %v2967, %v2965
    %v3066 = vpack.c.b16 %v2970, %v2968
    %v3067 = vpack.c.b16 %v2971, %v2969
    %3164 = vmatprep.subr.bf16.mxu0 %v2973
    %3165 = vmatpush1.bf16.msra.mxu0 %v2972
    %3166 = vmatprep.subr.bf16.mxu0 %v2975
    %3167 = vmatpush1.bf16.msra.mxu0 %v2974
    %3168 = vmatprep.subr.bf16.mxu0 %v2977
    %3169 = vmatpush1.bf16.msra.mxu0 %v2976
    %3170 = vmatprep.subr.bf16.mxu0 %v2979
    %3171 = vmatpush1.bf16.msra.mxu0 %v2978
    %3172 = vmatprep.subr.bf16.mxu0 %v2981
    %3173 = vmatpush1.bf16.msra.mxu0 %v2980
    %3174 = vmatprep.subr.bf16.mxu0 %v2983
    %3175 = vmatpush1.bf16.msra.mxu0 %v2982
    %3176 = vmatprep.subr.bf16.mxu0 %v2985
    %3177 = vmatpush1.bf16.msra.mxu0 %v2984
    %3178 = vmatprep.subr.bf16.mxu0 %v2987
    %3179 = vmatpush1.bf16.msra.mxu0 %v2986
    %3180 = vmatprep.subr.bf16.mxu0 %v2989
    %3181 = vmatpush1.bf16.msra.mxu0 %v2988
    %3182 = vmatprep.subr.bf16.mxu0 %v2991
    %3183 = vmatpush1.bf16.msra.mxu0 %v2990
    %3184 = vmatprep.subr.bf16.mxu0 %v2993
    %3185 = vmatpush1.bf16.msra.mxu0 %v2992
    %3186 = vmatprep.subr.bf16.mxu0 %v2995
    %3187 = vmatpush1.bf16.msra.mxu0 %v2994
    %3188 = vmatprep.subr.bf16.mxu0 %v2997
    %3189 = vmatpush1.bf16.msra.mxu0 %v2996
    %3190 = vmatprep.subr.bf16.mxu0 %v2999
    %3191 = vmatpush1.bf16.msra.mxu0 %v2998
    %3192 = vmatprep.subr.bf16.mxu0 %v3001
    %3193 = vmatpush1.bf16.msra.mxu0 %v3000
    %3194 = vmatprep.subr.bf16.mxu0 %v3003
    %3195 = vmatpush1.bf16.msra.mxu0 %v3002
    %3196 = vmatprep.mubr.bf16.mxu0 %v2571
    %3197 = vmatmul.mubr.bf16.gmra.mrb[0].mxu0 %v2570
    %v3198 = vpop.f32.mrb[0].mxu0
    %v3199 = vadd.f32 %v2677, %v3198
    %v3200 = vpop.f32.mrb[0].mxu0
    %v3201 = vadd.f32 %v2681, %v3200
    %v3202 = vpop.f32.mrb[0].mxu0
    %v3203 = vpop.f32.mrb[0].mxu0
    %3204 = vdwg.mxu0
    %3205 = vmatprep.subr.bf16.mxu0 %v3005
    %3206 = vmatpush1.bf16.msra.mxu0 %v3004
    %3207 = vmatprep.subr.bf16.mxu0 %v3007
    %3208 = vmatpush1.bf16.msra.mxu0 %v3006
    %3209 = vmatprep.subr.bf16.mxu0 %v3009
    %3210 = vmatpush1.bf16.msra.mxu0 %v3008
    %3211 = vmatprep.subr.bf16.mxu0 %v3011
    %3212 = vmatpush1.bf16.msra.mxu0 %v3010
    %3213 = vmatprep.subr.bf16.mxu0 %v3013
    %3214 = vmatpush1.bf16.msra.mxu0 %v3012
    %3215 = vmatprep.subr.bf16.mxu0 %v3015
    %3216 = vmatpush1.bf16.msra.mxu0 %v3014
    %3217 = vmatprep.subr.bf16.mxu0 %v3017
    %3218 = vmatpush1.bf16.msra.mxu0 %v3016
    %3219 = vmatprep.subr.bf16.mxu0 %v3019
    %3220 = vmatpush1.bf16.msra.mxu0 %v3018
    %3221 = vmatprep.subr.bf16.mxu0 %v3021
    %3222 = vmatpush1.bf16.msra.mxu0 %v3020
    %3223 = vmatprep.subr.bf16.mxu0 %v3023
    %3224 = vmatpush1.bf16.msra.mxu0 %v3022
    %3225 = vmatprep.subr.bf16.mxu0 %v3025
    %3226 = vmatpush1.bf16.msra.mxu0 %v3024
    %3227 = vmatprep.subr.bf16.mxu0 %v3027
    %3228 = vmatpush1.bf16.msra.mxu0 %v3026
    %3229 = vmatprep.subr.bf16.mxu0 %v3029
    %3230 = vmatpush1.bf16.msra.mxu0 %v3028
    %3231 = vmatprep.subr.bf16.mxu0 %v3031
    %3232 = vmatpush1.bf16.msra.mxu0 %v3030
    %3233 = vmatprep.subr.bf16.mxu0 %v3033
    %3234 = vmatpush1.bf16.msra.mxu0 %v3032
    %3235 = vmatprep.subr.bf16.mxu0 %v3035
    %3236 = vmatpush1.bf16.msra.mxu0 %v3034
    %3237 = vmatprep.mubr.bf16.mxu0 %v2573
    %3238 = vmatmul.mubr.bf16.gmra.mrb[0].mxu0 %v2572
    %v3239 = vpop.f32.mrb[0].mxu0
    %v3240 = vadd.f32 %v3199, %v3239
    %v3241 = vpop.f32.mrb[0].mxu0
    %v3242 = vadd.f32 %v3201, %v3241
    %v3243 = vpop.f32.mrb[0].mxu0
    %v3244 = vpop.f32.mrb[0].mxu0
    %3245 = vdwg.mxu0
    %3246 = vmatprep.subr.bf16.mxu0 %v3037
    %3247 = vmatpush1.bf16.msra.mxu0 %v3036
    %3248 = vmatprep.subr.bf16.mxu0 %v3039
    %3249 = vmatpush1.bf16.msra.mxu0 %v3038
    %3250 = vmatprep.subr.bf16.mxu0 %v3041
    %3251 = vmatpush1.bf16.msra.mxu0 %v3040
    %3252 = vmatprep.subr.bf16.mxu0 %v3043
    %3253 = vmatpush1.bf16.msra.mxu0 %v3042
    %3254 = vmatprep.subr.bf16.mxu0 %v3045
    %3255 = vmatpush1.bf16.msra.mxu0 %v3044
    %3256 = vmatprep.subr.bf16.mxu0 %v3047
    %3257 = vmatpush1.bf16.msra.mxu0 %v3046
    %3258 = vmatprep.subr.bf16.mxu0 %v3049
    %3259 = vmatpush1.bf16.msra.mxu0 %v3048
    %3260 = vmatprep.subr.bf16.mxu0 %v3051
    %3261 = vmatpush1.bf16.msra.mxu0 %v3050
    %3262 = vmatprep.subr.bf16.mxu0 %v3053
    %3263 = vmatpush1.bf16.msra.mxu0 %v3052
    %3264 = vmatprep.subr.bf16.mxu0 %v3055
    %3265 = vmatpush1.bf16.msra.mxu0 %v3054
    %3266 = vmatprep.subr.bf16.mxu0 %v3057
    %3267 = vmatpush1.bf16.msra.mxu0 %v3056
    %3268 = vmatprep.subr.bf16.mxu0 %v3059
    %3269 = vmatpush1.bf16.msra.mxu0 %v3058
    %3270 = vmatprep.subr.bf16.mxu0 %v3061
    %3271 = vmatpush1.bf16.msra.mxu0 %v3060
    %3272 = vmatprep.subr.bf16.mxu0 %v3063
    %3273 = vmatpush1.bf16.msra.mxu0 %v3062
    %3274 = vmatprep.subr.bf16.mxu0 %v3065
    %3275 = vmatpush1.bf16.msra.mxu0 %v3064
    %3276 = vmatprep.subr.bf16.mxu0 %v3067
    %3277 = vmatpush1.bf16.msra.mxu0 %v3066
    %3278 = vmatprep.mubr.bf16.mxu0 %v2575
    %3279 = vmatmul.mubr.bf16.gmra.mrb[0].mxu0 %v2574
    %v3280 = vpop.f32.mrb[0].mxu0
    %v3281 = vadd.f32 %v3240, %v3280
    %v3282 = vpop.f32.mrb[0].mxu0
    %v3283 = vadd.f32 %v3242, %v3282
    %v3284 = vpop.f32.mrb[0].mxu0
    %v3285 = vpop.f32.mrb[0].mxu0
    %3286 = vdwg.mxu0
    %v3287 = vmax.f32 %v3283, -4.0
    %v3288 = vmin.f32 %v3287, 15.0
    %v3289 = vmul.f32 %v3288, 1.442695
    %v3290 = vpow.pop %v3289
    %v3291 = vmul.f32 %v3290, %v226
    %v3292 = vadd.f32 %v3281, %v3291
    %v3293 = vld [vmem:[#allocation14] sm:$0xff]
    %v3294 = vld [vmem:[#allocation14 + $0x8] sm:$0xff]
    %v3295 = vld [vmem:[#allocation14 + $0x10] sm:$0xff]
    %v3296 = vld [vmem:[#allocation14 + $0x18] sm:$0x33]
    %v3297 = vld [vmem:[#allocation14 + $0x20] sm:$0x33]
    %v3298 = vld [vmem:[#allocation14 + $0x28] sm:$0x33]
    %v3299 = vpack.c.bf16 %v3292, %v3292
    %v3300 = vld [vmem:[#allocation15] sm:$0xff]
    %v3301 = vld [vmem:[#allocation15 + $0x8] sm:$0xff]
    %v3302 = vld [vmem:[#allocation15 + $0x10] sm:$0xff]
    %v3303 = vld [vmem:[#allocation15 + $0x18] sm:$0xff]
    %v3304 = vld [vmem:[#allocation15 + $0x20] sm:$0xff]
    %v3305 = vld [vmem:[#allocation15 + $0x28] sm:$0xff]
    %v3306 = vld [vmem:[#allocation15 + $0x30] sm:$0xff]
    %v3307 = vld [vmem:[#allocation15 + $0x38] sm:$0xff]
    %v3308 = vld [vmem:[#allocation15 + $0x40] sm:$0xff]
    %v3309 = vld [vmem:[#allocation15 + $0x48] sm:$0xff]
    %v3310 = vld [vmem:[#allocation15 + $0x50] sm:$0xff]
    %v3311 = vld [vmem:[#allocation15 + $0x58] sm:$0xff]
    %v3312 = vld [vmem:[#allocation15 + $0x60] sm:$0xff]
    %v3313 = vld [vmem:[#allocation15 + $0x68] sm:$0xff]
    %v3314 = vld [vmem:[#allocation15 + $0x70] sm:$0xff]
    %v3315 = vld [vmem:[#allocation15 + $0x78] sm:$0xff]
    %v3316 = vld [vmem:[#allocation15 + $0x80] sm:$0xff]
    %v3317 = vld [vmem:[#allocation15 + $0x88] sm:$0xff]
    %v3318 = vld [vmem:[#allocation15 + $0x90] sm:$0xff]
    %v3319 = vld [vmem:[#allocation15 + $0x98] sm:$0xff]
    %v3320 = vld [vmem:[#allocation15 + $0xa0] sm:$0xff]
    %v3321 = vld [vmem:[#allocation15 + $0xa8] sm:$0xff]
    %v3322 = vld [vmem:[#allocation15 + $0xb0] sm:$0xff]
    %v3323 = vld [vmem:[#allocation15 + $0xb8] sm:$0xff]
    %v3324 = vld [vmem:[#allocation15 + $0xc0] sm:$0xff]
    %v3325 = vld [vmem:[#allocation15 + $0xc8] sm:$0xff]
    %v3326 = vld [vmem:[#allocation15 + $0xd0] sm:$0xff]
    %v3327 = vld [vmem:[#allocation15 + $0xd8] sm:$0xff]
    %v3328 = vld [vmem:[#allocation15 + $0xe0] sm:$0xff]
    %v3329 = vld [vmem:[#allocation15 + $0xe8] sm:$0xff]
    %v3330 = vld [vmem:[#allocation15 + $0xf0] sm:$0xff]
    %v3331 = vld [vmem:[#allocation15 + $0xf8] sm:$0xff]
    %v3332 = vld [vmem:[#allocation15 + $0x100] sm:$0xff]
    %v3333 = vld [vmem:[#allocation15 + $0x108] sm:$0xff]
    %v3334 = vld [vmem:[#allocation15 + $0x110] sm:$0xff]
    %v3335 = vld [vmem:[#allocation15 + $0x118] sm:$0xff]
    %v3336 = vld [vmem:[#allocation15 + $0x120] sm:$0xff]
    %v3337 = vld [vmem:[#allocation15 + $0x128] sm:$0xff]
    %v3338 = vld [vmem:[#allocation15 + $0x130] sm:$0xff]
    %v3339 = vld [vmem:[#allocation15 + $0x138] sm:$0xff]
    %v3340 = vld [vmem:[#allocation15 + $0x140] sm:$0xff]
    %v3341 = vld [vmem:[#allocation15 + $0x148] sm:$0xff]
    %v3342 = vld [vmem:[#allocation15 + $0x150] sm:$0xff]
    %v3343 = vld [vmem:[#allocation15 + $0x158] sm:$0xff]
    %v3344 = vld [vmem:[#allocation15 + $0x160] sm:$0xff]
    %v3345 = vld [vmem:[#allocation15 + $0x168] sm:$0xff]
    %v3346 = vld [vmem:[#allocation15 + $0x170] sm:$0xff]
    %v3347 = vld [vmem:[#allocation15 + $0x178] sm:$0xff]
    %v3396 = vunpack.c.l.b16 %v3300
    %v3397 = vunpack.c.h.b16 %v3300
    %v3398 = vunpack.c.l.b16 %v3301
    %v3399 = vunpack.c.h.b16 %v3301
    %v3400 = vunpack.c.l.b16 %v3302
    %v3401 = vunpack.c.h.b16 %v3302
    %v3402 = vunpack.c.l.b16 %v3303
    %v3403 = vunpack.c.h.b16 %v3303
    %v3404 = vunpack.c.l.b16 %v3304
    %v3405 = vunpack.c.h.b16 %v3304
    %v3406 = vunpack.c.l.b16 %v3305
    %v3407 = vunpack.c.h.b16 %v3305
    %v3408 = vunpack.c.l.b16 %v3306
    %v3409 = vunpack.c.h.b16 %v3306
    %v3410 = vunpack.c.l.b16 %v3307
    %v3411 = vunpack.c.h.b16 %v3307
    %v3412 = vunpack.c.l.b16 %v3308
    %v3413 = vunpack.c.h.b16 %v3308
    %v3414 = vunpack.c.l.b16 %v3309
    %v3415 = vunpack.c.h.b16 %v3309
    %v3416 = vunpack.c.l.b16 %v3310
    %v3417 = vunpack.c.h.b16 %v3310
    %v3418 = vunpack.c.l.b16 %v3311
    %v3419 = vunpack.c.h.b16 %v3311
    %v3420 = vunpack.c.l.b16 %v3312
    %v3421 = vunpack.c.h.b16 %v3312
    %v3422 = vunpack.c.l.b16 %v3313
    %v3423 = vunpack.c.h.b16 %v3313
    %v3424 = vunpack.c.l.b16 %v3314
    %v3425 = vunpack.c.h.b16 %v3314
    %v3426 = vunpack.c.l.b16 %v3315
    %v3427 = vunpack.c.h.b16 %v3315
    %v3428 = vunpack.c.l.b16 %v3316
    %v3429 = vunpack.c.h.b16 %v3316
    %v3430 = vunpack.c.l.b16 %v3317
    %v3431 = vunpack.c.h.b16 %v3317
    %v3432 = vunpack.c.l.b16 %v3318
    %v3433 = vunpack.c.h.b16 %v3318
    %v3434 = vunpack.c.l.b16 %v3319
    %v3435 = vunpack.c.h.b16 %v3319
    %v3436 = vunpack.c.l.b16 %v3320
    %v3437 = vunpack.c.h.b16 %v3320
    %v3438 = vunpack.c.l.b16 %v3321
    %v3439 = vunpack.c.h.b16 %v3321
    %v3440 = vunpack.c.l.b16 %v3322
    %v3441 = vunpack.c.h.b16 %v3322
    %v3442 = vunpack.c.l.b16 %v3323
    %v3443 = vunpack.c.h.b16 %v3323
    %v3444 = vunpack.c.l.b16 %v3324
    %v3445 = vunpack.c.h.b16 %v3324
    %v3446 = vunpack.c.l.b16 %v3325
    %v3447 = vunpack.c.h.b16 %v3325
    %v3448 = vunpack.c.l.b16 %v3326
    %v3449 = vunpack.c.h.b16 %v3326
    %v3450 = vunpack.c.l.b16 %v3327
    %v3451 = vunpack.c.h.b16 %v3327
    %v3452 = vunpack.c.l.b16 %v3328
    %v3453 = vunpack.c.h.b16 %v3328
    %v3454 = vunpack.c.l.b16 %v3329
    %v3455 = vunpack.c.h.b16 %v3329
    %v3456 = vunpack.c.l.b16 %v3330
    %v3457 = vunpack.c.h.b16 %v3330
    %v3458 = vunpack.c.l.b16 %v3331
    %v3459 = vunpack.c.h.b16 %v3331
    %v3460 = vunpack.c.l.b16 %v3332
    %v3461 = vunpack.c.h.b16 %v3332
    %v3462 = vunpack.c.l.b16 %v3333
    %v3463 = vunpack.c.h.b16 %v3333
    %v3464 = vunpack.c.l.b16 %v3334
    %v3465 = vunpack.c.h.b16 %v3334
    %v3466 = vunpack.c.l.b16 %v3335
    %v3467 = vunpack.c.h.b16 %v3335
    %v3468 = vunpack.c.l.b16 %v3336
    %v3469 = vunpack.c.h.b16 %v3336
    %v3470 = vunpack.c.l.b16 %v3337
    %v3471 = vunpack.c.h.b16 %v3337
    %v3472 = vunpack.c.l.b16 %v3338
    %v3473 = vunpack.c.h.b16 %v3338
    %v3474 = vunpack.c.l.b16 %v3339
    %v3475 = vunpack.c.h.b16 %v3339
    %v3476 = vunpack.c.l.b16 %v3340
    %v3477 = vunpack.c.h.b16 %v3340
    %v3478 = vunpack.c.l.b16 %v3341
    %v3479 = vunpack.c.h.b16 %v3341
    %v3480 = vunpack.c.l.b16 %v3342
    %v3481 = vunpack.c.h.b16 %v3342
    %v3482 = vunpack.c.l.b16 %v3343
    %v3483 = vunpack.c.h.b16 %v3343
    %v3484 = vunpack.c.l.b16 %v3344
    %v3485 = vunpack.c.h.b16 %v3344
    %v3486 = vunpack.c.l.b16 %v3345
    %v3487 = vunpack.c.h.b16 %v3345
    %v3488 = vunpack.c.l.b16 %v3346
    %v3489 = vunpack.c.h.b16 %v3346
    %v3490 = vunpack.c.l.b16 %v3347
    %v3491 = vunpack.c.h.b16 %v3347
    %v3492 = vpack.c.b16 %v3402, %v3396
    %v3493 = vpack.c.b16 %v3403, %v3397
    %v3494 = vpack.c.b16 %v3404, %v3398
    %v3495 = vpack.c.b16 %v3405, %v3399
    %v3496 = vpack.c.b16 %v3406, %v3400
    %v3497 = vpack.c.b16 %v3407, %v3401
    %v3498 = vpack.c.b16 %v3414, %v3408
    %v3499 = vpack.c.b16 %v3415, %v3409
    %v3500 = vpack.c.b16 %v3416, %v3410
    %v3501 = vpack.c.b16 %v3417, %v3411
    %v3502 = vpack.c.b16 %v3418, %v3412
    %v3503 = vpack.c.b16 %v3419, %v3413
    %v3504 = vpack.c.b16 %v3426, %v3420
    %v3505 = vpack.c.b16 %v3427, %v3421
    %v3506 = vpack.c.b16 %v3428, %v3422
    %v3507 = vpack.c.b16 %v3429, %v3423
    %v3508 = vpack.c.b16 %v3430, %v3424
    %v3509 = vpack.c.b16 %v3431, %v3425
    %v3510 = vpack.c.b16 %v3438, %v3432
    %v3511 = vpack.c.b16 %v3439, %v3433
    %v3512 = vpack.c.b16 %v3440, %v3434
    %v3513 = vpack.c.b16 %v3441, %v3435
    %v3514 = vpack.c.b16 %v3442, %v3436
    %v3515 = vpack.c.b16 %v3443, %v3437
    %v3516 = vpack.c.b16 %v3450, %v3444
    %v3517 = vpack.c.b16 %v3451, %v3445
    %v3518 = vpack.c.b16 %v3452, %v3446
    %v3519 = vpack.c.b16 %v3453, %v3447
    %v3520 = vpack.c.b16 %v3454, %v3448
    %v3521 = vpack.c.b16 %v3455, %v3449
    %v3522 = vpack.c.b16 %v3462, %v3456
    %v3523 = vpack.c.b16 %v3463, %v3457
    %v3524 = vpack.c.b16 %v3464, %v3458
    %v3525 = vpack.c.b16 %v3465, %v3459
    %v3526 = vpack.c.b16 %v3466, %v3460
    %v3527 = vpack.c.b16 %v3467, %v3461
    %v3528 = vpack.c.b16 %v3474, %v3468
    %v3529 = vpack.c.b16 %v3475, %v3469
    %v3530 = vpack.c.b16 %v3476, %v3470
    %v3531 = vpack.c.b16 %v3477, %v3471
    %v3532 = vpack.c.b16 %v3478, %v3472
    %v3533 = vpack.c.b16 %v3479, %v3473
    %v3534 = vpack.c.b16 %v3486, %v3480
    %v3535 = vpack.c.b16 %v3487, %v3481
    %v3536 = vpack.c.b16 %v3488, %v3482
    %v3537 = vpack.c.b16 %v3489, %v3483
    %v3538 = vpack.c.b16 %v3490, %v3484
    %v3539 = vpack.c.b16 %v3491, %v3485
    %3588 = vmatprep.subr.bf16.mxu0 %v3493
    %3589 = vmatpush1.bf16.msra.mxu0 %v3492
    %3590 = vmatprep.subr.bf16.mxu0 %v3499
    %3591 = vmatpush1.bf16.msra.mxu0 %v3498
    %3592 = vmatprep.subr.bf16.mxu0 %v3505
    %3593 = vmatpush1.bf16.msra.mxu0 %v3504
    %3594 = vmatprep.subr.bf16.mxu0 %v3511
    %3595 = vmatpush1.bf16.msra.mxu0 %v3510
    %3596 = vmatprep.subr.bf16.mxu0 %v3517
    %3597 = vmatpush1.bf16.msra.mxu0 %v3516
    %3598 = vmatprep.subr.bf16.mxu0 %v3523
    %3599 = vmatpush1.bf16.msra.mxu0 %v3522
    %3600 = vmatprep.subr.bf16.mxu0 %v3529
    %3601 = vmatpush1.bf16.msra.mxu0 %v3528
    %3602 = vmatprep.subr.bf16.mxu0 %v3535
    %3603 = vmatpush1.bf16.msra.mxu0 %v3534
    %3604 = vmatprep.subr.bf16.mxu0 0
    %3605 = vmatpush1.bf16.msra.mxu0 0
    %3606 = vmatprep.subr.bf16.mxu0 0
    %3607 = vmatpush1.bf16.msra.mxu0 0
    %3608 = vmatprep.subr.bf16.mxu0 0
    %3609 = vmatpush1.bf16.msra.mxu0 0
    %3610 = vmatprep.subr.bf16.mxu0 0
    %3611 = vmatpush1.bf16.msra.mxu0 0
    %3612 = vmatprep.subr.bf16.mxu0 0
    %3613 = vmatpush1.bf16.msra.mxu0 0
    %3614 = vmatprep.subr.bf16.mxu0 0
    %3615 = vmatpush1.bf16.msra.mxu0 0
    %3616 = vmatprep.subr.bf16.mxu0 0
    %3617 = vmatpush1.bf16.msra.mxu0 0
    %3618 = vmatprep.subr.bf16.mxu0 0
    %3619 = vmatpush1.bf16.msra.mxu0 0
    %3620 = vmatprep.mubr.bf16.mxu0 0
    %3621 = vmatmul.mubr.bf16.gmra.mrb[0].mxu0 %v3299
    %v3622 = vpop.f32.mrb[0].mxu0
    %v3623 = vadd.f32 0.0, %v3622
    %v3624 = vpop.f32.mrb[0].mxu0
    %v3625 = vadd.f32 0.0, %v3624
    %v3626 = vpop.f32.mrb[0].mxu0
    %v3627 = vpop.f32.mrb[0].mxu0
    %3628 = vdwg.mxu0
    %3629 = vmatprep.subr.bf16.mxu0 %v3495
    %3630 = vmatpush1.bf16.msra.mxu0 %v3494
    %3631 = vmatprep.subr.bf16.mxu0 %v3501
    %3632 = vmatpush1.bf16.msra.mxu0 %v3500
    %3633 = vmatprep.subr.bf16.mxu0 %v3507
    %3634 = vmatpush1.bf16.msra.mxu0 %v3506
    %3635 = vmatprep.subr.bf16.mxu0 %v3513
    %3636 = vmatpush1.bf16.msra.mxu0 %v3512
    %3637 = vmatprep.subr.bf16.mxu0 %v3519
    %3638 = vmatpush1.bf16.msra.mxu0 %v3518
    %3639 = vmatprep.subr.bf16.mxu0 %v3525
    %3640 = vmatpush1.bf16.msra.mxu0 %v3524
    %3641 = vmatprep.subr.bf16.mxu0 %v3531
    %3642 = vmatpush1.bf16.msra.mxu0 %v3530
    %3643 = vmatprep.subr.bf16.mxu0 %v3537
    %3644 = vmatpush1.bf16.msra.mxu0 %v3536
    %3645 = vmatprep.subr.bf16.mxu0 0
    %3646 = vmatpush1.bf16.msra.mxu0 0
    %3647 = vmatprep.subr.bf16.mxu0 0
    %3648 = vmatpush1.bf16.msra.mxu0 0
    %3649 = vmatprep.subr.bf16.mxu0 0
    %3650 = vmatpush1.bf16.msra.mxu0 0
    %3651 = vmatprep.subr.bf16.mxu0 0
    %3652 = vmatpush1.bf16.msra.mxu0 0
    %3653 = vmatprep.subr.bf16.mxu0 0
    %3654 = vmatpush1.bf16.msra.mxu0 0
    %3655 = vmatprep.subr.bf16.mxu0 0
    %3656 = vmatpush1.bf16.msra.mxu0 0
    %3657 = vmatprep.subr.bf16.mxu0 0
    %3658 = vmatpush1.bf16.msra.mxu0 0
    %3659 = vmatprep.subr.bf16.mxu0 0
    %3660 = vmatpush1.bf16.msra.mxu0 0
    %3661 = vmatprep.mubr.bf16.mxu0 0
    %3662 = vmatmul.mubr.bf16.gmra.mrb[0].mxu0 %v3299
    %v3663 = vpop.f32.mrb[0].mxu0
    %v3664 = vadd.f32 0.0, %v3663
    %v3665 = vpop.f32.mrb[0].mxu0
    %v3666 = vadd.f32 0.0, %v3665
    %v3667 = vpop.f32.mrb[0].mxu0
    %v3668 = vpop.f32.mrb[0].mxu0
    %3669 = vdwg.mxu0
    %3670 = vmatprep.subr.bf16.mxu0 %v3497
    %3671 = vmatpush1.bf16.msra.mxu0 %v3496
    %3672 = vmatprep.subr.bf16.mxu0 %v3503
    %3673 = vmatpush1.bf16.msra.mxu0 %v3502
    %3674 = vmatprep.subr.bf16.mxu0 %v3509
    %3675 = vmatpush1.bf16.msra.mxu0 %v3508
    %3676 = vmatprep.subr.bf16.mxu0 %v3515
    %3677 = vmatpush1.bf16.msra.mxu0 %v3514
    %3678 = vmatprep.subr.bf16.mxu0 %v3521
    %3679 = vmatpush1.bf16.msra.mxu0 %v3520
    %3680 = vmatprep.subr.bf16.mxu0 %v3527
    %3681 = vmatpush1.bf16.msra.mxu0 %v3526
    %3682 = vmatprep.subr.bf16.mxu0 %v3533
    %3683 = vmatpush1.bf16.msra.mxu0 %v3532
    %3684 = vmatprep.subr.bf16.mxu0 %v3539
    %3685 = vmatpush1.bf16.msra.mxu0 %v3538
    %3686 = vmatprep.subr.bf16.mxu0 0
    %3687 = vmatpush1.bf16.msra.mxu0 0
    %3688 = vmatprep.subr.bf16.mxu0 0
    %3689 = vmatpush1.bf16.msra.mxu0 0
    %3690 = vmatprep.subr.bf16.mxu0 0
    %3691 = vmatpush1.bf16.msra.mxu0 0
    %3692 = vmatprep.subr.bf16.mxu0 0
    %3693 = vmatpush1.bf16.msra.mxu0 0
    %3694 = vmatprep.subr.bf16.mxu0 0
    %3695 = vmatpush1.bf16.msra.mxu0 0
    %3696 = vmatprep.subr.bf16.mxu0 0
    %3697 = vmatpush1.bf16.msra.mxu0 0
    %3698 = vmatprep.subr.bf16.mxu0 0
    %3699 = vmatpush1.bf16.msra.mxu0 0
    %3700 = vmatprep.subr.bf16.mxu0 0
    %3701 = vmatpush1.bf16.msra.mxu0 0
    %3702 = vmatprep.mubr.bf16.mxu0 0
    %3703 = vmatmul.mubr.bf16.gmra.mrb[0].mxu0 %v3299
    %v3704 = vpop.f32.mrb[0].mxu0
    %v3705 = vadd.f32 0.0, %v3704
    %v3706 = vpop.f32.mrb[0].mxu0
    %v3707 = vadd.f32 0.0, %v3706
    %v3708 = vpop.f32.mrb[0].mxu0
    %v3709 = vpop.f32.mrb[0].mxu0
    %3710 = vdwg.mxu0
    %v3717 = vunpack.c.l.b16 %v3293
    %v3718 = vunpack.c.h.b16 %v3293
    %v3719 = vunpack.c.l.b16 %v3294
    %v3720 = vunpack.c.h.b16 %v3294
    %v3721 = vunpack.c.l.b16 %v3295
    %v3722 = vunpack.c.h.b16 %v3295
    %v3723 = vunpack.c.l.b16 %v3296
    %v3724 = vunpack.c.h.b16 %v3296
    %v3725 = vunpack.c.l.b16 %v3297
    %v3726 = vunpack.c.h.b16 %v3297
    %v3727 = vunpack.c.l.b16 %v3298
    %v3728 = vunpack.c.h.b16 %v3298
    %v3729 = vpack.c.b16 %v3723, %v3717
    %v3730 = vpack.c.b16 %v3724, %v3718
    %v3731 = vpack.c.b16 %v3725, %v3719
    %v3732 = vpack.c.b16 %v3726, %v3720
    %v3733 = vpack.c.b16 %v3727, %v3721
    %v3734 = vpack.c.b16 %v3728, %v3722
    %vm3735 = vcmask 97280
    %v3736 = vsel %vm3735, %v227, 0
    %vm3738 = vcmask 1045504
    %v3740 = vsel %vm3738, %v3729, 0
    %v3743 = vsel %vm3738, %v3730, 0
    %v3746 = vsel %vm3738, %v3731, 0
    %v3749 = vsel %vm3738, %v3732, 0
    %v3752 = vsel %vm3738, %v3733, 0
    %v3755 = vsel %vm3738, %v3734, 0
    %3757 = vmatprep.subr.bf16.mxu0 %v3743
    %3758 = vmatpush1.bf16.msra.mxu0 %v3740
    %3759 = vmatprep.subr.bf16.mxu0 0
    %3760 = vmatpush1.bf16.msra.mxu0 0
    %3761 = vmatprep.subr.bf16.mxu0 0
    %3762 = vmatpush1.bf16.msra.mxu0 0
    %3763 = vmatprep.subr.bf16.mxu0 0
    %3764 = vmatpush1.bf16.msra.mxu0 0
    %3765 = vmatprep.subr.bf16.mxu0 0
    %3766 = vmatpush1.bf16.msra.mxu0 0
    %3767 = vmatprep.subr.bf16.mxu0 0
    %3768 = vmatpush1.bf16.msra.mxu0 0
    %3769 = vmatprep.subr.bf16.mxu0 0
    %3770 = vmatpush1.bf16.msra.mxu0 0
    %3771 = vmatprep.subr.bf16.mxu0 0
    %3772 = vmatpush1.bf16.msra.mxu0 0
    %3773 = vmatprep.subr.bf16.mxu0 0
    %3774 = vmatpush1.bf16.msra.mxu0 0
    %3775 = vmatprep.subr.bf16.mxu0 0
    %3776 = vmatpush1.bf16.msra.mxu0 0
    %3777 = vmatprep.subr.bf16.mxu0 0
    %3778 = vmatpush1.bf16.msra.mxu0 0
    %3779 = vmatprep.subr.bf16.mxu0 0
    %3780 = vmatpush1.bf16.msra.mxu0 0
    %3781 = vmatprep.subr.bf16.mxu0 0
    %3782 = vmatpush1.bf16.msra.mxu0 0
    %3783 = vmatprep.subr.bf16.mxu0 0
    %3784 = vmatpush1.bf16.msra.mxu0 0
    %3785 = vmatprep.subr.bf16.mxu0 0
    %3786 = vmatpush1.bf16.msra.mxu0 0
    %3787 = vmatprep.subr.bf16.mxu0 0
    %3788 = vmatpush1.bf16.msra.mxu0 0
    %3789 = vmatprep.mubr.bf16.mxu0 0
    %3790 = vmatmul.mubr.bf16.gmra.mrb[0].mxu0 %v3736
    %v3791 = vpop.f32.mrb[0].mxu0
    %v3792 = vadd.f32 %v3623, %v3791
    %v3793 = vpop.f32.mrb[0].mxu0
    %v3794 = vadd.f32 %v3625, %v3793
    %v3795 = vpop.f32.mrb[0].mxu0
    %v3796 = vpop.f32.mrb[0].mxu0
    %3797 = vdwg.mxu0
    %3798 = vmatprep.subr.bf16.mxu0 %v3749
    %3799 = vmatpush1.bf16.msra.mxu0 %v3746
    %3800 = vmatprep.subr.bf16.mxu0 0
    %3801 = vmatpush1.bf16.msra.mxu0 0
    %3802 = vmatprep.subr.bf16.mxu0 0
    %3803 = vmatpush1.bf16.msra.mxu0 0
    %3804 = vmatprep.subr.bf16.mxu0 0
    %3805 = vmatpush1.bf16.msra.mxu0 0
    %3806 = vmatprep.subr.bf16.mxu0 0
    %3807 = vmatpush1.bf16.msra.mxu0 0
    %3808 = vmatprep.subr.bf16.mxu0 0
    %3809 = vmatpush1.bf16.msra.mxu0 0
    %3810 = vmatprep.subr.bf16.mxu0 0
    %3811 = vmatpush1.bf16.msra.mxu0 0
    %3812 = vmatprep.subr.bf16.mxu0 0
    %3813 = vmatpush1.bf16.msra.mxu0 0
    %3814 = vmatprep.subr.bf16.mxu0 0
    %3815 = vmatpush1.bf16.msra.mxu0 0
    %3816 = vmatprep.subr.bf16.mxu0 0
    %3817 = vmatpush1.bf16.msra.mxu0 0
    %3818 = vmatprep.subr.bf16.mxu0 0
    %3819 = vmatpush1.bf16.msra.mxu0 0
    %3820 = vmatprep.subr.bf16.mxu0 0
    %3821 = vmatpush1.bf16.msra.mxu0 0
    %3822 = vmatprep.subr.bf16.mxu0 0
    %3823 = vmatpush1.bf16.msra.mxu0 0
    %3824 = vmatprep.subr.bf16.mxu0 0
    %3825 = vmatpush1.bf16.msra.mxu0 0
    %3826 = vmatprep.subr.bf16.mxu0 0
    %3827 = vmatpush1.bf16.msra.mxu0 0
    %3828 = vmatprep.subr.bf16.mxu0 0
    %3829 = vmatpush1.bf16.msra.mxu0 0
    %3830 = vmatprep.mubr.bf16.mxu0 0
    %3831 = vmatmul.mubr.bf16.gmra.mrb[0].mxu0 %v3736
    %v3832 = vpop.f32.mrb[0].mxu0
    %v3833 = vadd.f32 %v3664, %v3832
    %v3834 = vpop.f32.mrb[0].mxu0
    %v3835 = vadd.f32 %v3666, %v3834
    %v3836 = vpop.f32.mrb[0].mxu0
    %v3837 = vpop.f32.mrb[0].mxu0
    %3838 = vdwg.mxu0
    %3839 = vmatprep.subr.bf16.mxu0 %v3755
    %3840 = vmatpush1.bf16.msra.mxu0 %v3752
    %3841 = vmatprep.subr.bf16.mxu0 0
    %3842 = vmatpush1.bf16.msra.mxu0 0
    %3843 = vmatprep.subr.bf16.mxu0 0
    %3844 = vmatpush1.bf16.msra.mxu0 0
    %3845 = vmatprep.subr.bf16.mxu0 0
    %3846 = vmatpush1.bf16.msra.mxu0 0
    %3847 = vmatprep.subr.bf16.mxu0 0
    %3848 = vmatpush1.bf16.msra.mxu0 0
    %3849 = vmatprep.subr.bf16.mxu0 0
    %3850 = vmatpush1.bf16.msra.mxu0 0
    %3851 = vmatprep.subr.bf16.mxu0 0
    %3852 = vmatpush1.bf16.msra.mxu0 0
    %3853 = vmatprep.subr.bf16.mxu0 0
    %3854 = vmatpush1.bf16.msra.mxu0 0
    %3855 = vmatprep.subr.bf16.mxu0 0
    %3856 = vmatpush1.bf16.msra.mxu0 0
    %3857 = vmatprep.subr.bf16.mxu0 0
    %3858 = vmatpush1.bf16.msra.mxu0 0
    %3859 = vmatprep.subr.bf16.mxu0 0
    %3860 = vmatpush1.bf16.msra.mxu0 0
    %3861 = vmatprep.subr.bf16.mxu0 0
    %3862 = vmatpush1.bf16.msra.mxu0 0
    %3863 = vmatprep.subr.bf16.mxu0 0
    %3864 = vmatpush1.bf16.msra.mxu0 0
    %3865 = vmatprep.subr.bf16.mxu0 0
    %3866 = vmatpush1.bf16.msra.mxu0 0
    %3867 = vmatprep.subr.bf16.mxu0 0
    %3868 = vmatpush1.bf16.msra.mxu0 0
    %3869 = vmatprep.subr.bf16.mxu0 0
    %3870 = vmatpush1.bf16.msra.mxu0 0
    %3871 = vmatprep.mubr.bf16.mxu0 0
    %3872 = vmatmul.mubr.bf16.gmra.mrb[0].mxu0 %v3736
    %v3873 = vpop.f32.mrb[0].mxu0
    %v3874 = vadd.f32 %v3705, %v3873
    %v3875 = vpop.f32.mrb[0].mxu0
    %v3876 = vadd.f32 %v3707, %v3875
    %v3877 = vpop.f32.mrb[0].mxu0
    %v3878 = vpop.f32.mrb[0].mxu0
    %3879 = vdwg.mxu0
    %v3880 = vld [vmem:[#allocation17] sm:$0x3f]
    %v3882 = vlaneseq
    %v3883 = vshrl.u32 %v3882, 7
    %v3884 = vsub.s32 0, %v3883
    %v3885 = vrot.slane %v3880, %v3884
    %v3886 = vlaneseq
    %v3887 = vshrl.u32 %v3886, 7
    %v3888 = vsub.s32 1, %v3887
    %v3889 = vrot.slane %v3880, %v3888
    %v3890 = vlaneseq
    %v3891 = vshrl.u32 %v3890, 7
    %v3892 = vsub.s32 2, %v3891
    %v3893 = vrot.slane %v3880, %v3892
    %v3894 = vlaneseq
    %v3895 = vshrl.u32 %v3894, 7
    %v3896 = vsub.s32 3, %v3895
    %v3897 = vrot.slane %v3880, %v3896
    %v3898 = vlaneseq
    %v3899 = vshrl.u32 %v3898, 7
    %v3900 = vsub.s32 4, %v3899
    %v3901 = vrot.slane %v3880, %v3900
    %v3902 = vlaneseq
    %v3903 = vshrl.u32 %v3902, 7
    %v3904 = vsub.s32 5, %v3903
    %v3905 = vrot.slane %v3880, %v3904
    %v3912 = vadd.f32 %v3792, %v3885
    %v3913 = vadd.f32 %v3794, %v3889
    %v3914 = vadd.f32 %v3833, %v3893
    %v3915 = vadd.f32 %v3835, %v3897
    %v3916 = vadd.f32 %v3874, %v3901
    %v3917 = vadd.f32 %v3876, %v3905
    %v3918 = vmax.f32 %v3912, 0.0
    %v3919 = vmax.f32 %v3913, 0.0
    %v3920 = vmax.f32 %v3914, 0.0
    %v3921 = vmax.f32 %v3915, 0.0
    %v3922 = vmax.f32 %v3916, 0.0
    %v3923 = vmax.f32 %v3917, 0.0
    %v3924 = vpack.c.bf16 %v3918, %v3918
    %v3925 = vpack.c.bf16 %v3919, %v3919
    %v3926 = vpack.c.bf16 %v3920, %v3920
    %v3927 = vpack.c.bf16 %v3921, %v3921
    %v3928 = vpack.c.bf16 %v3922, %v3922
    %v3929 = vpack.c.bf16 %v3923, %v3923
    %v3930 = vld [vmem:[#allocation18] sm:$0xff]
    %v3931 = vld [vmem:[#allocation18 + $0x8] sm:$0xff]
    %v3932 = vld [vmem:[#allocation18 + $0x10] sm:$0xff]
    %v3933 = vld [vmem:[#allocation18 + $0x18] sm:$0xff]
    %v3934 = vld [vmem:[#allocation18 + $0x20] sm:$0xff]
    %v3935 = vld [vmem:[#allocation18 + $0x28] sm:$0xff]
    %v3936 = vld [vmem:[#allocation18 + $0x30] sm:$0xff]
    %v3937 = vld [vmem:[#allocation18 + $0x38] sm:$0xff]
    %v3938 = vld [vmem:[#allocation18 + $0x40] sm:$0xff]
    %v3939 = vld [vmem:[#allocation18 + $0x48] sm:$0xff]
    %v3940 = vld [vmem:[#allocation18 + $0x50] sm:$0xff]
    %v3941 = vld [vmem:[#allocation18 + $0x58] sm:$0xff]
    %v3942 = vld [vmem:[#allocation18 + $0x60] sm:$0xff]
    %v3943 = vld [vmem:[#allocation18 + $0x68] sm:$0xff]
    %v3944 = vld [vmem:[#allocation18 + $0x70] sm:$0xff]
    %v3945 = vld [vmem:[#allocation18 + $0x78] sm:$0xff]
    %v3946 = vld [vmem:[#allocation18 + $0x80] sm:$0xff]
    %v3947 = vld [vmem:[#allocation18 + $0x88] sm:$0xff]
    %v3948 = vld [vmem:[#allocation18 + $0x90] sm:$0xff]
    %v3949 = vld [vmem:[#allocation18 + $0x98] sm:$0xff]
    %v3950 = vld [vmem:[#allocation18 + $0xa0] sm:$0xff]
    %v3951 = vld [vmem:[#allocation18 + $0xa8] sm:$0xff]
    %v3952 = vld [vmem:[#allocation18 + $0xb0] sm:$0xff]
    %v3953 = vld [vmem:[#allocation18 + $0xb8] sm:$0xff]
    %v3954 = vld [vmem:[#allocation18 + $0xc0] sm:$0xff]
    %v3955 = vld [vmem:[#allocation18 + $0xc8] sm:$0xff]
    %v3956 = vld [vmem:[#allocation18 + $0xd0] sm:$0xff]
    %v3957 = vld [vmem:[#allocation18 + $0xd8] sm:$0xff]
    %v3958 = vld [vmem:[#allocation18 + $0xe0] sm:$0xff]
    %v3959 = vld [vmem:[#allocation18 + $0xe8] sm:$0xff]
    %v3960 = vld [vmem:[#allocation18 + $0xf0] sm:$0xff]
    %v3961 = vld [vmem:[#allocation18 + $0xf8] sm:$0xff]
    %v3962 = vld [vmem:[#allocation18 + $0x100] sm:$0xff]
    %v3963 = vld [vmem:[#allocation18 + $0x108] sm:$0xff]
    %v3964 = vld [vmem:[#allocation18 + $0x110] sm:$0xff]
    %v3965 = vld [vmem:[#allocation18 + $0x118] sm:$0xff]
    %v3966 = vld [vmem:[#allocation18 + $0x120] sm:$0xff]
    %v3967 = vld [vmem:[#allocation18 + $0x128] sm:$0xff]
    %v3968 = vld [vmem:[#allocation18 + $0x130] sm:$0xff]
    %v3969 = vld [vmem:[#allocation18 + $0x138] sm:$0xff]
    %v3970 = vld [vmem:[#allocation18 + $0x140] sm:$0xff]
    %v3971 = vld [vmem:[#allocation18 + $0x148] sm:$0xff]
    %v3972 = vld [vmem:[#allocation18 + $0x150] sm:$0xff]
    %v3973 = vld [vmem:[#allocation18 + $0x158] sm:$0xff]
    %v3974 = vld [vmem:[#allocation18 + $0x160] sm:$0xff]
    %v3975 = vld [vmem:[#allocation18 + $0x168] sm:$0xff]
    %v3976 = vld [vmem:[#allocation18 + $0x170] sm:$0xff]
    %v3977 = vld [vmem:[#allocation18 + $0x178] sm:$0xff]
    %v3978 = vld [vmem:[#allocation18 + $0x180] sm:$0xff]
    %v3979 = vld [vmem:[#allocation18 + $0x188] sm:$0xff]
    %v3980 = vld [vmem:[#allocation18 + $0x190] sm:$0xff]
    %v3981 = vld [vmem:[#allocation18 + $0x198] sm:$0xff]
    %v3982 = vld [vmem:[#allocation18 + $0x1a0] sm:$0xff]
    %v3983 = vld [vmem:[#allocation18 + $0x1a8] sm:$0xff]
    %v3984 = vld [vmem:[#allocation18 + $0x1b0] sm:$0xff]
    %v3985 = vld [vmem:[#allocation18 + $0x1b8] sm:$0xff]
    %v3986 = vld [vmem:[#allocation18 + $0x1c0] sm:$0xff]
    %v3987 = vld [vmem:[#allocation18 + $0x1c8] sm:$0xff]
    %v3988 = vld [vmem:[#allocation18 + $0x1d0] sm:$0xff]
    %v3989 = vld [vmem:[#allocation18 + $0x1d8] sm:$0xff]
    %v3990 = vld [vmem:[#allocation18 + $0x1e0] sm:$0xff]
    %v3991 = vld [vmem:[#allocation18 + $0x1e8] sm:$0xff]
    %v3992 = vld [vmem:[#allocation18 + $0x1f0] sm:$0xff]
    %v3993 = vld [vmem:[#allocation18 + $0x1f8] sm:$0xff]
    %v3994 = vld [vmem:[#allocation18 + $0x200] sm:$0xff]
    %v3995 = vld [vmem:[#allocation18 + $0x208] sm:$0xff]
    %v3996 = vld [vmem:[#allocation18 + $0x210] sm:$0xff]
    %v3997 = vld [vmem:[#allocation18 + $0x218] sm:$0xff]
    %v3998 = vld [vmem:[#allocation18 + $0x220] sm:$0xff]
    %v3999 = vld [vmem:[#allocation18 + $0x228] sm:$0xff]
    %v4000 = vld [vmem:[#allocation18 + $0x230] sm:$0xff]
    %v4001 = vld [vmem:[#allocation18 + $0x238] sm:$0xff]
    %v4002 = vld [vmem:[#allocation18 + $0x240] sm:$0xff]
    %v4003 = vld [vmem:[#allocation18 + $0x248] sm:$0xff]
    %v4004 = vld [vmem:[#allocation18 + $0x250] sm:$0xff]
    %v4005 = vld [vmem:[#allocation18 + $0x258] sm:$0xff]
    %v4006 = vld [vmem:[#allocation18 + $0x260] sm:$0xff]
    %v4007 = vld [vmem:[#allocation18 + $0x268] sm:$0xff]
    %v4008 = vld [vmem:[#allocation18 + $0x270] sm:$0xff]
    %v4009 = vld [vmem:[#allocation18 + $0x278] sm:$0xff]
    %v4010 = vld [vmem:[#allocation18 + $0x280] sm:$0xff]
    %v4011 = vld [vmem:[#allocation18 + $0x288] sm:$0xff]
    %v4012 = vld [vmem:[#allocation18 + $0x290] sm:$0xff]
    %v4013 = vld [vmem:[#allocation18 + $0x298] sm:$0xff]
    %v4014 = vld [vmem:[#allocation18 + $0x2a0] sm:$0xff]
    %v4015 = vld [vmem:[#allocation18 + $0x2a8] sm:$0xff]
    %v4016 = vld [vmem:[#allocation18 + $0x2b0] sm:$0xff]
    %v4017 = vld [vmem:[#allocation18 + $0x2b8] sm:$0xff]
    %v4018 = vld [vmem:[#allocation18 + $0x2c0] sm:$0xff]
    %v4019 = vld [vmem:[#allocation18 + $0x2c8] sm:$0xff]
    %v4020 = vld [vmem:[#allocation18 + $0x2d0] sm:$0xff]
    %v4021 = vld [vmem:[#allocation18 + $0x2d8] sm:$0xff]
    %v4022 = vld [vmem:[#allocation18 + $0x2e0] sm:$0xff]
    %v4023 = vld [vmem:[#allocation18 + $0x2e8] sm:$0xff]
    %v4024 = vld [vmem:[#allocation18 + $0x2f0] sm:$0xff]
    %v4025 = vld [vmem:[#allocation18 + $0x2f8] sm:$0xff]
    %v4026 = vld [vmem:[#allocation18 + $0x300] sm:$0xff]
    %v4027 = vld [vmem:[#allocation18 + $0x308] sm:$0xff]
    %v4028 = vld [vmem:[#allocation18 + $0x310] sm:$0xff]
    %v4029 = vld [vmem:[#allocation18 + $0x318] sm:$0xff]
    %v4030 = vld [vmem:[#allocation18 + $0x320] sm:$0xff]
    %v4031 = vld [vmem:[#allocation18 + $0x328] sm:$0xff]
    %v4032 = vld [vmem:[#allocation18 + $0x330] sm:$0xff]
    %v4033 = vld [vmem:[#allocation18 + $0x338] sm:$0xff]
    %v4034 = vld [vmem:[#allocation18 + $0x340] sm:$0xff]
    %v4035 = vld [vmem:[#allocation18 + $0x348] sm:$0xff]
    %v4036 = vld [vmem:[#allocation18 + $0x350] sm:$0xff]
    %v4037 = vld [vmem:[#allocation18 + $0x358] sm:$0xff]
    %v4038 = vld [vmem:[#allocation18 + $0x360] sm:$0xff]
    %v4039 = vld [vmem:[#allocation18 + $0x368] sm:$0xff]
    %v4040 = vld [vmem:[#allocation18 + $0x370] sm:$0xff]
    %v4041 = vld [vmem:[#allocation18 + $0x378] sm:$0xff]
    %v4042 = vld [vmem:[#allocation18 + $0x380] sm:$0xff]
    %v4043 = vld [vmem:[#allocation18 + $0x388] sm:$0xff]
    %v4044 = vld [vmem:[#allocation18 + $0x390] sm:$0xff]
    %v4045 = vld [vmem:[#allocation18 + $0x398] sm:$0xff]
    %v4046 = vld [vmem:[#allocation18 + $0x3a0] sm:$0xff]
    %v4047 = vld [vmem:[#allocation18 + $0x3a8] sm:$0xff]
    %v4048 = vld [vmem:[#allocation18 + $0x3b0] sm:$0xff]
    %v4049 = vld [vmem:[#allocation18 + $0x3b8] sm:$0xff]
    %v4050 = vld [vmem:[#allocation18 + $0x3c0] sm:$0xff]
    %v4051 = vld [vmem:[#allocation18 + $0x3c8] sm:$0xff]
    %v4052 = vld [vmem:[#allocation18 + $0x3d0] sm:$0xff]
    %v4053 = vld [vmem:[#allocation18 + $0x3d8] sm:$0xff]
    %v4054 = vld [vmem:[#allocation18 + $0x3e0] sm:$0xff]
    %v4055 = vld [vmem:[#allocation18 + $0x3e8] sm:$0xff]
    %v4056 = vld [vmem:[#allocation18 + $0x3f0] sm:$0xff]
    %v4057 = vld [vmem:[#allocation18 + $0x3f8] sm:$0xff]
    %v4058 = vld [vmem:[#allocation18 + $0x400] sm:$0xff]
    %v4059 = vld [vmem:[#allocation18 + $0x408] sm:$0xff]
    %v4060 = vld [vmem:[#allocation18 + $0x410] sm:$0xff]
    %v4061 = vld [vmem:[#allocation18 + $0x418] sm:$0xff]
    %v4062 = vld [vmem:[#allocation18 + $0x420] sm:$0xff]
    %v4063 = vld [vmem:[#allocation18 + $0x428] sm:$0xff]
    %v4064 = vld [vmem:[#allocation18 + $0x430] sm:$0xff]
    %v4065 = vld [vmem:[#allocation18 + $0x438] sm:$0xff]
    %v4066 = vld [vmem:[#allocation18 + $0x440] sm:$0xff]
    %v4067 = vld [vmem:[#allocation18 + $0x448] sm:$0xff]
    %v4068 = vld [vmem:[#allocation18 + $0x450] sm:$0xff]
    %v4069 = vld [vmem:[#allocation18 + $0x458] sm:$0xff]
    %v4070 = vld [vmem:[#allocation18 + $0x460] sm:$0xff]
    %v4071 = vld [vmem:[#allocation18 + $0x468] sm:$0xff]
    %v4072 = vld [vmem:[#allocation18 + $0x470] sm:$0xff]
    %v4073 = vld [vmem:[#allocation18 + $0x478] sm:$0xff]
    %v4074 = vld [vmem:[#allocation18 + $0x480] sm:$0xff]
    %v4075 = vld [vmem:[#allocation18 + $0x488] sm:$0xff]
    %v4076 = vld [vmem:[#allocation18 + $0x490] sm:$0xff]
    %v4077 = vld [vmem:[#allocation18 + $0x498] sm:$0xff]
    %v4078 = vld [vmem:[#allocation18 + $0x4a0] sm:$0xff]
    %v4079 = vld [vmem:[#allocation18 + $0x4a8] sm:$0xff]
    %v4080 = vld [vmem:[#allocation18 + $0x4b0] sm:$0xff]
    %v4081 = vld [vmem:[#allocation18 + $0x4b8] sm:$0xff]
    %v4082 = vld [vmem:[#allocation18 + $0x4c0] sm:$0xff]
    %v4083 = vld [vmem:[#allocation18 + $0x4c8] sm:$0xff]
    %v4084 = vld [vmem:[#allocation18 + $0x4d0] sm:$0xff]
    %v4085 = vld [vmem:[#allocation18 + $0x4d8] sm:$0xff]
    %v4086 = vld [vmem:[#allocation18 + $0x4e0] sm:$0xff]
    %v4087 = vld [vmem:[#allocation18 + $0x4e8] sm:$0xff]
    %v4088 = vld [vmem:[#allocation18 + $0x4f0] sm:$0xff]
    %v4089 = vld [vmem:[#allocation18 + $0x4f8] sm:$0xff]
    %v4090 = vld [vmem:[#allocation18 + $0x500] sm:$0xff]
    %v4091 = vld [vmem:[#allocation18 + $0x508] sm:$0xff]
    %v4092 = vld [vmem:[#allocation18 + $0x510] sm:$0xff]
    %v4093 = vld [vmem:[#allocation18 + $0x518] sm:$0xff]
    %v4094 = vld [vmem:[#allocation18 + $0x520] sm:$0xff]
    %v4095 = vld [vmem:[#allocation18 + $0x528] sm:$0xff]
    %v4096 = vld [vmem:[#allocation18 + $0x530] sm:$0xff]
    %v4097 = vld [vmem:[#allocation18 + $0x538] sm:$0xff]
    %v4098 = vld [vmem:[#allocation18 + $0x540] sm:$0xff]
    %v4099 = vld [vmem:[#allocation18 + $0x548] sm:$0xff]
    %v4100 = vld [vmem:[#allocation18 + $0x550] sm:$0xff]
    %v4101 = vld [vmem:[#allocation18 + $0x558] sm:$0xff]
    %v4102 = vld [vmem:[#allocation18 + $0x560] sm:$0xff]
    %v4103 = vld [vmem:[#allocation18 + $0x568] sm:$0xff]
    %v4104 = vld [vmem:[#allocation18 + $0x570] sm:$0xff]
    %v4105 = vld [vmem:[#allocation18 + $0x578] sm:$0xff]
    %v4106 = vld [vmem:[#allocation18 + $0x580] sm:$0xff]
    %v4107 = vld [vmem:[#allocation18 + $0x588] sm:$0xff]
    %v4108 = vld [vmem:[#allocation18 + $0x590] sm:$0xff]
    %v4109 = vld [vmem:[#allocation18 + $0x598] sm:$0xff]
    %v4110 = vld [vmem:[#allocation18 + $0x5a0] sm:$0xff]
    %v4111 = vld [vmem:[#allocation18 + $0x5a8] sm:$0xff]
    %v4112 = vld [vmem:[#allocation18 + $0x5b0] sm:$0xff]
    %v4113 = vld [vmem:[#allocation18 + $0x5b8] sm:$0xff]
    %v4114 = vld [vmem:[#allocation18 + $0x5c0] sm:$0xff]
    %v4115 = vld [vmem:[#allocation18 + $0x5c8] sm:$0xff]
    %v4116 = vld [vmem:[#allocation18 + $0x5d0] sm:$0xff]
    %v4117 = vld [vmem:[#allocation18 + $0x5d8] sm:$0xff]
    %v4118 = vld [vmem:[#allocation18 + $0x5e0] sm:$0xff]
    %v4119 = vld [vmem:[#allocation18 + $0x5e8] sm:$0xff]
    %v4120 = vld [vmem:[#allocation18 + $0x5f0] sm:$0xff]
    %v4121 = vld [vmem:[#allocation18 + $0x5f8] sm:$0xff]
    %v4122 = vld [vmem:[#allocation18 + $0x600] sm:$0xff]
    %v4123 = vld [vmem:[#allocation18 + $0x608] sm:$0xff]
    %v4124 = vld [vmem:[#allocation18 + $0x610] sm:$0xff]
    %v4125 = vld [vmem:[#allocation18 + $0x618] sm:$0xff]
    %v4126 = vld [vmem:[#allocation18 + $0x620] sm:$0xff]
    %v4127 = vld [vmem:[#allocation18 + $0x628] sm:$0xff]
    %v4128 = vld [vmem:[#allocation18 + $0x630] sm:$0xff]
    %v4129 = vld [vmem:[#allocation18 + $0x638] sm:$0xff]
    %v4130 = vld [vmem:[#allocation18 + $0x640] sm:$0xff]
    %v4131 = vld [vmem:[#allocation18 + $0x648] sm:$0xff]
    %v4132 = vld [vmem:[#allocation18 + $0x650] sm:$0xff]
    %v4133 = vld [vmem:[#allocation18 + $0x658] sm:$0xff]
    %v4134 = vld [vmem:[#allocation18 + $0x660] sm:$0xff]
    %v4135 = vld [vmem:[#allocation18 + $0x668] sm:$0xff]
    %v4136 = vld [vmem:[#allocation18 + $0x670] sm:$0xff]
    %v4137 = vld [vmem:[#allocation18 + $0x678] sm:$0xff]
    %v4138 = vld [vmem:[#allocation18 + $0x680] sm:$0xff]
    %v4139 = vld [vmem:[#allocation18 + $0x688] sm:$0xff]
    %v4140 = vld [vmem:[#allocation18 + $0x690] sm:$0xff]
    %v4141 = vld [vmem:[#allocation18 + $0x698] sm:$0xff]
    %v4142 = vld [vmem:[#allocation18 + $0x6a0] sm:$0xff]
    %v4143 = vld [vmem:[#allocation18 + $0x6a8] sm:$0xff]
    %v4144 = vld [vmem:[#allocation18 + $0x6b0] sm:$0xff]
    %v4145 = vld [vmem:[#allocation18 + $0x6b8] sm:$0xff]
    %v4146 = vld [vmem:[#allocation18 + $0x6c0] sm:$0xff]
    %v4147 = vld [vmem:[#allocation18 + $0x6c8] sm:$0xff]
    %v4148 = vld [vmem:[#allocation18 + $0x6d0] sm:$0xff]
    %v4149 = vld [vmem:[#allocation18 + $0x6d8] sm:$0xff]
    %v4150 = vld [vmem:[#allocation18 + $0x6e0] sm:$0xff]
    %v4151 = vld [vmem:[#allocation18 + $0x6e8] sm:$0xff]
    %v4152 = vld [vmem:[#allocation18 + $0x6f0] sm:$0xff]
    %v4153 = vld [vmem:[#allocation18 + $0x6f8] sm:$0xff]
    %v4154 = vld [vmem:[#allocation18 + $0x700] sm:$0xff]
    %v4155 = vld [vmem:[#allocation18 + $0x708] sm:$0xff]
    %v4156 = vld [vmem:[#allocation18 + $0x710] sm:$0xff]
    %v4157 = vld [vmem:[#allocation18 + $0x718] sm:$0xff]
    %v4158 = vld [vmem:[#allocation18 + $0x720] sm:$0xff]
    %v4159 = vld [vmem:[#allocation18 + $0x728] sm:$0xff]
    %v4160 = vld [vmem:[#allocation18 + $0x730] sm:$0xff]
    %v4161 = vld [vmem:[#allocation18 + $0x738] sm:$0xff]
    %v4162 = vld [vmem:[#allocation18 + $0x740] sm:$0xff]
    %v4163 = vld [vmem:[#allocation18 + $0x748] sm:$0xff]
    %v4164 = vld [vmem:[#allocation18 + $0x750] sm:$0xff]
    %v4165 = vld [vmem:[#allocation18 + $0x758] sm:$0xff]
    %v4166 = vld [vmem:[#allocation18 + $0x760] sm:$0xff]
    %v4167 = vld [vmem:[#allocation18 + $0x768] sm:$0xff]
    %v4168 = vld [vmem:[#allocation18 + $0x770] sm:$0xff]
    %v4169 = vld [vmem:[#allocation18 + $0x778] sm:$0xff]
    %v4170 = vld [vmem:[#allocation18 + $0x780] sm:$0xff]
    %v4171 = vld [vmem:[#allocation18 + $0x788] sm:$0xff]
    %v4172 = vld [vmem:[#allocation18 + $0x790] sm:$0xff]
    %v4173 = vld [vmem:[#allocation18 + $0x798] sm:$0xff]
    %v4174 = vld [vmem:[#allocation18 + $0x7a0] sm:$0xff]
    %v4175 = vld [vmem:[#allocation18 + $0x7a8] sm:$0xff]
    %v4176 = vld [vmem:[#allocation18 + $0x7b0] sm:$0xff]
    %v4177 = vld [vmem:[#allocation18 + $0x7b8] sm:$0xff]
    %v4178 = vld [vmem:[#allocation18 + $0x7c0] sm:$0xff]
    %v4179 = vld [vmem:[#allocation18 + $0x7c8] sm:$0xff]
    %v4180 = vld [vmem:[#allocation18 + $0x7d0] sm:$0xff]
    %v4181 = vld [vmem:[#allocation18 + $0x7d8] sm:$0xff]
    %v4182 = vld [vmem:[#allocation18 + $0x7e0] sm:$0xff]
    %v4183 = vld [vmem:[#allocation18 + $0x7e8] sm:$0xff]
    %v4184 = vld [vmem:[#allocation18 + $0x7f0] sm:$0xff]
    %v4185 = vld [vmem:[#allocation18 + $0x7f8] sm:$0xff]
    %v4186 = vld [vmem:[#allocation18 + $0x800] sm:$0xff]
    %v4187 = vld [vmem:[#allocation18 + $0x808] sm:$0xff]
    %v4188 = vld [vmem:[#allocation18 + $0x810] sm:$0xff]
    %v4189 = vld [vmem:[#allocation18 + $0x818] sm:$0xff]
    %v4190 = vld [vmem:[#allocation18 + $0x820] sm:$0xff]
    %v4191 = vld [vmem:[#allocation18 + $0x828] sm:$0xff]
    %v4192 = vld [vmem:[#allocation18 + $0x830] sm:$0xff]
    %v4193 = vld [vmem:[#allocation18 + $0x838] sm:$0xff]
    %v4194 = vld [vmem:[#allocation18 + $0x840] sm:$0xff]
    %v4195 = vld [vmem:[#allocation18 + $0x848] sm:$0xff]
    %v4196 = vld [vmem:[#allocation18 + $0x850] sm:$0xff]
    %v4197 = vld [vmem:[#allocation18 + $0x858] sm:$0xff]
    %v4198 = vld [vmem:[#allocation18 + $0x860] sm:$0xff]
    %v4199 = vld [vmem:[#allocation18 + $0x868] sm:$0xff]
    %v4200 = vld [vmem:[#allocation18 + $0x870] sm:$0xff]
    %v4201 = vld [vmem:[#allocation18 + $0x878] sm:$0xff]
    %v4202 = vld [vmem:[#allocation18 + $0x880] sm:$0xff]
    %v4203 = vld [vmem:[#allocation18 + $0x888] sm:$0xff]
    %v4204 = vld [vmem:[#allocation18 + $0x890] sm:$0xff]
    %v4205 = vld [vmem:[#allocation18 + $0x898] sm:$0xff]
    %v4206 = vld [vmem:[#allocation18 + $0x8a0] sm:$0xff]
    %v4207 = vld [vmem:[#allocation18 + $0x8a8] sm:$0xff]
    %v4208 = vld [vmem:[#allocation18 + $0x8b0] sm:$0xff]
    %v4209 = vld [vmem:[#allocation18 + $0x8b8] sm:$0xff]
    %v4210 = vld [vmem:[#allocation18 + $0x8c0] sm:$0xff]
    %v4211 = vld [vmem:[#allocation18 + $0x8c8] sm:$0xff]
    %v4212 = vld [vmem:[#allocation18 + $0x8d0] sm:$0xff]
    %v4213 = vld [vmem:[#allocation18 + $0x8d8] sm:$0xff]
    %v4214 = vld [vmem:[#allocation18 + $0x8e0] sm:$0xff]
    %v4215 = vld [vmem:[#allocation18 + $0x8e8] sm:$0xff]
    %v4216 = vld [vmem:[#allocation18 + $0x8f0] sm:$0xff]
    %v4217 = vld [vmem:[#allocation18 + $0x8f8] sm:$0xff]
    %v4218 = vld [vmem:[#allocation20] sm:$0x3f]
    %v4220 = vlaneseq
    %v4221 = vshrl.u32 %v4220, 7
    %v4222 = vsub.s32 0, %v4221
    %v4223 = vrot.slane %v4218, %v4222
    %v4224 = vlaneseq
    %v4225 = vshrl.u32 %v4224, 7
    %v4226 = vsub.s32 1, %v4225
    %v4227 = vrot.slane %v4218, %v4226
    %v4228 = vlaneseq
    %v4229 = vshrl.u32 %v4228, 7
    %v4230 = vsub.s32 2, %v4229
    %v4231 = vrot.slane %v4218, %v4230
    %v4232 = vlaneseq
    %v4233 = vshrl.u32 %v4232, 7
    %v4234 = vsub.s32 3, %v4233
    %v4235 = vrot.slane %v4218, %v4234
    %v4236 = vlaneseq
    %v4237 = vshrl.u32 %v4236, 7
    %v4238 = vsub.s32 4, %v4237
    %v4239 = vrot.slane %v4218, %v4238
    %v4240 = vlaneseq
    %v4241 = vshrl.u32 %v4240, 7
    %v4242 = vsub.s32 5, %v4241
    %v4243 = vrot.slane %v4218, %v4242
    %v4538 = vunpack.c.l.b16 %v3930
    %v4539 = vunpack.c.h.b16 %v3930
    %v4540 = vunpack.c.l.b16 %v3931
    %v4541 = vunpack.c.h.b16 %v3931
    %v4542 = vunpack.c.l.b16 %v3932
    %v4543 = vunpack.c.h.b16 %v3932
    %v4544 = vunpack.c.l.b16 %v3933
    %v4545 = vunpack.c.h.b16 %v3933
    %v4546 = vunpack.c.l.b16 %v3934
    %v4547 = vunpack.c.h.b16 %v3934
    %v4548 = vunpack.c.l.b16 %v3935
    %v4549 = vunpack.c.h.b16 %v3935
    %v4550 = vunpack.c.l.b16 %v3936
    %v4551 = vunpack.c.h.b16 %v3936
    %v4552 = vunpack.c.l.b16 %v3937
    %v4553 = vunpack.c.h.b16 %v3937
    %v4554 = vunpack.c.l.b16 %v3938
    %v4555 = vunpack.c.h.b16 %v3938
    %v4556 = vunpack.c.l.b16 %v3939
    %v4557 = vunpack.c.h.b16 %v3939
    %v4558 = vunpack.c.l.b16 %v3940
    %v4559 = vunpack.c.h.b16 %v3940
    %v4560 = vunpack.c.l.b16 %v3941
    %v4561 = vunpack.c.h.b16 %v3941
    %v4562 = vunpack.c.l.b16 %v3942
    %v4563 = vunpack.c.h.b16 %v3942
    %v4564 = vunpack.c.l.b16 %v3943
    %v4565 = vunpack.c.h.b16 %v3943
    %v4566 = vunpack.c.l.b16 %v3944
    %v4567 = vunpack.c.h.b16 %v3944
    %v4568 = vunpack.c.l.b16 %v3945
    %v4569 = vunpack.c.h.b16 %v3945
    %v4570 = vunpack.c.l.b16 %v3946
    %v4571 = vunpack.c.h.b16 %v3946
    %v4572 = vunpack.c.l.b16 %v3947
    %v4573 = vunpack.c.h.b16 %v3947
    %v4574 = vunpack.c.l.b16 %v3948
    %v4575 = vunpack.c.h.b16 %v3948
    %v4576 = vunpack.c.l.b16 %v3949
    %v4577 = vunpack.c.h.b16 %v3949
    %v4578 = vunpack.c.l.b16 %v3950
    %v4579 = vunpack.c.h.b16 %v3950
    %v4580 = vunpack.c.l.b16 %v3951
    %v4581 = vunpack.c.h.b16 %v3951
    %v4582 = vunpack.c.l.b16 %v3952
    %v4583 = vunpack.c.h.b16 %v3952
    %v4584 = vunpack.c.l.b16 %v3953
    %v4585 = vunpack.c.h.b16 %v3953
    %v4586 = vunpack.c.l.b16 %v3954
    %v4587 = vunpack.c.h.b16 %v3954
    %v4588 = vunpack.c.l.b16 %v3955
    %v4589 = vunpack.c.h.b16 %v3955
    %v4590 = vunpack.c.l.b16 %v3956
    %v4591 = vunpack.c.h.b16 %v3956
    %v4592 = vunpack.c.l.b16 %v3957
    %v4593 = vunpack.c.h.b16 %v3957
    %v4594 = vunpack.c.l.b16 %v3958
    %v4595 = vunpack.c.h.b16 %v3958
    %v4596 = vunpack.c.l.b16 %v3959
    %v4597 = vunpack.c.h.b16 %v3959
    %v4598 = vunpack.c.l.b16 %v3960
    %v4599 = vunpack.c.h.b16 %v3960
    %v4600 = vunpack.c.l.b16 %v3961
    %v4601 = vunpack.c.h.b16 %v3961
    %v4602 = vunpack.c.l.b16 %v3962
    %v4603 = vunpack.c.h.b16 %v3962
    %v4604 = vunpack.c.l.b16 %v3963
    %v4605 = vunpack.c.h.b16 %v3963
    %v4606 = vunpack.c.l.b16 %v3964
    %v4607 = vunpack.c.h.b16 %v3964
    %v4608 = vunpack.c.l.b16 %v3965
    %v4609 = vunpack.c.h.b16 %v3965
    %v4610 = vunpack.c.l.b16 %v3966
    %v4611 = vunpack.c.h.b16 %v3966
    %v4612 = vunpack.c.l.b16 %v3967
    %v4613 = vunpack.c.h.b16 %v3967
    %v4614 = vunpack.c.l.b16 %v3968
    %v4615 = vunpack.c.h.b16 %v3968
    %v4616 = vunpack.c.l.b16 %v3969
    %v4617 = vunpack.c.h.b16 %v3969
    %v4618 = vunpack.c.l.b16 %v3970
    %v4619 = vunpack.c.h.b16 %v3970
    %v4620 = vunpack.c.l.b16 %v3971
    %v4621 = vunpack.c.h.b16 %v3971
    %v4622 = vunpack.c.l.b16 %v3972
    %v4623 = vunpack.c.h.b16 %v3972
    %v4624 = vunpack.c.l.b16 %v3973
    %v4625 = vunpack.c.h.b16 %v3973
    %v4626 = vunpack.c.l.b16 %v3974
    %v4627 = vunpack.c.h.b16 %v3974
    %v4628 = vunpack.c.l.b16 %v3975
    %v4629 = vunpack.c.h.b16 %v3975
    %v4630 = vunpack.c.l.b16 %v3976
    %v4631 = vunpack.c.h.b16 %v3976
    %v4632 = vunpack.c.l.b16 %v3977
    %v4633 = vunpack.c.h.b16 %v3977
    %v4634 = vunpack.c.l.b16 %v3978
    %v4635 = vunpack.c.h.b16 %v3978
    %v4636 = vunpack.c.l.b16 %v3979
    %v4637 = vunpack.c.h.b16 %v3979
    %v4638 = vunpack.c.l.b16 %v3980
    %v4639 = vunpack.c.h.b16 %v3980
    %v4640 = vunpack.c.l.b16 %v3981
    %v4641 = vunpack.c.h.b16 %v3981
    %v4642 = vunpack.c.l.b16 %v3982
    %v4643 = vunpack.c.h.b16 %v3982
    %v4644 = vunpack.c.l.b16 %v3983
    %v4645 = vunpack.c.h.b16 %v3983
    %v4646 = vunpack.c.l.b16 %v3984
    %v4647 = vunpack.c.h.b16 %v3984
    %v4648 = vunpack.c.l.b16 %v3985
    %v4649 = vunpack.c.h.b16 %v3985
    %v4650 = vunpack.c.l.b16 %v3986
    %v4651 = vunpack.c.h.b16 %v3986
    %v4652 = vunpack.c.l.b16 %v3987
    %v4653 = vunpack.c.h.b16 %v3987
    %v4654 = vunpack.c.l.b16 %v3988
    %v4655 = vunpack.c.h.b16 %v3988
    %v4656 = vunpack.c.l.b16 %v3989
    %v4657 = vunpack.c.h.b16 %v3989
    %v4658 = vunpack.c.l.b16 %v3990
    %v4659 = vunpack.c.h.b16 %v3990
    %v4660 = vunpack.c.l.b16 %v3991
    %v4661 = vunpack.c.h.b16 %v3991
    %v4662 = vunpack.c.l.b16 %v3992
    %v4663 = vunpack.c.h.b16 %v3992
    %v4664 = vunpack.c.l.b16 %v3993
    %v4665 = vunpack.c.h.b16 %v3993
    %v4666 = vunpack.c.l.b16 %v3994
    %v4667 = vunpack.c.h.b16 %v3994
    %v4668 = vunpack.c.l.b16 %v3995
    %v4669 = vunpack.c.h.b16 %v3995
    %v4670 = vunpack.c.l.b16 %v3996
    %v4671 = vunpack.c.h.b16 %v3996
    %v4672 = vunpack.c.l.b16 %v3997
    %v4673 = vunpack.c.h.b16 %v3997
    %v4674 = vunpack.c.l.b16 %v3998
    %v4675 = vunpack.c.h.b16 %v3998
    %v4676 = vunpack.c.l.b16 %v3999
    %v4677 = vunpack.c.h.b16 %v3999
    %v4678 = vunpack.c.l.b16 %v4000
    %v4679 = vunpack.c.h.b16 %v4000
    %v4680 = vunpack.c.l.b16 %v4001
    %v4681 = vunpack.c.h.b16 %v4001
    %v4682 = vunpack.c.l.b16 %v4002
    %v4683 = vunpack.c.h.b16 %v4002
    %v4684 = vunpack.c.l.b16 %v4003
    %v4685 = vunpack.c.h.b16 %v4003
    %v4686 = vunpack.c.l.b16 %v4004
    %v4687 = vunpack.c.h.b16 %v4004
    %v4688 = vunpack.c.l.b16 %v4005
    %v4689 = vunpack.c.h.b16 %v4005
    %v4690 = vunpack.c.l.b16 %v4006
    %v4691 = vunpack.c.h.b16 %v4006
    %v4692 = vunpack.c.l.b16 %v4007
    %v4693 = vunpack.c.h.b16 %v4007
    %v4694 = vunpack.c.l.b16 %v4008
    %v4695 = vunpack.c.h.b16 %v4008
    %v4696 = vunpack.c.l.b16 %v4009
    %v4697 = vunpack.c.h.b16 %v4009
    %v4698 = vunpack.c.l.b16 %v4010
    %v4699 = vunpack.c.h.b16 %v4010
    %v4700 = vunpack.c.l.b16 %v4011
    %v4701 = vunpack.c.h.b16 %v4011
    %v4702 = vunpack.c.l.b16 %v4012
    %v4703 = vunpack.c.h.b16 %v4012
    %v4704 = vunpack.c.l.b16 %v4013
    %v4705 = vunpack.c.h.b16 %v4013
    %v4706 = vunpack.c.l.b16 %v4014
    %v4707 = vunpack.c.h.b16 %v4014
    %v4708 = vunpack.c.l.b16 %v4015
    %v4709 = vunpack.c.h.b16 %v4015
    %v4710 = vunpack.c.l.b16 %v4016
    %v4711 = vunpack.c.h.b16 %v4016
    %v4712 = vunpack.c.l.b16 %v4017
    %v4713 = vunpack.c.h.b16 %v4017
    %v4714 = vunpack.c.l.b16 %v4018
    %v4715 = vunpack.c.h.b16 %v4018
    %v4716 = vunpack.c.l.b16 %v4019
    %v4717 = vunpack.c.h.b16 %v4019
    %v4718 = vunpack.c.l.b16 %v4020
    %v4719 = vunpack.c.h.b16 %v4020
    %v4720 = vunpack.c.l.b16 %v4021
    %v4721 = vunpack.c.h.b16 %v4021
    %v4722 = vunpack.c.l.b16 %v4022
    %v4723 = vunpack.c.h.b16 %v4022
    %v4724 = vunpack.c.l.b16 %v4023
    %v4725 = vunpack.c.h.b16 %v4023
    %v4726 = vunpack.c.l.b16 %v4024
    %v4727 = vunpack.c.h.b16 %v4024
    %v4728 = vunpack.c.l.b16 %v4025
    %v4729 = vunpack.c.h.b16 %v4025
    %v4730 = vunpack.c.l.b16 %v4026
    %v4731 = vunpack.c.h.b16 %v4026
    %v4732 = vunpack.c.l.b16 %v4027
    %v4733 = vunpack.c.h.b16 %v4027
    %v4734 = vunpack.c.l.b16 %v4028
    %v4735 = vunpack.c.h.b16 %v4028
    %v4736 = vunpack.c.l.b16 %v4029
    %v4737 = vunpack.c.h.b16 %v4029
    %v4738 = vunpack.c.l.b16 %v4030
    %v4739 = vunpack.c.h.b16 %v4030
    %v4740 = vunpack.c.l.b16 %v4031
    %v4741 = vunpack.c.h.b16 %v4031
    %v4742 = vunpack.c.l.b16 %v4032
    %v4743 = vunpack.c.h.b16 %v4032
    %v4744 = vunpack.c.l.b16 %v4033
    %v4745 = vunpack.c.h.b16 %v4033
    %v4746 = vunpack.c.l.b16 %v4034
    %v4747 = vunpack.c.h.b16 %v4034
    %v4748 = vunpack.c.l.b16 %v4035
    %v4749 = vunpack.c.h.b16 %v4035
    %v4750 = vunpack.c.l.b16 %v4036
    %v4751 = vunpack.c.h.b16 %v4036
    %v4752 = vunpack.c.l.b16 %v4037
    %v4753 = vunpack.c.h.b16 %v4037
    %v4754 = vunpack.c.l.b16 %v4038
    %v4755 = vunpack.c.h.b16 %v4038
    %v4756 = vunpack.c.l.b16 %v4039
    %v4757 = vunpack.c.h.b16 %v4039
    %v4758 = vunpack.c.l.b16 %v4040
    %v4759 = vunpack.c.h.b16 %v4040
    %v4760 = vunpack.c.l.b16 %v4041
    %v4761 = vunpack.c.h.b16 %v4041
    %v4762 = vunpack.c.l.b16 %v4042
    %v4763 = vunpack.c.h.b16 %v4042
    %v4764 = vunpack.c.l.b16 %v4043
    %v4765 = vunpack.c.h.b16 %v4043
    %v4766 = vunpack.c.l.b16 %v4044
    %v4767 = vunpack.c.h.b16 %v4044
    %v4768 = vunpack.c.l.b16 %v4045
    %v4769 = vunpack.c.h.b16 %v4045
    %v4770 = vunpack.c.l.b16 %v4046
    %v4771 = vunpack.c.h.b16 %v4046
    %v4772 = vunpack.c.l.b16 %v4047
    %v4773 = vunpack.c.h.b16 %v4047
    %v4774 = vunpack.c.l.b16 %v4048
    %v4775 = vunpack.c.h.b16 %v4048
    %v4776 = vunpack.c.l.b16 %v4049
    %v4777 = vunpack.c.h.b16 %v4049
    %v4778 = vunpack.c.l.b16 %v4050
    %v4779 = vunpack.c.h.b16 %v4050
    %v4780 = vunpack.c.l.b16 %v4051
    %v4781 = vunpack.c.h.b16 %v4051
    %v4782 = vunpack.c.l.b16 %v4052
    %v4783 = vunpack.c.h.b16 %v4052
    %v4784 = vunpack.c.l.b16 %v4053
    %v4785 = vunpack.c.h.b16 %v4053
    %v4786 = vunpack.c.l.b16 %v4054
    %v4787 = vunpack.c.h.b16 %v4054
    %v4788 = vunpack.c.l.b16 %v4055
    %v4789 = vunpack.c.h.b16 %v4055
    %v4790 = vunpack.c.l.b16 %v4056
    %v4791 = vunpack.c.h.b16 %v4056
    %v4792 = vunpack.c.l.b16 %v4057
    %v4793 = vunpack.c.h.b16 %v4057
    %v4794 = vunpack.c.l.b16 %v4058
    %v4795 = vunpack.c.h.b16 %v4058
    %v4796 = vunpack.c.l.b16 %v4059
    %v4797 = vunpack.c.h.b16 %v4059
    %v4798 = vunpack.c.l.b16 %v4060
    %v4799 = vunpack.c.h.b16 %v4060
    %v4800 = vunpack.c.l.b16 %v4061
    %v4801 = vunpack.c.h.b16 %v4061
    %v4802 = vunpack.c.l.b16 %v4062
    %v4803 = vunpack.c.h.b16 %v4062
    %v4804 = vunpack.c.l.b16 %v4063
    %v4805 = vunpack.c.h.b16 %v4063
    %v4806 = vunpack.c.l.b16 %v4064
    %v4807 = vunpack.c.h.b16 %v4064
    %v4808 = vunpack.c.l.b16 %v4065
    %v4809 = vunpack.c.h.b16 %v4065
    %v4810 = vunpack.c.l.b16 %v4066
    %v4811 = vunpack.c.h.b16 %v4066
    %v4812 = vunpack.c.l.b16 %v4067
    %v4813 = vunpack.c.h.b16 %v4067
    %v4814 = vunpack.c.l.b16 %v4068
    %v4815 = vunpack.c.h.b16 %v4068
    %v4816 = vunpack.c.l.b16 %v4069
    %v4817 = vunpack.c.h.b16 %v4069
    %v4818 = vunpack.c.l.b16 %v4070
    %v4819 = vunpack.c.h.b16 %v4070
    %v4820 = vunpack.c.l.b16 %v4071
    %v4821 = vunpack.c.h.b16 %v4071
    %v4822 = vunpack.c.l.b16 %v4072
    %v4823 = vunpack.c.h.b16 %v4072
    %v4824 = vunpack.c.l.b16 %v4073
    %v4825 = vunpack.c.h.b16 %v4073
    %v4826 = vunpack.c.l.b16 %v4074
    %v4827 = vunpack.c.h.b16 %v4074
    %v4828 = vunpack.c.l.b16 %v4075
    %v4829 = vunpack.c.h.b16 %v4075
    %v4830 = vunpack.c.l.b16 %v4076
    %v4831 = vunpack.c.h.b16 %v4076
    %v4832 = vunpack.c.l.b16 %v4077
    %v4833 = vunpack.c.h.b16 %v4077
    %v4834 = vunpack.c.l.b16 %v4078
    %v4835 = vunpack.c.h.b16 %v4078
    %v4836 = vunpack.c.l.b16 %v4079
    %v4837 = vunpack.c.h.b16 %v4079
    %v4838 = vunpack.c.l.b16 %v4080
    %v4839 = vunpack.c.h.b16 %v4080
    %v4840 = vunpack.c.l.b16 %v4081
    %v4841 = vunpack.c.h.b16 %v4081
    %v4842 = vunpack.c.l.b16 %v4082
    %v4843 = vunpack.c.h.b16 %v4082
    %v4844 = vunpack.c.l.b16 %v4083
    %v4845 = vunpack.c.h.b16 %v4083
    %v4846 = vunpack.c.l.b16 %v4084
    %v4847 = vunpack.c.h.b16 %v4084
    %v4848 = vunpack.c.l.b16 %v4085
    %v4849 = vunpack.c.h.b16 %v4085
    %v4850 = vunpack.c.l.b16 %v4086
    %v4851 = vunpack.c.h.b16 %v4086
    %v4852 = vunpack.c.l.b16 %v4087
    %v4853 = vunpack.c.h.b16 %v4087
    %v4854 = vunpack.c.l.b16 %v4088
    %v4855 = vunpack.c.h.b16 %v4088
    %v4856 = vunpack.c.l.b16 %v4089
    %v4857 = vunpack.c.h.b16 %v4089
    %v4858 = vunpack.c.l.b16 %v4090
    %v4859 = vunpack.c.h.b16 %v4090
    %v4860 = vunpack.c.l.b16 %v4091
    %v4861 = vunpack.c.h.b16 %v4091
    %v4862 = vunpack.c.l.b16 %v4092
    %v4863 = vunpack.c.h.b16 %v4092
    %v4864 = vunpack.c.l.b16 %v4093
    %v4865 = vunpack.c.h.b16 %v4093
    %v4866 = vunpack.c.l.b16 %v4094
    %v4867 = vunpack.c.h.b16 %v4094
    %v4868 = vunpack.c.l.b16 %v4095
    %v4869 = vunpack.c.h.b16 %v4095
    %v4870 = vunpack.c.l.b16 %v4096
    %v4871 = vunpack.c.h.b16 %v4096
    %v4872 = vunpack.c.l.b16 %v4097
    %v4873 = vunpack.c.h.b16 %v4097
    %v4874 = vunpack.c.l.b16 %v4098
    %v4875 = vunpack.c.h.b16 %v4098
    %v4876 = vunpack.c.l.b16 %v4099
    %v4877 = vunpack.c.h.b16 %v4099
    %v4878 = vunpack.c.l.b16 %v4100
    %v4879 = vunpack.c.h.b16 %v4100
    %v4880 = vunpack.c.l.b16 %v4101
    %v4881 = vunpack.c.h.b16 %v4101
    %v4882 = vunpack.c.l.b16 %v4102
    %v4883 = vunpack.c.h.b16 %v4102
    %v4884 = vunpack.c.l.b16 %v4103
    %v4885 = vunpack.c.h.b16 %v4103
    %v4886 = vunpack.c.l.b16 %v4104
    %v4887 = vunpack.c.h.b16 %v4104
    %v4888 = vunpack.c.l.b16 %v4105
    %v4889 = vunpack.c.h.b16 %v4105
    %v4890 = vunpack.c.l.b16 %v4106
    %v4891 = vunpack.c.h.b16 %v4106
    %v4892 = vunpack.c.l.b16 %v4107
    %v4893 = vunpack.c.h.b16 %v4107
    %v4894 = vunpack.c.l.b16 %v4108
    %v4895 = vunpack.c.h.b16 %v4108
    %v4896 = vunpack.c.l.b16 %v4109
    %v4897 = vunpack.c.h.b16 %v4109
    %v4898 = vunpack.c.l.b16 %v4110
    %v4899 = vunpack.c.h.b16 %v4110
    %v4900 = vunpack.c.l.b16 %v4111
    %v4901 = vunpack.c.h.b16 %v4111
    %v4902 = vunpack.c.l.b16 %v4112
    %v4903 = vunpack.c.h.b16 %v4112
    %v4904 = vunpack.c.l.b16 %v4113
    %v4905 = vunpack.c.h.b16 %v4113
    %v4906 = vunpack.c.l.b16 %v4114
    %v4907 = vunpack.c.h.b16 %v4114
    %v4908 = vunpack.c.l.b16 %v4115
    %v4909 = vunpack.c.h.b16 %v4115
    %v4910 = vunpack.c.l.b16 %v4116
    %v4911 = vunpack.c.h.b16 %v4116
    %v4912 = vunpack.c.l.b16 %v4117
    %v4913 = vunpack.c.h.b16 %v4117
    %v4914 = vunpack.c.l.b16 %v4118
    %v4915 = vunpack.c.h.b16 %v4118
    %v4916 = vunpack.c.l.b16 %v4119
    %v4917 = vunpack.c.h.b16 %v4119
    %v4918 = vunpack.c.l.b16 %v4120
    %v4919 = vunpack.c.h.b16 %v4120
    %v4920 = vunpack.c.l.b16 %v4121
    %v4921 = vunpack.c.h.b16 %v4121
    %v4922 = vunpack.c.l.b16 %v4122
    %v4923 = vunpack.c.h.b16 %v4122
    %v4924 = vunpack.c.l.b16 %v4123
    %v4925 = vunpack.c.h.b16 %v4123
    %v4926 = vunpack.c.l.b16 %v4124
    %v4927 = vunpack.c.h.b16 %v4124
    %v4928 = vunpack.c.l.b16 %v4125
    %v4929 = vunpack.c.h.b16 %v4125
    %v4930 = vunpack.c.l.b16 %v4126
    %v4931 = vunpack.c.h.b16 %v4126
    %v4932 = vunpack.c.l.b16 %v4127
    %v4933 = vunpack.c.h.b16 %v4127
    %v4934 = vunpack.c.l.b16 %v4128
    %v4935 = vunpack.c.h.b16 %v4128
    %v4936 = vunpack.c.l.b16 %v4129
    %v4937 = vunpack.c.h.b16 %v4129
    %v4938 = vunpack.c.l.b16 %v4130
    %v4939 = vunpack.c.h.b16 %v4130
    %v4940 = vunpack.c.l.b16 %v4131
    %v4941 = vunpack.c.h.b16 %v4131
    %v4942 = vunpack.c.l.b16 %v4132
    %v4943 = vunpack.c.h.b16 %v4132
    %v4944 = vunpack.c.l.b16 %v4133
    %v4945 = vunpack.c.h.b16 %v4133
    %v4946 = vunpack.c.l.b16 %v4134
    %v4947 = vunpack.c.h.b16 %v4134
    %v4948 = vunpack.c.l.b16 %v4135
    %v4949 = vunpack.c.h.b16 %v4135
    %v4950 = vunpack.c.l.b16 %v4136
    %v4951 = vunpack.c.h.b16 %v4136
    %v4952 = vunpack.c.l.b16 %v4137
    %v4953 = vunpack.c.h.b16 %v4137
    %v4954 = vunpack.c.l.b16 %v4138
    %v4955 = vunpack.c.h.b16 %v4138
    %v4956 = vunpack.c.l.b16 %v4139
    %v4957 = vunpack.c.h.b16 %v4139
    %v4958 = vunpack.c.l.b16 %v4140
    %v4959 = vunpack.c.h.b16 %v4140
    %v4960 = vunpack.c.l.b16 %v4141
    %v4961 = vunpack.c.h.b16 %v4141
    %v4962 = vunpack.c.l.b16 %v4142
    %v4963 = vunpack.c.h.b16 %v4142
    %v4964 = vunpack.c.l.b16 %v4143
    %v4965 = vunpack.c.h.b16 %v4143
    %v4966 = vunpack.c.l.b16 %v4144
    %v4967 = vunpack.c.h.b16 %v4144
    %v4968 = vunpack.c.l.b16 %v4145
    %v4969 = vunpack.c.h.b16 %v4145
    %v4970 = vunpack.c.l.b16 %v4146
    %v4971 = vunpack.c.h.b16 %v4146
    %v4972 = vunpack.c.l.b16 %v4147
    %v4973 = vunpack.c.h.b16 %v4147
    %v4974 = vunpack.c.l.b16 %v4148
    %v4975 = vunpack.c.h.b16 %v4148
    %v4976 = vunpack.c.l.b16 %v4149
    %v4977 = vunpack.c.h.b16 %v4149
    %v4978 = vunpack.c.l.b16 %v4150
    %v4979 = vunpack.c.h.b16 %v4150
    %v4980 = vunpack.c.l.b16 %v4151
    %v4981 = vunpack.c.h.b16 %v4151
    %v4982 = vunpack.c.l.b16 %v4152
    %v4983 = vunpack.c.h.b16 %v4152
    %v4984 = vunpack.c.l.b16 %v4153
    %v4985 = vunpack.c.h.b16 %v4153
    %v4986 = vunpack.c.l.b16 %v4154
    %v4987 = vunpack.c.h.b16 %v4154
    %v4988 = vunpack.c.l.b16 %v4155
    %v4989 = vunpack.c.h.b16 %v4155
    %v4990 = vunpack.c.l.b16 %v4156
    %v4991 = vunpack.c.h.b16 %v4156
    %v4992 = vunpack.c.l.b16 %v4157
    %v4993 = vunpack.c.h.b16 %v4157
    %v4994 = vunpack.c.l.b16 %v4158
    %v4995 = vunpack.c.h.b16 %v4158
    %v4996 = vunpack.c.l.b16 %v4159
    %v4997 = vunpack.c.h.b16 %v4159
    %v4998 = vunpack.c.l.b16 %v4160
    %v4999 = vunpack.c.h.b16 %v4160
    %v5000 = vunpack.c.l.b16 %v4161
    %v5001 = vunpack.c.h.b16 %v4161
    %v5002 = vunpack.c.l.b16 %v4162
    %v5003 = vunpack.c.h.b16 %v4162
    %v5004 = vunpack.c.l.b16 %v4163
    %v5005 = vunpack.c.h.b16 %v4163
    %v5006 = vunpack.c.l.b16 %v4164
    %v5007 = vunpack.c.h.b16 %v4164
    %v5008 = vunpack.c.l.b16 %v4165
    %v5009 = vunpack.c.h.b16 %v4165
    %v5010 = vunpack.c.l.b16 %v4166
    %v5011 = vunpack.c.h.b16 %v4166
    %v5012 = vunpack.c.l.b16 %v4167
    %v5013 = vunpack.c.h.b16 %v4167
    %v5014 = vunpack.c.l.b16 %v4168
    %v5015 = vunpack.c.h.b16 %v4168
    %v5016 = vunpack.c.l.b16 %v4169
    %v5017 = vunpack.c.h.b16 %v4169
    %v5018 = vunpack.c.l.b16 %v4170
    %v5019 = vunpack.c.h.b16 %v4170
    %v5020 = vunpack.c.l.b16 %v4171
    %v5021 = vunpack.c.h.b16 %v4171
    %v5022 = vunpack.c.l.b16 %v4172
    %v5023 = vunpack.c.h.b16 %v4172
    %v5024 = vunpack.c.l.b16 %v4173
    %v5025 = vunpack.c.h.b16 %v4173
    %v5026 = vunpack.c.l.b16 %v4174
    %v5027 = vunpack.c.h.b16 %v4174
    %v5028 = vunpack.c.l.b16 %v4175
    %v5029 = vunpack.c.h.b16 %v4175
    %v5030 = vunpack.c.l.b16 %v4176
    %v5031 = vunpack.c.h.b16 %v4176
    %v5032 = vunpack.c.l.b16 %v4177
    %v5033 = vunpack.c.h.b16 %v4177
    %v5034 = vunpack.c.l.b16 %v4178
    %v5035 = vunpack.c.h.b16 %v4178
    %v5036 = vunpack.c.l.b16 %v4179
    %v5037 = vunpack.c.h.b16 %v4179
    %v5038 = vunpack.c.l.b16 %v4180
    %v5039 = vunpack.c.h.b16 %v4180
    %v5040 = vunpack.c.l.b16 %v4181
    %v5041 = vunpack.c.h.b16 %v4181
    %v5042 = vunpack.c.l.b16 %v4182
    %v5043 = vunpack.c.h.b16 %v4182
    %v5044 = vunpack.c.l.b16 %v4183
    %v5045 = vunpack.c.h.b16 %v4183
    %v5046 = vunpack.c.l.b16 %v4184
    %v5047 = vunpack.c.h.b16 %v4184
    %v5048 = vunpack.c.l.b16 %v4185
    %v5049 = vunpack.c.h.b16 %v4185
    %v5050 = vunpack.c.l.b16 %v4186
    %v5051 = vunpack.c.h.b16 %v4186
    %v5052 = vunpack.c.l.b16 %v4187
    %v5053 = vunpack.c.h.b16 %v4187
    %v5054 = vunpack.c.l.b16 %v4188
    %v5055 = vunpack.c.h.b16 %v4188
    %v5056 = vunpack.c.l.b16 %v4189
    %v5057 = vunpack.c.h.b16 %v4189
    %v5058 = vunpack.c.l.b16 %v4190
    %v5059 = vunpack.c.h.b16 %v4190
    %v5060 = vunpack.c.l.b16 %v4191
    %v5061 = vunpack.c.h.b16 %v4191
    %v5062 = vunpack.c.l.b16 %v4192
    %v5063 = vunpack.c.h.b16 %v4192
    %v5064 = vunpack.c.l.b16 %v4193
    %v5065 = vunpack.c.h.b16 %v4193
    %v5066 = vunpack.c.l.b16 %v4194
    %v5067 = vunpack.c.h.b16 %v4194
    %v5068 = vunpack.c.l.b16 %v4195
    %v5069 = vunpack.c.h.b16 %v4195
    %v5070 = vunpack.c.l.b16 %v4196
    %v5071 = vunpack.c.h.b16 %v4196
    %v5072 = vunpack.c.l.b16 %v4197
    %v5073 = vunpack.c.h.b16 %v4197
    %v5074 = vunpack.c.l.b16 %v4198
    %v5075 = vunpack.c.h.b16 %v4198
    %v5076 = vunpack.c.l.b16 %v4199
    %v5077 = vunpack.c.h.b16 %v4199
    %v5078 = vunpack.c.l.b16 %v4200
    %v5079 = vunpack.c.h.b16 %v4200
    %v5080 = vunpack.c.l.b16 %v4201
    %v5081 = vunpack.c.h.b16 %v4201
    %v5082 = vunpack.c.l.b16 %v4202
    %v5083 = vunpack.c.h.b16 %v4202
    %v5084 = vunpack.c.l.b16 %v4203
    %v5085 = vunpack.c.h.b16 %v4203
    %v5086 = vunpack.c.l.b16 %v4204
    %v5087 = vunpack.c.h.b16 %v4204
    %v5088 = vunpack.c.l.b16 %v4205
    %v5089 = vunpack.c.h.b16 %v4205
    %v5090 = vunpack.c.l.b16 %v4206
    %v5091 = vunpack.c.h.b16 %v4206
    %v5092 = vunpack.c.l.b16 %v4207
    %v5093 = vunpack.c.h.b16 %v4207
    %v5094 = vunpack.c.l.b16 %v4208
    %v5095 = vunpack.c.h.b16 %v4208
    %v5096 = vunpack.c.l.b16 %v4209
    %v5097 = vunpack.c.h.b16 %v4209
    %v5098 = vunpack.c.l.b16 %v4210
    %v5099 = vunpack.c.h.b16 %v4210
    %v5100 = vunpack.c.l.b16 %v4211
    %v5101 = vunpack.c.h.b16 %v4211
    %v5102 = vunpack.c.l.b16 %v4212
    %v5103 = vunpack.c.h.b16 %v4212
    %v5104 = vunpack.c.l.b16 %v4213
    %v5105 = vunpack.c.h.b16 %v4213
    %v5106 = vunpack.c.l.b16 %v4214
    %v5107 = vunpack.c.h.b16 %v4214
    %v5108 = vunpack.c.l.b16 %v4215
    %v5109 = vunpack.c.h.b16 %v4215
    %v5110 = vunpack.c.l.b16 %v4216
    %v5111 = vunpack.c.h.b16 %v4216
    %v5112 = vunpack.c.l.b16 %v4217
    %v5113 = vunpack.c.h.b16 %v4217
    %v5114 = vpack.c.b16 %v4544, %v4538
    %v5115 = vpack.c.b16 %v4545, %v4539
    %v5116 = vpack.c.b16 %v4546, %v4540
    %v5117 = vpack.c.b16 %v4547, %v4541
    %v5118 = vpack.c.b16 %v4548, %v4542
    %v5119 = vpack.c.b16 %v4549, %v4543
    %v5120 = vpack.c.b16 %v4556, %v4550
    %v5121 = vpack.c.b16 %v4557, %v4551
    %v5122 = vpack.c.b16 %v4558, %v4552
    %v5123 = vpack.c.b16 %v4559, %v4553
    %v5124 = vpack.c.b16 %v4560, %v4554
    %v5125 = vpack.c.b16 %v4561, %v4555
    %v5126 = vpack.c.b16 %v4568, %v4562
    %v5127 = vpack.c.b16 %v4569, %v4563
    %v5128 = vpack.c.b16 %v4570, %v4564
    %v5129 = vpack.c.b16 %v4571, %v4565
    %v5130 = vpack.c.b16 %v4572, %v4566
    %v5131 = vpack.c.b16 %v4573, %v4567
    %v5132 = vpack.c.b16 %v4580, %v4574
    %v5133 = vpack.c.b16 %v4581, %v4575
    %v5134 = vpack.c.b16 %v4582, %v4576
    %v5135 = vpack.c.b16 %v4583, %v4577
    %v5136 = vpack.c.b16 %v4584, %v4578
    %v5137 = vpack.c.b16 %v4585, %v4579
    %v5138 = vpack.c.b16 %v4592, %v4586
    %v5139 = vpack.c.b16 %v4593, %v4587
    %v5140 = vpack.c.b16 %v4594, %v4588
    %v5141 = vpack.c.b16 %v4595, %v4589
    %v5142 = vpack.c.b16 %v4596, %v4590
    %v5143 = vpack.c.b16 %v4597, %v4591
    %v5144 = vpack.c.b16 %v4604, %v4598
    %v5145 = vpack.c.b16 %v4605, %v4599
    %v5146 = vpack.c.b16 %v4606, %v4600
    %v5147 = vpack.c.b16 %v4607, %v4601
    %v5148 = vpack.c.b16 %v4608, %v4602
    %v5149 = vpack.c.b16 %v4609, %v4603
    %v5150 = vpack.c.b16 %v4616, %v4610
    %v5151 = vpack.c.b16 %v4617, %v4611
    %v5152 = vpack.c.b16 %v4618, %v4612
    %v5153 = vpack.c.b16 %v4619, %v4613
    %v5154 = vpack.c.b16 %v4620, %v4614
    %v5155 = vpack.c.b16 %v4621, %v4615
    %v5156 = vpack.c.b16 %v4628, %v4622
    %v5157 = vpack.c.b16 %v4629, %v4623
    %v5158 = vpack.c.b16 %v4630, %v4624
    %v5159 = vpack.c.b16 %v4631, %v4625
    %v5160 = vpack.c.b16 %v4632, %v4626
    %v5161 = vpack.c.b16 %v4633, %v4627
    %v5162 = vpack.c.b16 %v4640, %v4634
    %v5163 = vpack.c.b16 %v4641, %v4635
    %v5164 = vpack.c.b16 %v4642, %v4636
    %v5165 = vpack.c.b16 %v4643, %v4637
    %v5166 = vpack.c.b16 %v4644, %v4638
    %v5167 = vpack.c.b16 %v4645, %v4639
    %v5168 = vpack.c.b16 %v4652, %v4646
    %v5169 = vpack.c.b16 %v4653, %v4647
    %v5170 = vpack.c.b16 %v4654, %v4648
    %v5171 = vpack.c.b16 %v4655, %v4649
    %v5172 = vpack.c.b16 %v4656, %v4650
    %v5173 = vpack.c.b16 %v4657, %v4651
    %v5174 = vpack.c.b16 %v4664, %v4658
    %v5175 = vpack.c.b16 %v4665, %v4659
    %v5176 = vpack.c.b16 %v4666, %v4660
    %v5177 = vpack.c.b16 %v4667, %v4661
    %v5178 = vpack.c.b16 %v4668, %v4662
    %v5179 = vpack.c.b16 %v4669, %v4663
    %v5180 = vpack.c.b16 %v4676, %v4670
    %v5181 = vpack.c.b16 %v4677, %v4671
    %v5182 = vpack.c.b16 %v4678, %v4672
    %v5183 = vpack.c.b16 %v4679, %v4673
    %v5184 = vpack.c.b16 %v4680, %v4674
    %v5185 = vpack.c.b16 %v4681, %v4675
    %v5186 = vpack.c.b16 %v4688, %v4682
    %v5187 = vpack.c.b16 %v4689, %v4683
    %v5188 = vpack.c.b16 %v4690, %v4684
    %v5189 = vpack.c.b16 %v4691, %v4685
    %v5190 = vpack.c.b16 %v4692, %v4686
    %v5191 = vpack.c.b16 %v4693, %v4687
    %v5192 = vpack.c.b16 %v4700, %v4694
    %v5193 = vpack.c.b16 %v4701, %v4695
    %v5194 = vpack.c.b16 %v4702, %v4696
    %v5195 = vpack.c.b16 %v4703, %v4697
    %v5196 = vpack.c.b16 %v4704, %v4698
    %v5197 = vpack.c.b16 %v4705, %v4699
    %v5198 = vpack.c.b16 %v4712, %v4706
    %v5199 = vpack.c.b16 %v4713, %v4707
    %v5200 = vpack.c.b16 %v4714, %v4708
    %v5201 = vpack.c.b16 %v4715, %v4709
    %v5202 = vpack.c.b16 %v4716, %v4710
    %v5203 = vpack.c.b16 %v4717, %v4711
    %v5204 = vpack.c.b16 %v4724, %v4718
    %v5205 = vpack.c.b16 %v4725, %v4719
    %v5206 = vpack.c.b16 %v4726, %v4720
    %v5207 = vpack.c.b16 %v4727, %v4721
    %v5208 = vpack.c.b16 %v4728, %v4722
    %v5209 = vpack.c.b16 %v4729, %v4723
    %v5210 = vpack.c.b16 %v4736, %v4730
    %v5211 = vpack.c.b16 %v4737, %v4731
    %v5212 = vpack.c.b16 %v4738, %v4732
    %v5213 = vpack.c.b16 %v4739, %v4733
    %v5214 = vpack.c.b16 %v4740, %v4734
    %v5215 = vpack.c.b16 %v4741, %v4735
    %v5216 = vpack.c.b16 %v4748, %v4742
    %v5217 = vpack.c.b16 %v4749, %v4743
    %v5218 = vpack.c.b16 %v4750, %v4744
    %v5219 = vpack.c.b16 %v4751, %v4745
    %v5220 = vpack.c.b16 %v4752, %v4746
    %v5221 = vpack.c.b16 %v4753, %v4747
    %v5222 = vpack.c.b16 %v4760, %v4754
    %v5223 = vpack.c.b16 %v4761, %v4755
    %v5224 = vpack.c.b16 %v4762, %v4756
    %v5225 = vpack.c.b16 %v4763, %v4757
    %v5226 = vpack.c.b16 %v4764, %v4758
    %v5227 = vpack.c.b16 %v4765, %v4759
    %v5228 = vpack.c.b16 %v4772, %v4766
    %v5229 = vpack.c.b16 %v4773, %v4767
    %v5230 = vpack.c.b16 %v4774, %v4768
    %v5231 = vpack.c.b16 %v4775, %v4769
    %v5232 = vpack.c.b16 %v4776, %v4770
    %v5233 = vpack.c.b16 %v4777, %v4771
    %v5234 = vpack.c.b16 %v4784, %v4778
    %v5235 = vpack.c.b16 %v4785, %v4779
    %v5236 = vpack.c.b16 %v4786, %v4780
    %v5237 = vpack.c.b16 %v4787, %v4781
    %v5238 = vpack.c.b16 %v4788, %v4782
    %v5239 = vpack.c.b16 %v4789, %v4783
    %v5240 = vpack.c.b16 %v4796, %v4790
    %v5241 = vpack.c.b16 %v4797, %v4791
    %v5242 = vpack.c.b16 %v4798, %v4792
    %v5243 = vpack.c.b16 %v4799, %v4793
    %v5244 = vpack.c.b16 %v4800, %v4794
    %v5245 = vpack.c.b16 %v4801, %v4795
    %v5246 = vpack.c.b16 %v4808, %v4802
    %v5247 = vpack.c.b16 %v4809, %v4803
    %v5248 = vpack.c.b16 %v4810, %v4804
    %v5249 = vpack.c.b16 %v4811, %v4805
    %v5250 = vpack.c.b16 %v4812, %v4806
    %v5251 = vpack.c.b16 %v4813, %v4807
    %v5252 = vpack.c.b16 %v4820, %v4814
    %v5253 = vpack.c.b16 %v4821, %v4815
    %v5254 = vpack.c.b16 %v4822, %v4816
    %v5255 = vpack.c.b16 %v4823, %v4817
    %v5256 = vpack.c.b16 %v4824, %v4818
    %v5257 = vpack.c.b16 %v4825, %v4819
    %v5258 = vpack.c.b16 %v4832, %v4826
    %v5259 = vpack.c.b16 %v4833, %v4827
    %v5260 = vpack.c.b16 %v4834, %v4828
    %v5261 = vpack.c.b16 %v4835, %v4829
    %v5262 = vpack.c.b16 %v4836, %v4830
    %v5263 = vpack.c.b16 %v4837, %v4831
    %v5264 = vpack.c.b16 %v4844, %v4838
    %v5265 = vpack.c.b16 %v4845, %v4839
    %v5266 = vpack.c.b16 %v4846, %v4840
    %v5267 = vpack.c.b16 %v4847, %v4841
    %v5268 = vpack.c.b16 %v4848, %v4842
    %v5269 = vpack.c.b16 %v4849, %v4843
    %v5270 = vpack.c.b16 %v4856, %v4850
    %v5271 = vpack.c.b16 %v4857, %v4851
    %v5272 = vpack.c.b16 %v4858, %v4852
    %v5273 = vpack.c.b16 %v4859, %v4853
    %v5274 = vpack.c.b16 %v4860, %v4854
    %v5275 = vpack.c.b16 %v4861, %v4855
    %v5276 = vpack.c.b16 %v4868, %v4862
    %v5277 = vpack.c.b16 %v4869, %v4863
    %v5278 = vpack.c.b16 %v4870, %v4864
    %v5279 = vpack.c.b16 %v4871, %v4865
    %v5280 = vpack.c.b16 %v4872, %v4866
    %v5281 = vpack.c.b16 %v4873, %v4867
    %v5282 = vpack.c.b16 %v4880, %v4874
    %v5283 = vpack.c.b16 %v4881, %v4875
    %v5284 = vpack.c.b16 %v4882, %v4876
    %v5285 = vpack.c.b16 %v4883, %v4877
    %v5286 = vpack.c.b16 %v4884, %v4878
    %v5287 = vpack.c.b16 %v4885, %v4879
    %v5288 = vpack.c.b16 %v4892, %v4886
    %v5289 = vpack.c.b16 %v4893, %v4887
    %v5290 = vpack.c.b16 %v4894, %v4888
    %v5291 = vpack.c.b16 %v4895, %v4889
    %v5292 = vpack.c.b16 %v4896, %v4890
    %v5293 = vpack.c.b16 %v4897, %v4891
    %v5294 = vpack.c.b16 %v4904, %v4898
    %v5295 = vpack.c.b16 %v4905, %v4899
    %v5296 = vpack.c.b16 %v4906, %v4900
    %v5297 = vpack.c.b16 %v4907, %v4901
    %v5298 = vpack.c.b16 %v4908, %v4902
    %v5299 = vpack.c.b16 %v4909, %v4903
    %v5300 = vpack.c.b16 %v4916, %v4910
    %v5301 = vpack.c.b16 %v4917, %v4911
    %v5302 = vpack.c.b16 %v4918, %v4912
    %v5303 = vpack.c.b16 %v4919, %v4913
    %v5304 = vpack.c.b16 %v4920, %v4914
    %v5305 = vpack.c.b16 %v4921, %v4915
    %v5306 = vpack.c.b16 %v4928, %v4922
    %v5307 = vpack.c.b16 %v4929, %v4923
    %v5308 = vpack.c.b16 %v4930, %v4924
    %v5309 = vpack.c.b16 %v4931, %v4925
    %v5310 = vpack.c.b16 %v4932, %v4926
    %v5311 = vpack.c.b16 %v4933, %v4927
    %v5312 = vpack.c.b16 %v4940, %v4934
    %v5313 = vpack.c.b16 %v4941, %v4935
    %v5314 = vpack.c.b16 %v4942, %v4936
    %v5315 = vpack.c.b16 %v4943, %v4937
    %v5316 = vpack.c.b16 %v4944, %v4938
    %v5317 = vpack.c.b16 %v4945, %v4939
    %v5318 = vpack.c.b16 %v4952, %v4946
    %v5319 = vpack.c.b16 %v4953, %v4947
    %v5320 = vpack.c.b16 %v4954, %v4948
    %v5321 = vpack.c.b16 %v4955, %v4949
    %v5322 = vpack.c.b16 %v4956, %v4950
    %v5323 = vpack.c.b16 %v4957, %v4951
    %v5324 = vpack.c.b16 %v4964, %v4958
    %v5325 = vpack.c.b16 %v4965, %v4959
    %v5326 = vpack.c.b16 %v4966, %v4960
    %v5327 = vpack.c.b16 %v4967, %v4961
    %v5328 = vpack.c.b16 %v4968, %v4962
    %v5329 = vpack.c.b16 %v4969, %v4963
    %v5330 = vpack.c.b16 %v4976, %v4970
    %v5331 = vpack.c.b16 %v4977, %v4971
    %v5332 = vpack.c.b16 %v4978, %v4972
    %v5333 = vpack.c.b16 %v4979, %v4973
    %v5334 = vpack.c.b16 %v4980, %v4974
    %v5335 = vpack.c.b16 %v4981, %v4975
    %v5336 = vpack.c.b16 %v4988, %v4982
    %v5337 = vpack.c.b16 %v4989, %v4983
    %v5338 = vpack.c.b16 %v4990, %v4984
    %v5339 = vpack.c.b16 %v4991, %v4985
    %v5340 = vpack.c.b16 %v4992, %v4986
    %v5341 = vpack.c.b16 %v4993, %v4987
    %v5342 = vpack.c.b16 %v5000, %v4994
    %v5343 = vpack.c.b16 %v5001, %v4995
    %v5344 = vpack.c.b16 %v5002, %v4996
    %v5345 = vpack.c.b16 %v5003, %v4997
    %v5346 = vpack.c.b16 %v5004, %v4998
    %v5347 = vpack.c.b16 %v5005, %v4999
    %v5348 = vpack.c.b16 %v5012, %v5006
    %v5349 = vpack.c.b16 %v5013, %v5007
    %v5350 = vpack.c.b16 %v5014, %v5008
    %v5351 = vpack.c.b16 %v5015, %v5009
    %v5352 = vpack.c.b16 %v5016, %v5010
    %v5353 = vpack.c.b16 %v5017, %v5011
    %v5354 = vpack.c.b16 %v5024, %v5018
    %v5355 = vpack.c.b16 %v5025, %v5019
    %v5356 = vpack.c.b16 %v5026, %v5020
    %v5357 = vpack.c.b16 %v5027, %v5021
    %v5358 = vpack.c.b16 %v5028, %v5022
    %v5359 = vpack.c.b16 %v5029, %v5023
    %v5360 = vpack.c.b16 %v5036, %v5030
    %v5361 = vpack.c.b16 %v5037, %v5031
    %v5362 = vpack.c.b16 %v5038, %v5032
    %v5363 = vpack.c.b16 %v5039, %v5033
    %v5364 = vpack.c.b16 %v5040, %v5034
    %v5365 = vpack.c.b16 %v5041, %v5035
    %v5366 = vpack.c.b16 %v5048, %v5042
    %v5367 = vpack.c.b16 %v5049, %v5043
    %v5368 = vpack.c.b16 %v5050, %v5044
    %v5369 = vpack.c.b16 %v5051, %v5045
    %v5370 = vpack.c.b16 %v5052, %v5046
    %v5371 = vpack.c.b16 %v5053, %v5047
    %v5372 = vpack.c.b16 %v5060, %v5054
    %v5373 = vpack.c.b16 %v5061, %v5055
    %v5374 = vpack.c.b16 %v5062, %v5056
    %v5375 = vpack.c.b16 %v5063, %v5057
    %v5376 = vpack.c.b16 %v5064, %v5058
    %v5377 = vpack.c.b16 %v5065, %v5059
    %v5378 = vpack.c.b16 %v5072, %v5066
    %v5379 = vpack.c.b16 %v5073, %v5067
    %v5380 = vpack.c.b16 %v5074, %v5068
    %v5381 = vpack.c.b16 %v5075, %v5069
    %v5382 = vpack.c.b16 %v5076, %v5070
    %v5383 = vpack.c.b16 %v5077, %v5071
    %v5384 = vpack.c.b16 %v5084, %v5078
    %v5385 = vpack.c.b16 %v5085, %v5079
    %v5386 = vpack.c.b16 %v5086, %v5080
    %v5387 = vpack.c.b16 %v5087, %v5081
    %v5388 = vpack.c.b16 %v5088, %v5082
    %v5389 = vpack.c.b16 %v5089, %v5083
    %v5390 = vpack.c.b16 %v5096, %v5090
    %v5391 = vpack.c.b16 %v5097, %v5091
    %v5392 = vpack.c.b16 %v5098, %v5092
    %v5393 = vpack.c.b16 %v5099, %v5093
    %v5394 = vpack.c.b16 %v5100, %v5094
    %v5395 = vpack.c.b16 %v5101, %v5095
    %v5396 = vpack.c.b16 %v5108, %v5102
    %v5397 = vpack.c.b16 %v5109, %v5103
    %v5398 = vpack.c.b16 %v5110, %v5104
    %v5399 = vpack.c.b16 %v5111, %v5105
    %v5400 = vpack.c.b16 %v5112, %v5106
    %v5401 = vpack.c.b16 %v5113, %v5107
    %5690 = vmatprep.subr.bf16.mxu0 %v5115
    %5691 = vmatpush1.bf16.msra.mxu0 %v5114
    %5692 = vmatprep.subr.bf16.mxu0 %v5121
    %5693 = vmatpush1.bf16.msra.mxu0 %v5120
    %5694 = vmatprep.subr.bf16.mxu0 %v5127
    %5695 = vmatpush1.bf16.msra.mxu0 %v5126
    %5696 = vmatprep.subr.bf16.mxu0 %v5133
    %5697 = vmatpush1.bf16.msra.mxu0 %v5132
    %5698 = vmatprep.subr.bf16.mxu0 %v5139
    %5699 = vmatpush1.bf16.msra.mxu0 %v5138
    %5700 = vmatprep.subr.bf16.mxu0 %v5145
    %5701 = vmatpush1.bf16.msra.mxu0 %v5144
    %5702 = vmatprep.subr.bf16.mxu0 %v5151
    %5703 = vmatpush1.bf16.msra.mxu0 %v5150
    %5704 = vmatprep.subr.bf16.mxu0 %v5157
    %5705 = vmatpush1.bf16.msra.mxu0 %v5156
    %5706 = vmatprep.subr.bf16.mxu0 %v5163
    %5707 = vmatpush1.bf16.msra.mxu0 %v5162
    %5708 = vmatprep.subr.bf16.mxu0 %v5169
    %5709 = vmatpush1.bf16.msra.mxu0 %v5168
    %5710 = vmatprep.subr.bf16.mxu0 %v5175
    %5711 = vmatpush1.bf16.msra.mxu0 %v5174
    %5712 = vmatprep.subr.bf16.mxu0 %v5181
    %5713 = vmatpush1.bf16.msra.mxu0 %v5180
    %5714 = vmatprep.subr.bf16.mxu0 %v5187
    %5715 = vmatpush1.bf16.msra.mxu0 %v5186
    %5716 = vmatprep.subr.bf16.mxu0 %v5193
    %5717 = vmatpush1.bf16.msra.mxu0 %v5192
    %5718 = vmatprep.subr.bf16.mxu0 %v5199
    %5719 = vmatpush1.bf16.msra.mxu0 %v5198
    %5720 = vmatprep.subr.bf16.mxu0 %v5205
    %5721 = vmatpush1.bf16.msra.mxu0 %v5204
    %5722 = vmatprep.mubr.bf16.mxu0 %v3925
    %5723 = vmatmul.mubr.bf16.gmra.mrb[0].mxu0 %v3924
    %v5724 = vpop.f32.mrb[0].mxu0
    %v5725 = vadd.f32 %v4223, %v5724
    %v5726 = vpop.f32.mrb[0].mxu0
    %v5727 = vadd.f32 %v4227, %v5726
    %v5728 = vpop.f32.mrb[0].mxu0
    %v5729 = vpop.f32.mrb[0].mxu0
    %5730 = vdwg.mxu0
    %5731 = vmatprep.subr.bf16.mxu0 %v5211
    %5732 = vmatpush1.bf16.msra.mxu0 %v5210
    %5733 = vmatprep.subr.bf16.mxu0 %v5217
    %5734 = vmatpush1.bf16.msra.mxu0 %v5216
    %5735 = vmatprep.subr.bf16.mxu0 %v5223
    %5736 = vmatpush1.bf16.msra.mxu0 %v5222
    %5737 = vmatprep.subr.bf16.mxu0 %v5229
    %5738 = vmatpush1.bf16.msra.mxu0 %v5228
    %5739 = vmatprep.subr.bf16.mxu0 %v5235
    %5740 = vmatpush1.bf16.msra.mxu0 %v5234
    %5741 = vmatprep.subr.bf16.mxu0 %v5241
    %5742 = vmatpush1.bf16.msra.mxu0 %v5240
    %5743 = vmatprep.subr.bf16.mxu0 %v5247
    %5744 = vmatpush1.bf16.msra.mxu0 %v5246
    %5745 = vmatprep.subr.bf16.mxu0 %v5253
    %5746 = vmatpush1.bf16.msra.mxu0 %v5252
    %5747 = vmatprep.subr.bf16.mxu0 %v5259
    %5748 = vmatpush1.bf16.msra.mxu0 %v5258
    %5749 = vmatprep.subr.bf16.mxu0 %v5265
    %5750 = vmatpush1.bf16.msra.mxu0 %v5264
    %5751 = vmatprep.subr.bf16.mxu0 %v5271
    %5752 = vmatpush1.bf16.msra.mxu0 %v5270
    %5753 = vmatprep.subr.bf16.mxu0 %v5277
    %5754 = vmatpush1.bf16.msra.mxu0 %v5276
    %5755 = vmatprep.subr.bf16.mxu0 %v5283
    %5756 = vmatpush1.bf16.msra.mxu0 %v5282
    %5757 = vmatprep.subr.bf16.mxu0 %v5289
    %5758 = vmatpush1.bf16.msra.mxu0 %v5288
    %5759 = vmatprep.subr.bf16.mxu0 %v5295
    %5760 = vmatpush1.bf16.msra.mxu0 %v5294
    %5761 = vmatprep.subr.bf16.mxu0 %v5301
    %5762 = vmatpush1.bf16.msra.mxu0 %v5300
    %5763 = vmatprep.mubr.bf16.mxu0 %v3927
    %5764 = vmatmul.mubr.bf16.gmra.mrb[0].mxu0 %v3926
    %v5765 = vpop.f32.mrb[0].mxu0
    %v5766 = vadd.f32 %v5725, %v5765
    %v5767 = vpop.f32.mrb[0].mxu0
    %v5768 = vadd.f32 %v5727, %v5767
    %v5769 = vpop.f32.mrb[0].mxu0
    %v5770 = vpop.f32.mrb[0].mxu0
    %5771 = vdwg.mxu0
    %5772 = vmatprep.subr.bf16.mxu0 %v5307
    %5773 = vmatpush1.bf16.msra.mxu0 %v5306
    %5774 = vmatprep.subr.bf16.mxu0 %v5313
    %5775 = vmatpush1.bf16.msra.mxu0 %v5312
    %5776 = vmatprep.subr.bf16.mxu0 %v5319
    %5777 = vmatpush1.bf16.msra.mxu0 %v5318
    %5778 = vmatprep.subr.bf16.mxu0 %v5325
    %5779 = vmatpush1.bf16.msra.mxu0 %v5324
    %5780 = vmatprep.subr.bf16.mxu0 %v5331
    %5781 = vmatpush1.bf16.msra.mxu0 %v5330
    %5782 = vmatprep.subr.bf16.mxu0 %v5337
    %5783 = vmatpush1.bf16.msra.mxu0 %v5336
    %5784 = vmatprep.subr.bf16.mxu0 %v5343
    %5785 = vmatpush1.bf16.msra.mxu0 %v5342
    %5786 = vmatprep.subr.bf16.mxu0 %v5349
    %5787 = vmatpush1.bf16.msra.mxu0 %v5348
    %5788 = vmatprep.subr.bf16.mxu0 %v5355
    %5789 = vmatpush1.bf16.msra.mxu0 %v5354
    %5790 = vmatprep.subr.bf16.mxu0 %v5361
    %5791 = vmatpush1.bf16.msra.mxu0 %v5360
    %5792 = vmatprep.subr.bf16.mxu0 %v5367
    %5793 = vmatpush1.bf16.msra.mxu0 %v5366
    %5794 = vmatprep.subr.bf16.mxu0 %v5373
    %5795 = vmatpush1.bf16.msra.mxu0 %v5372
    %5796 = vmatprep.subr.bf16.mxu0 %v5379
    %5797 = vmatpush1.bf16.msra.mxu0 %v5378
    %5798 = vmatprep.subr.bf16.mxu0 %v5385
    %5799 = vmatpush1.bf16.msra.mxu0 %v5384
    %5800 = vmatprep.subr.bf16.mxu0 %v5391
    %5801 = vmatpush1.bf16.msra.mxu0 %v5390
    %5802 = vmatprep.subr.bf16.mxu0 %v5397
    %5803 = vmatpush1.bf16.msra.mxu0 %v5396
    %5804 = vmatprep.mubr.bf16.mxu0 %v3929
    %5805 = vmatmul.mubr.bf16.gmra.mrb[0].mxu0 %v3928
    %v5806 = vpop.f32.mrb[0].mxu0
    %v5807 = vadd.f32 %v5766, %v5806
    %v5808 = vpop.f32.mrb[0].mxu0
    %v5809 = vadd.f32 %v5768, %v5808
    %v5810 = vpop.f32.mrb[0].mxu0
    %v5811 = vpop.f32.mrb[0].mxu0
    %5812 = vdwg.mxu0
    %5813 = vmatprep.subr.bf16.mxu0 %v5117
    %5814 = vmatpush1.bf16.msra.mxu0 %v5116
    %5815 = vmatprep.subr.bf16.mxu0 %v5123
    %5816 = vmatpush1.bf16.msra.mxu0 %v5122
    %5817 = vmatprep.subr.bf16.mxu0 %v5129
    %5818 = vmatpush1.bf16.msra.mxu0 %v5128
    %5819 = vmatprep.subr.bf16.mxu0 %v5135
    %5820 = vmatpush1.bf16.msra.mxu0 %v5134
    %5821 = vmatprep.subr.bf16.mxu0 %v5141
    %5822 = vmatpush1.bf16.msra.mxu0 %v5140
    %5823 = vmatprep.subr.bf16.mxu0 %v5147
    %5824 = vmatpush1.bf16.msra.mxu0 %v5146
    %5825 = vmatprep.subr.bf16.mxu0 %v5153
    %5826 = vmatpush1.bf16.msra.mxu0 %v5152
    %5827 = vmatprep.subr.bf16.mxu0 %v5159
    %5828 = vmatpush1.bf16.msra.mxu0 %v5158
    %5829 = vmatprep.subr.bf16.mxu0 %v5165
    %5830 = vmatpush1.bf16.msra.mxu0 %v5164
    %5831 = vmatprep.subr.bf16.mxu0 %v5171
    %5832 = vmatpush1.bf16.msra.mxu0 %v5170
    %5833 = vmatprep.subr.bf16.mxu0 %v5177
    %5834 = vmatpush1.bf16.msra.mxu0 %v5176
    %5835 = vmatprep.subr.bf16.mxu0 %v5183
    %5836 = vmatpush1.bf16.msra.mxu0 %v5182
    %5837 = vmatprep.subr.bf16.mxu0 %v5189
    %5838 = vmatpush1.bf16.msra.mxu0 %v5188
    %5839 = vmatprep.subr.bf16.mxu0 %v5195
    %5840 = vmatpush1.bf16.msra.mxu0 %v5194
    %5841 = vmatprep.subr.bf16.mxu0 %v5201
    %5842 = vmatpush1.bf16.msra.mxu0 %v5200
    %5843 = vmatprep.subr.bf16.mxu0 %v5207
    %5844 = vmatpush1.bf16.msra.mxu0 %v5206
    %5845 = vmatprep.mubr.bf16.mxu0 %v3925
    %5846 = vmatmul.mubr.bf16.gmra.mrb[0].mxu0 %v3924
    %v5847 = vpop.f32.mrb[0].mxu0
    %v5848 = vadd.f32 %v4231, %v5847
    %v5849 = vpop.f32.mrb[0].mxu0
    %v5850 = vadd.f32 %v4235, %v5849
    %v5851 = vpop.f32.mrb[0].mxu0
    %v5852 = vpop.f32.mrb[0].mxu0
    %5853 = vdwg.mxu0
    %5854 = vmatprep.subr.bf16.mxu0 %v5213
    %5855 = vmatpush1.bf16.msra.mxu0 %v5212
    %5856 = vmatprep.subr.bf16.mxu0 %v5219
    %5857 = vmatpush1.bf16.msra.mxu0 %v5218
    %5858 = vmatprep.subr.bf16.mxu0 %v5225
    %5859 = vmatpush1.bf16.msra.mxu0 %v5224
    %5860 = vmatprep.subr.bf16.mxu0 %v5231
    %5861 = vmatpush1.bf16.msra.mxu0 %v5230
    %5862 = vmatprep.subr.bf16.mxu0 %v5237
    %5863 = vmatpush1.bf16.msra.mxu0 %v5236
    %5864 = vmatprep.subr.bf16.mxu0 %v5243
    %5865 = vmatpush1.bf16.msra.mxu0 %v5242
    %5866 = vmatprep.subr.bf16.mxu0 %v5249
    %5867 = vmatpush1.bf16.msra.mxu0 %v5248
    %5868 = vmatprep.subr.bf16.mxu0 %v5255
    %5869 = vmatpush1.bf16.msra.mxu0 %v5254
    %5870 = vmatprep.subr.bf16.mxu0 %v5261
    %5871 = vmatpush1.bf16.msra.mxu0 %v5260
    %5872 = vmatprep.subr.bf16.mxu0 %v5267
    %5873 = vmatpush1.bf16.msra.mxu0 %v5266
    %5874 = vmatprep.subr.bf16.mxu0 %v5273
    %5875 = vmatpush1.bf16.msra.mxu0 %v5272
    %5876 = vmatprep.subr.bf16.mxu0 %v5279
    %5877 = vmatpush1.bf16.msra.mxu0 %v5278
    %5878 = vmatprep.subr.bf16.mxu0 %v5285
    %5879 = vmatpush1.bf16.msra.mxu0 %v5284
    %5880 = vmatprep.subr.bf16.mxu0 %v5291
    %5881 = vmatpush1.bf16.msra.mxu0 %v5290
    %5882 = vmatprep.subr.bf16.mxu0 %v5297
    %5883 = vmatpush1.bf16.msra.mxu0 %v5296
    %5884 = vmatprep.subr.bf16.mxu0 %v5303
    %5885 = vmatpush1.bf16.msra.mxu0 %v5302
    %5886 = vmatprep.mubr.bf16.mxu0 %v3927
    %5887 = vmatmul.mubr.bf16.gmra.mrb[0].mxu0 %v3926
    %v5888 = vpop.f32.mrb[0].mxu0
    %v5889 = vadd.f32 %v5848, %v5888
    %v5890 = vpop.f32.mrb[0].mxu0
    %v5891 = vadd.f32 %v5850, %v5890
    %v5892 = vpop.f32.mrb[0].mxu0
    %v5893 = vpop.f32.mrb[0].mxu0
    %5894 = vdwg.mxu0
    %5895 = vmatprep.subr.bf16.mxu0 %v5309
    %5896 = vmatpush1.bf16.msra.mxu0 %v5308
    %5897 = vmatprep.subr.bf16.mxu0 %v5315
    %5898 = vmatpush1.bf16.msra.mxu0 %v5314
    %5899 = vmatprep.subr.bf16.mxu0 %v5321
    %5900 = vmatpush1.bf16.msra.mxu0 %v5320
    %5901 = vmatprep.subr.bf16.mxu0 %v5327
    %5902 = vmatpush1.bf16.msra.mxu0 %v5326
    %5903 = vmatprep.subr.bf16.mxu0 %v5333
    %5904 = vmatpush1.bf16.msra.mxu0 %v5332
    %5905 = vmatprep.subr.bf16.mxu0 %v5339
    %5906 = vmatpush1.bf16.msra.mxu0 %v5338
    %5907 = vmatprep.subr.bf16.mxu0 %v5345
    %5908 = vmatpush1.bf16.msra.mxu0 %v5344
    %5909 = vmatprep.subr.bf16.mxu0 %v5351
    %5910 = vmatpush1.bf16.msra.mxu0 %v5350
    %5911 = vmatprep.subr.bf16.mxu0 %v5357
    %5912 = vmatpush1.bf16.msra.mxu0 %v5356
    %5913 = vmatprep.subr.bf16.mxu0 %v5363
    %5914 = vmatpush1.bf16.msra.mxu0 %v5362
    %5915 = vmatprep.subr.bf16.mxu0 %v5369
    %5916 = vmatpush1.bf16.msra.mxu0 %v5368
    %5917 = vmatprep.subr.bf16.mxu0 %v5375
    %5918 = vmatpush1.bf16.msra.mxu0 %v5374
    %5919 = vmatprep.subr.bf16.mxu0 %v5381
    %5920 = vmatpush1.bf16.msra.mxu0 %v5380
    %5921 = vmatprep.subr.bf16.mxu0 %v5387
    %5922 = vmatpush1.bf16.msra.mxu0 %v5386
    %5923 = vmatprep.subr.bf16.mxu0 %v5393
    %5924 = vmatpush1.bf16.msra.mxu0 %v5392
    %5925 = vmatprep.subr.bf16.mxu0 %v5399
    %5926 = vmatpush1.bf16.msra.mxu0 %v5398
    %5927 = vmatprep.mubr.bf16.mxu0 %v3929
    %5928 = vmatmul.mubr.bf16.gmra.mrb[0].mxu0 %v3928
    %v5929 = vpop.f32.mrb[0].mxu0
    %v5930 = vadd.f32 %v5889, %v5929
    %v5931 = vpop.f32.mrb[0].mxu0
    %v5932 = vadd.f32 %v5891, %v5931
    %v5933 = vpop.f32.mrb[0].mxu0
    %v5934 = vpop.f32.mrb[0].mxu0
    %5935 = vdwg.mxu0
    %5936 = vmatprep.subr.bf16.mxu0 %v5119
    %5937 = vmatpush1.bf16.msra.mxu0 %v5118
    %5938 = vmatprep.subr.bf16.mxu0 %v5125
    %5939 = vmatpush1.bf16.msra.mxu0 %v5124
    %5940 = vmatprep.subr.bf16.mxu0 %v5131
    %5941 = vmatpush1.bf16.msra.mxu0 %v5130
    %5942 = vmatprep.subr.bf16.mxu0 %v5137
    %5943 = vmatpush1.bf16.msra.mxu0 %v5136
    %5944 = vmatprep.subr.bf16.mxu0 %v5143
    %5945 = vmatpush1.bf16.msra.mxu0 %v5142
    %5946 = vmatprep.subr.bf16.mxu0 %v5149
    %5947 = vmatpush1.bf16.msra.mxu0 %v5148
    %5948 = vmatprep.subr.bf16.mxu0 %v5155
    %5949 = vmatpush1.bf16.msra.mxu0 %v5154
    %5950 = vmatprep.subr.bf16.mxu0 %v5161
    %5951 = vmatpush1.bf16.msra.mxu0 %v5160
    %5952 = vmatprep.subr.bf16.mxu0 %v5167
    %5953 = vmatpush1.bf16.msra.mxu0 %v5166
    %5954 = vmatprep.subr.bf16.mxu0 %v5173
    %5955 = vmatpush1.bf16.msra.mxu0 %v5172
    %5956 = vmatprep.subr.bf16.mxu0 %v5179
    %5957 = vmatpush1.bf16.msra.mxu0 %v5178
    %5958 = vmatprep.subr.bf16.mxu0 %v5185
    %5959 = vmatpush1.bf16.msra.mxu0 %v5184
    %5960 = vmatprep.subr.bf16.mxu0 %v5191
    %5961 = vmatpush1.bf16.msra.mxu0 %v5190
    %5962 = vmatprep.subr.bf16.mxu0 %v5197
    %5963 = vmatpush1.bf16.msra.mxu0 %v5196
    %5964 = vmatprep.subr.bf16.mxu0 %v5203
    %5965 = vmatpush1.bf16.msra.mxu0 %v5202
    %5966 = vmatprep.subr.bf16.mxu0 %v5209
    %5967 = vmatpush1.bf16.msra.mxu0 %v5208
    %5968 = vmatprep.mubr.bf16.mxu0 %v3925
    %5969 = vmatmul.mubr.bf16.gmra.mrb[0].mxu0 %v3924
    %v5970 = vpop.f32.mrb[0].mxu0
    %v5971 = vadd.f32 %v4239, %v5970
    %v5972 = vpop.f32.mrb[0].mxu0
    %v5973 = vadd.f32 %v4243, %v5972
    %v5974 = vpop.f32.mrb[0].mxu0
    %v5975 = vpop.f32.mrb[0].mxu0
    %5976 = vdwg.mxu0
    %5977 = vmatprep.subr.bf16.mxu0 %v5215
    %5978 = vmatpush1.bf16.msra.mxu0 %v5214
    %5979 = vmatprep.subr.bf16.mxu0 %v5221
    %5980 = vmatpush1.bf16.msra.mxu0 %v5220
    %5981 = vmatprep.subr.bf16.mxu0 %v5227
    %5982 = vmatpush1.bf16.msra.mxu0 %v5226
    %5983 = vmatprep.subr.bf16.mxu0 %v5233
    %5984 = vmatpush1.bf16.msra.mxu0 %v5232
    %5985 = vmatprep.subr.bf16.mxu0 %v5239
    %5986 = vmatpush1.bf16.msra.mxu0 %v5238
    %5987 = vmatprep.subr.bf16.mxu0 %v5245
    %5988 = vmatpush1.bf16.msra.mxu0 %v5244
    %5989 = vmatprep.subr.bf16.mxu0 %v5251
    %5990 = vmatpush1.bf16.msra.mxu0 %v5250
    %5991 = vmatprep.subr.bf16.mxu0 %v5257
    %5992 = vmatpush1.bf16.msra.mxu0 %v5256
    %5993 = vmatprep.subr.bf16.mxu0 %v5263
    %5994 = vmatpush1.bf16.msra.mxu0 %v5262
    %5995 = vmatprep.subr.bf16.mxu0 %v5269
    %5996 = vmatpush1.bf16.msra.mxu0 %v5268
    %5997 = vmatprep.subr.bf16.mxu0 %v5275
    %5998 = vmatpush1.bf16.msra.mxu0 %v5274
    %5999 = vmatprep.subr.bf16.mxu0 %v5281
    %6000 = vmatpush1.bf16.msra.mxu0 %v5280
    %6001 = vmatprep.subr.bf16.mxu0 %v5287
    %6002 = vmatpush1.bf16.msra.mxu0 %v5286
    %6003 = vmatprep.subr.bf16.mxu0 %v5293
    %6004 = vmatpush1.bf16.msra.mxu0 %v5292
    %6005 = vmatprep.subr.bf16.mxu0 %v5299
    %6006 = vmatpush1.bf16.msra.mxu0 %v5298
    %6007 = vmatprep.subr.bf16.mxu0 %v5305
    %6008 = vmatpush1.bf16.msra.mxu0 %v5304
    %6009 = vmatprep.mubr.bf16.mxu0 %v3927
    %6010 = vmatmul.mubr.bf16.gmra.mrb[0].mxu0 %v3926
    %v6011 = vpop.f32.mrb[0].mxu0
    %v6012 = vadd.f32 %v5971, %v6011
    %v6013 = vpop.f32.mrb[0].mxu0
    %v6014 = vadd.f32 %v5973, %v6013
    %v6015 = vpop.f32.mrb[0].mxu0
    %v6016 = vpop.f32.mrb[0].mxu0
    %6017 = vdwg.mxu0
    %6018 = vmatprep.subr.bf16.mxu0 %v5311
    %6019 = vmatpush1.bf16.msra.mxu0 %v5310
    %6020 = vmatprep.subr.bf16.mxu0 %v5317
    %6021 = vmatpush1.bf16.msra.mxu0 %v5316
    %6022 = vmatprep.subr.bf16.mxu0 %v5323
    %6023 = vmatpush1.bf16.msra.mxu0 %v5322
    %6024 = vmatprep.subr.bf16.mxu0 %v5329
    %6025 = vmatpush1.bf16.msra.mxu0 %v5328
    %6026 = vmatprep.subr.bf16.mxu0 %v5335
    %6027 = vmatpush1.bf16.msra.mxu0 %v5334
    %6028 = vmatprep.subr.bf16.mxu0 %v5341
    %6029 = vmatpush1.bf16.msra.mxu0 %v5340
    %6030 = vmatprep.subr.bf16.mxu0 %v5347
    %6031 = vmatpush1.bf16.msra.mxu0 %v5346
    %6032 = vmatprep.subr.bf16.mxu0 %v5353
    %6033 = vmatpush1.bf16.msra.mxu0 %v5352
    %6034 = vmatprep.subr.bf16.mxu0 %v5359
    %6035 = vmatpush1.bf16.msra.mxu0 %v5358
    %6036 = vmatprep.subr.bf16.mxu0 %v5365
    %6037 = vmatpush1.bf16.msra.mxu0 %v5364
    %6038 = vmatprep.subr.bf16.mxu0 %v5371
    %6039 = vmatpush1.bf16.msra.mxu0 %v5370
    %6040 = vmatprep.subr.bf16.mxu0 %v5377
    %6041 = vmatpush1.bf16.msra.mxu0 %v5376
    %6042 = vmatprep.subr.bf16.mxu0 %v5383
    %6043 = vmatpush1.bf16.msra.mxu0 %v5382
    %6044 = vmatprep.subr.bf16.mxu0 %v5389
    %6045 = vmatpush1.bf16.msra.mxu0 %v5388
    %6046 = vmatprep.subr.bf16.mxu0 %v5395
    %6047 = vmatpush1.bf16.msra.mxu0 %v5394
    %6048 = vmatprep.subr.bf16.mxu0 %v5401
    %6049 = vmatpush1.bf16.msra.mxu0 %v5400
    %6050 = vmatprep.mubr.bf16.mxu0 %v3929
    %6051 = vmatmul.mubr.bf16.gmra.mrb[0].mxu0 %v3928
    %v6052 = vpop.f32.mrb[0].mxu0
    %v6053 = vadd.f32 %v6012, %v6052
    %v6054 = vpop.f32.mrb[0].mxu0
    %v6055 = vadd.f32 %v6014, %v6054
    %v6056 = vpop.f32.mrb[0].mxu0
    %v6057 = vpop.f32.mrb[0].mxu0
    %6058 = vdwg.mxu0
    %v6059 = vmax.f32 %v5807, 0.0
    %v6060 = vmax.f32 %v5809, 0.0
    %v6061 = vmax.f32 %v5930, 0.0
    %v6062 = vmax.f32 %v5932, 0.0
    %v6063 = vmax.f32 %v6053, 0.0
    %v6064 = vmax.f32 %v6055, 0.0
    %v6065 = vpack.c.bf16 %v6059, %v6059
    %v6066 = vpack.c.bf16 %v6060, %v6060
    %v6067 = vpack.c.bf16 %v6061, %v6061
    %v6068 = vpack.c.bf16 %v6062, %v6062
    %v6069 = vpack.c.bf16 %v6063, %v6063
    %v6070 = vpack.c.bf16 %v6064, %v6064
    %v6071 = vld [vmem:[#allocation21] sm:$0xf]
    %v6072 = vld [vmem:[#allocation21 + $0x4] sm:$0xf]
    %v6073 = vld [vmem:[#allocation21 + $0x8] sm:$0xf]
    %v6074 = vld [vmem:[#allocation21 + $0xc] sm:$0xf]
    %v6075 = vld [vmem:[#allocation21 + $0x10] sm:$0xf]
    %v6076 = vld [vmem:[#allocation21 + $0x14] sm:$0xf]
    %v6077 = vld [vmem:[#allocation21 + $0x18] sm:$0xf]
    %v6078 = vld [vmem:[#allocation21 + $0x1c] sm:$0xf]
    %v6079 = vld [vmem:[#allocation21 + $0x20] sm:$0xf]
    %v6080 = vld [vmem:[#allocation21 + $0x24] sm:$0xf]
    %v6081 = vld [vmem:[#allocation21 + $0x28] sm:$0xf]
    %v6082 = vld [vmem:[#allocation21 + $0x2c] sm:$0xf]
    %v6083 = vld [vmem:[#allocation21 + $0x30] sm:$0xf]
    %v6084 = vld [vmem:[#allocation21 + $0x34] sm:$0xf]
    %v6085 = vld [vmem:[#allocation21 + $0x38] sm:$0xf]
    %v6086 = vld [vmem:[#allocation21 + $0x3c] sm:$0xf]
    %v6087 = vld [vmem:[#allocation21 + $0x40] sm:$0xf]
    %v6088 = vld [vmem:[#allocation21 + $0x44] sm:$0xf]
    %v6089 = vld [vmem:[#allocation21 + $0x48] sm:$0xf]
    %v6090 = vld [vmem:[#allocation21 + $0x4c] sm:$0xf]
    %v6091 = vld [vmem:[#allocation21 + $0x50] sm:$0xf]
    %v6092 = vld [vmem:[#allocation21 + $0x54] sm:$0xf]
    %v6093 = vld [vmem:[#allocation21 + $0x58] sm:$0xf]
    %v6094 = vld [vmem:[#allocation21 + $0x5c] sm:$0xf]
    %v6095 = vld [vmem:[#allocation21 + $0x60] sm:$0xf]
    %v6096 = vld [vmem:[#allocation21 + $0x64] sm:$0xf]
    %v6097 = vld [vmem:[#allocation21 + $0x68] sm:$0xf]
    %v6098 = vld [vmem:[#allocation21 + $0x6c] sm:$0xf]
    %v6099 = vld [vmem:[#allocation21 + $0x70] sm:$0xf]
    %v6100 = vld [vmem:[#allocation21 + $0x74] sm:$0xf]
    %v6101 = vld [vmem:[#allocation21 + $0x78] sm:$0xf]
    %v6102 = vld [vmem:[#allocation21 + $0x7c] sm:$0xf]
    %v6103 = vld [vmem:[#allocation21 + $0x80] sm:$0xf]
    %v6104 = vld [vmem:[#allocation21 + $0x84] sm:$0xf]
    %v6105 = vld [vmem:[#allocation21 + $0x88] sm:$0xf]
    %v6106 = vld [vmem:[#allocation21 + $0x8c] sm:$0xf]
    %v6107 = vld [vmem:[#allocation21 + $0x90] sm:$0xf]
    %v6108 = vld [vmem:[#allocation21 + $0x94] sm:$0xf]
    %v6109 = vld [vmem:[#allocation21 + $0x98] sm:$0xf]
    %v6110 = vld [vmem:[#allocation21 + $0x9c] sm:$0xf]
    %v6111 = vld [vmem:[#allocation21 + $0xa0] sm:$0xf]
    %v6112 = vld [vmem:[#allocation21 + $0xa4] sm:$0xf]
    %v6113 = vld [vmem:[#allocation21 + $0xa8] sm:$0xf]
    %v6114 = vld [vmem:[#allocation21 + $0xac] sm:$0xf]
    %v6115 = vld [vmem:[#allocation21 + $0xb0] sm:$0xf]
    %v6116 = vld [vmem:[#allocation21 + $0xb4] sm:$0xf]
    %v6117 = vld [vmem:[#allocation21 + $0xb8] sm:$0xf]
    %v6118 = vld [vmem:[#allocation21 + $0xbc] sm:$0xf]
    %v6119 = vld [vmem:[#allocation21 + $0xc0] sm:$0xf]
    %v6120 = vld [vmem:[#allocation21 + $0xc4] sm:$0xf]
    %v6121 = vld [vmem:[#allocation21 + $0xc8] sm:$0xf]
    %v6122 = vld [vmem:[#allocation21 + $0xcc] sm:$0xf]
    %v6123 = vld [vmem:[#allocation21 + $0xd0] sm:$0xf]
    %v6124 = vld [vmem:[#allocation21 + $0xd4] sm:$0xf]
    %v6125 = vld [vmem:[#allocation21 + $0xd8] sm:$0xf]
    %v6126 = vld [vmem:[#allocation21 + $0xdc] sm:$0xf]
    %v6127 = vld [vmem:[#allocation21 + $0xe0] sm:$0xf]
    %v6128 = vld [vmem:[#allocation21 + $0xe4] sm:$0xf]
    %v6129 = vld [vmem:[#allocation21 + $0xe8] sm:$0xf]
    %v6130 = vld [vmem:[#allocation21 + $0xec] sm:$0xf]
    %v6131 = vld [vmem:[#allocation21 + $0xf0] sm:$0xf]
    %v6132 = vld [vmem:[#allocation21 + $0xf4] sm:$0xf]
    %v6133 = vld [vmem:[#allocation21 + $0xf8] sm:$0xf]
    %v6134 = vld [vmem:[#allocation21 + $0xfc] sm:$0xf]
    %v6135 = vld [vmem:[#allocation21 + $0x100] sm:$0xf]
    %v6136 = vld [vmem:[#allocation21 + $0x104] sm:$0xf]
    %v6137 = vld [vmem:[#allocation21 + $0x108] sm:$0xf]
    %v6138 = vld [vmem:[#allocation21 + $0x10c] sm:$0xf]
    %v6139 = vld [vmem:[#allocation21 + $0x110] sm:$0xf]
    %v6140 = vld [vmem:[#allocation21 + $0x114] sm:$0xf]
    %v6141 = vld [vmem:[#allocation21 + $0x118] sm:$0xf]
    %v6142 = vld [vmem:[#allocation21 + $0x11c] sm:$0xf]
    %v6143 = vld [vmem:[#allocation21 + $0x120] sm:$0xf]
    %v6144 = vld [vmem:[#allocation21 + $0x124] sm:$0xf]
    %v6145 = vld [vmem:[#allocation21 + $0x128] sm:$0xf]
    %v6146 = vld [vmem:[#allocation21 + $0x12c] sm:$0xf]
    %v6147 = vld [vmem:[#allocation21 + $0x130] sm:$0xf]
    %v6148 = vld [vmem:[#allocation21 + $0x134] sm:$0xf]
    %v6149 = vld [vmem:[#allocation21 + $0x138] sm:$0xf]
    %v6150 = vld [vmem:[#allocation21 + $0x13c] sm:$0xf]
    %v6151 = vld [vmem:[#allocation21 + $0x140] sm:$0xf]
    %v6152 = vld [vmem:[#allocation21 + $0x144] sm:$0xf]
    %v6153 = vld [vmem:[#allocation21 + $0x148] sm:$0xf]
    %v6154 = vld [vmem:[#allocation21 + $0x14c] sm:$0xf]
    %v6155 = vld [vmem:[#allocation21 + $0x150] sm:$0xf]
    %v6156 = vld [vmem:[#allocation21 + $0x154] sm:$0xf]
    %v6157 = vld [vmem:[#allocation21 + $0x158] sm:$0xf]
    %v6158 = vld [vmem:[#allocation21 + $0x15c] sm:$0xf]
    %v6159 = vld [vmem:[#allocation21 + $0x160] sm:$0xf]
    %v6160 = vld [vmem:[#allocation21 + $0x164] sm:$0xf]
    %v6161 = vld [vmem:[#allocation21 + $0x168] sm:$0xf]
    %v6162 = vld [vmem:[#allocation21 + $0x16c] sm:$0xf]
    %v6163 = vld [vmem:[#allocation21 + $0x170] sm:$0xf]
    %v6164 = vld [vmem:[#allocation21 + $0x174] sm:$0xf]
    %v6165 = vld [vmem:[#allocation21 + $0x178] sm:$0xf]
    %v6166 = vld [vmem:[#allocation21 + $0x17c] sm:$0xf]
    %v6167 = vld [vmem:[#allocation23] sm:$0x1]
    %v6169 = vlaneseq
    %v6170 = vshrl.u32 %v6169, 7
    %v6171 = vsub.s32 0, %v6170
    %v6172 = vrot.slane %v6167, %v6171
    %v6270 = vunpack.c.l.b16 %v6071
    %v6271 = vunpack.c.l.b16 %v6072
    %v6272 = vunpack.c.l.b16 %v6073
    %v6273 = vunpack.c.l.b16 %v6074
    %v6274 = vunpack.c.l.b16 %v6075
    %v6275 = vunpack.c.l.b16 %v6076
    %v6276 = vunpack.c.l.b16 %v6077
    %v6277 = vunpack.c.l.b16 %v6078
    %v6278 = vunpack.c.l.b16 %v6079
    %v6279 = vunpack.c.l.b16 %v6080
    %v6280 = vunpack.c.l.b16 %v6081
    %v6281 = vunpack.c.l.b16 %v6082
    %v6282 = vunpack.c.l.b16 %v6083
    %v6283 = vunpack.c.l.b16 %v6084
    %v6284 = vunpack.c.l.b16 %v6085
    %v6285 = vunpack.c.l.b16 %v6086
    %v6286 = vunpack.c.l.b16 %v6087
    %v6287 = vunpack.c.l.b16 %v6088
    %v6288 = vunpack.c.l.b16 %v6089
    %v6289 = vunpack.c.l.b16 %v6090
    %v6290 = vunpack.c.l.b16 %v6091
    %v6291 = vunpack.c.l.b16 %v6092
    %v6292 = vunpack.c.l.b16 %v6093
    %v6293 = vunpack.c.l.b16 %v6094
    %v6294 = vunpack.c.l.b16 %v6095
    %v6295 = vunpack.c.l.b16 %v6096
    %v6296 = vunpack.c.l.b16 %v6097
    %v6297 = vunpack.c.l.b16 %v6098
    %v6298 = vunpack.c.l.b16 %v6099
    %v6299 = vunpack.c.l.b16 %v6100
    %v6300 = vunpack.c.l.b16 %v6101
    %v6301 = vunpack.c.l.b16 %v6102
    %v6302 = vunpack.c.l.b16 %v6103
    %v6303 = vunpack.c.l.b16 %v6104
    %v6304 = vunpack.c.l.b16 %v6105
    %v6305 = vunpack.c.l.b16 %v6106
    %v6306 = vunpack.c.l.b16 %v6107
    %v6307 = vunpack.c.l.b16 %v6108
    %v6308 = vunpack.c.l.b16 %v6109
    %v6309 = vunpack.c.l.b16 %v6110
    %v6310 = vunpack.c.l.b16 %v6111
    %v6311 = vunpack.c.l.b16 %v6112
    %v6312 = vunpack.c.l.b16 %v6113
    %v6313 = vunpack.c.l.b16 %v6114
    %v6314 = vunpack.c.l.b16 %v6115
    %v6315 = vunpack.c.l.b16 %v6116
    %v6316 = vunpack.c.l.b16 %v6117
    %v6317 = vunpack.c.l.b16 %v6118
    %v6318 = vunpack.c.l.b16 %v6119
    %v6319 = vunpack.c.l.b16 %v6120
    %v6320 = vunpack.c.l.b16 %v6121
    %v6321 = vunpack.c.l.b16 %v6122
    %v6322 = vunpack.c.l.b16 %v6123
    %v6323 = vunpack.c.l.b16 %v6124
    %v6324 = vunpack.c.l.b16 %v6125
    %v6325 = vunpack.c.l.b16 %v6126
    %v6326 = vunpack.c.l.b16 %v6127
    %v6327 = vunpack.c.l.b16 %v6128
    %v6328 = vunpack.c.l.b16 %v6129
    %v6329 = vunpack.c.l.b16 %v6130
    %v6330 = vunpack.c.l.b16 %v6131
    %v6331 = vunpack.c.l.b16 %v6132
    %v6332 = vunpack.c.l.b16 %v6133
    %v6333 = vunpack.c.l.b16 %v6134
    %v6334 = vunpack.c.l.b16 %v6135
    %v6335 = vunpack.c.l.b16 %v6136
    %v6336 = vunpack.c.l.b16 %v6137
    %v6337 = vunpack.c.l.b16 %v6138
    %v6338 = vunpack.c.l.b16 %v6139
    %v6339 = vunpack.c.l.b16 %v6140
    %v6340 = vunpack.c.l.b16 %v6141
    %v6341 = vunpack.c.l.b16 %v6142
    %v6342 = vunpack.c.l.b16 %v6143
    %v6343 = vunpack.c.l.b16 %v6144
    %v6344 = vunpack.c.l.b16 %v6145
    %v6345 = vunpack.c.l.b16 %v6146
    %v6346 = vunpack.c.l.b16 %v6147
    %v6347 = vunpack.c.l.b16 %v6148
    %v6348 = vunpack.c.l.b16 %v6149
    %v6349 = vunpack.c.l.b16 %v6150
    %v6350 = vunpack.c.l.b16 %v6151
    %v6351 = vunpack.c.l.b16 %v6152
    %v6352 = vunpack.c.l.b16 %v6153
    %v6353 = vunpack.c.l.b16 %v6154
    %v6354 = vunpack.c.l.b16 %v6155
    %v6355 = vunpack.c.l.b16 %v6156
    %v6356 = vunpack.c.l.b16 %v6157
    %v6357 = vunpack.c.l.b16 %v6158
    %v6358 = vunpack.c.l.b16 %v6159
    %v6359 = vunpack.c.l.b16 %v6160
    %v6360 = vunpack.c.l.b16 %v6161
    %v6361 = vunpack.c.l.b16 %v6162
    %v6362 = vunpack.c.l.b16 %v6163
    %v6363 = vunpack.c.l.b16 %v6164
    %v6364 = vunpack.c.l.b16 %v6165
    %v6365 = vunpack.c.l.b16 %v6166
    %v6366 = vpack.c.b16 %v6271, %v6270
    %v6367 = vpack.c.b16 %v6273, %v6272
    %v6368 = vpack.c.b16 %v6275, %v6274
    %v6369 = vpack.c.b16 %v6277, %v6276
    %v6370 = vpack.c.b16 %v6279, %v6278
    %v6371 = vpack.c.b16 %v6281, %v6280
    %v6372 = vpack.c.b16 %v6283, %v6282
    %v6373 = vpack.c.b16 %v6285, %v6284
    %v6374 = vpack.c.b16 %v6287, %v6286
    %v6375 = vpack.c.b16 %v6289, %v6288
    %v6376 = vpack.c.b16 %v6291, %v6290
    %v6377 = vpack.c.b16 %v6293, %v6292
    %v6378 = vpack.c.b16 %v6295, %v6294
    %v6379 = vpack.c.b16 %v6297, %v6296
    %v6380 = vpack.c.b16 %v6299, %v6298
    %v6381 = vpack.c.b16 %v6301, %v6300
    %v6382 = vpack.c.b16 %v6303, %v6302
    %v6383 = vpack.c.b16 %v6305, %v6304
    %v6384 = vpack.c.b16 %v6307, %v6306
    %v6385 = vpack.c.b16 %v6309, %v6308
    %v6386 = vpack.c.b16 %v6311, %v6310
    %v6387 = vpack.c.b16 %v6313, %v6312
    %v6388 = vpack.c.b16 %v6315, %v6314
    %v6389 = vpack.c.b16 %v6317, %v6316
    %v6390 = vpack.c.b16 %v6319, %v6318
    %v6391 = vpack.c.b16 %v6321, %v6320
    %v6392 = vpack.c.b16 %v6323, %v6322
    %v6393 = vpack.c.b16 %v6325, %v6324
    %v6394 = vpack.c.b16 %v6327, %v6326
    %v6395 = vpack.c.b16 %v6329, %v6328
    %v6396 = vpack.c.b16 %v6331, %v6330
    %v6397 = vpack.c.b16 %v6333, %v6332
    %v6398 = vpack.c.b16 %v6335, %v6334
    %v6399 = vpack.c.b16 %v6337, %v6336
    %v6400 = vpack.c.b16 %v6339, %v6338
    %v6401 = vpack.c.b16 %v6341, %v6340
    %v6402 = vpack.c.b16 %v6343, %v6342
    %v6403 = vpack.c.b16 %v6345, %v6344
    %v6404 = vpack.c.b16 %v6347, %v6346
    %v6405 = vpack.c.b16 %v6349, %v6348
    %v6406 = vpack.c.b16 %v6351, %v6350
    %v6407 = vpack.c.b16 %v6353, %v6352
    %v6408 = vpack.c.b16 %v6355, %v6354
    %v6409 = vpack.c.b16 %v6357, %v6356
    %v6410 = vpack.c.b16 %v6359, %v6358
    %v6411 = vpack.c.b16 %v6361, %v6360
    %v6412 = vpack.c.b16 %v6363, %v6362
    %v6413 = vpack.c.b16 %v6365, %v6364
    %6462 = vmatprep.subr.bf16.mxu0 0
    %6463 = vmatpush1.bf16.msra.mxu0 %v6366
    %6464 = vmatprep.subr.bf16.mxu0 0
    %6465 = vmatpush1.bf16.msra.mxu0 %v6367
    %6466 = vmatprep.subr.bf16.mxu0 0
    %6467 = vmatpush1.bf16.msra.mxu0 %v6368
    %6468 = vmatprep.subr.bf16.mxu0 0
    %6469 = vmatpush1.bf16.msra.mxu0 %v6369
    %6470 = vmatprep.subr.bf16.mxu0 0
    %6471 = vmatpush1.bf16.msra.mxu0 %v6370
    %6472 = vmatprep.subr.bf16.mxu0 0
    %6473 = vmatpush1.bf16.msra.mxu0 %v6371
    %6474 = vmatprep.subr.bf16.mxu0 0
    %6475 = vmatpush1.bf16.msra.mxu0 %v6372
    %6476 = vmatprep.subr.bf16.mxu0 0
    %6477 = vmatpush1.bf16.msra.mxu0 %v6373
    %6478 = vmatprep.subr.bf16.mxu0 0
    %6479 = vmatpush1.bf16.msra.mxu0 %v6374
    %6480 = vmatprep.subr.bf16.mxu0 0
    %6481 = vmatpush1.bf16.msra.mxu0 %v6375
    %6482 = vmatprep.subr.bf16.mxu0 0
    %6483 = vmatpush1.bf16.msra.mxu0 %v6376
    %6484 = vmatprep.subr.bf16.mxu0 0
    %6485 = vmatpush1.bf16.msra.mxu0 %v6377
    %6486 = vmatprep.subr.bf16.mxu0 0
    %6487 = vmatpush1.bf16.msra.mxu0 %v6378
    %6488 = vmatprep.subr.bf16.mxu0 0
    %6489 = vmatpush1.bf16.msra.mxu0 %v6379
    %6490 = vmatprep.subr.bf16.mxu0 0
    %6491 = vmatpush1.bf16.msra.mxu0 %v6380
    %6492 = vmatprep.subr.bf16.mxu0 0
    %6493 = vmatpush1.bf16.msra.mxu0 %v6381
    %6494 = vmatprep.mubr.bf16.mxu0 %v6066
    %6495 = vmatmul.mubr.bf16.gmra.mrb[0].mxu0 %v6065
    %v6496 = vpop.f32.mrb[0].mxu0
    %v6497 = vadd.f32 %v6172, %v6496
    %v6498 = vpop.f32.mrb[0].mxu0
    %v6499 = vpop.f32.mrb[0].mxu0
    %v6500 = vpop.f32.mrb[0].mxu0
    %6501 = vdwg.mxu0
    %6502 = vmatprep.subr.bf16.mxu0 0
    %6503 = vmatpush1.bf16.msra.mxu0 %v6382
    %6504 = vmatprep.subr.bf16.mxu0 0
    %6505 = vmatpush1.bf16.msra.mxu0 %v6383
    %6506 = vmatprep.subr.bf16.mxu0 0
    %6507 = vmatpush1.bf16.msra.mxu0 %v6384
    %6508 = vmatprep.subr.bf16.mxu0 0
    %6509 = vmatpush1.bf16.msra.mxu0 %v6385
    %6510 = vmatprep.subr.bf16.mxu0 0
    %6511 = vmatpush1.bf16.msra.mxu0 %v6386
    %6512 = vmatprep.subr.bf16.mxu0 0
    %6513 = vmatpush1.bf16.msra.mxu0 %v6387
    %6514 = vmatprep.subr.bf16.mxu0 0
    %6515 = vmatpush1.bf16.msra.mxu0 %v6388
    %6516 = vmatprep.subr.bf16.mxu0 0
    %6517 = vmatpush1.bf16.msra.mxu0 %v6389
    %6518 = vmatprep.subr.bf16.mxu0 0
    %6519 = vmatpush1.bf16.msra.mxu0 %v6390
    %6520 = vmatprep.subr.bf16.mxu0 0
    %6521 = vmatpush1.bf16.msra.mxu0 %v6391
    %6522 = vmatprep.subr.bf16.mxu0 0
    %6523 = vmatpush1.bf16.msra.mxu0 %v6392
    %6524 = vmatprep.subr.bf16.mxu0 0
    %6525 = vmatpush1.bf16.msra.mxu0 %v6393
    %6526 = vmatprep.subr.bf16.mxu0 0
    %6527 = vmatpush1.bf16.msra.mxu0 %v6394
    %6528 = vmatprep.subr.bf16.mxu0 0
    %6529 = vmatpush1.bf16.msra.mxu0 %v6395
    %6530 = vmatprep.subr.bf16.mxu0 0
    %6531 = vmatpush1.bf16.msra.mxu0 %v6396
    %6532 = vmatprep.subr.bf16.mxu0 0
    %6533 = vmatpush1.bf16.msra.mxu0 %v6397
    %6534 = vmatprep.mubr.bf16.mxu0 %v6068
    %6535 = vmatmul.mubr.bf16.gmra.mrb[0].mxu0 %v6067
    %v6536 = vpop.f32.mrb[0].mxu0
    %v6537 = vadd.f32 %v6497, %v6536
    %v6538 = vpop.f32.mrb[0].mxu0
    %v6539 = vpop.f32.mrb[0].mxu0
    %v6540 = vpop.f32.mrb[0].mxu0
    %6541 = vdwg.mxu0
    %6542 = vmatprep.subr.bf16.mxu0 0
    %6543 = vmatpush1.bf16.msra.mxu0 %v6398
    %6544 = vmatprep.subr.bf16.mxu0 0
    %6545 = vmatpush1.bf16.msra.mxu0 %v6399
    %6546 = vmatprep.subr.bf16.mxu0 0
    %6547 = vmatpush1.bf16.msra.mxu0 %v6400
    %6548 = vmatprep.subr.bf16.mxu0 0
    %6549 = vmatpush1.bf16.msra.mxu0 %v6401
    %6550 = vmatprep.subr.bf16.mxu0 0
    %6551 = vmatpush1.bf16.msra.mxu0 %v6402
    %6552 = vmatprep.subr.bf16.mxu0 0
    %6553 = vmatpush1.bf16.msra.mxu0 %v6403
    %6554 = vmatprep.subr.bf16.mxu0 0
    %6555 = vmatpush1.bf16.msra.mxu0 %v6404
    %6556 = vmatprep.subr.bf16.mxu0 0
    %6557 = vmatpush1.bf16.msra.mxu0 %v6405
    %6558 = vmatprep.subr.bf16.mxu0 0
    %6559 = vmatpush1.bf16.msra.mxu0 %v6406
    %6560 = vmatprep.subr.bf16.mxu0 0
    %6561 = vmatpush1.bf16.msra.mxu0 %v6407
    %6562 = vmatprep.subr.bf16.mxu0 0
    %6563 = vmatpush1.bf16.msra.mxu0 %v6408
    %6564 = vmatprep.subr.bf16.mxu0 0
    %6565 = vmatpush1.bf16.msra.mxu0 %v6409
    %6566 = vmatprep.subr.bf16.mxu0 0
    %6567 = vmatpush1.bf16.msra.mxu0 %v6410
    %6568 = vmatprep.subr.bf16.mxu0 0
    %6569 = vmatpush1.bf16.msra.mxu0 %v6411
    %6570 = vmatprep.subr.bf16.mxu0 0
    %6571 = vmatpush1.bf16.msra.mxu0 %v6412
    %6572 = vmatprep.subr.bf16.mxu0 0
    %6573 = vmatpush1.bf16.msra.mxu0 %v6413
    %6574 = vmatprep.mubr.bf16.mxu0 %v6070
    %6575 = vmatmul.mubr.bf16.gmra.mrb[0].mxu0 %v6069
    %v6576 = vpop.f32.mrb[0].mxu0
    %v6577 = vadd.f32 %v6537, %v6576
    %v6578 = vpop.f32.mrb[0].mxu0
    %v6579 = vpop.f32.mrb[0].mxu0
    %v6580 = vpop.f32.mrb[0].mxu0
    %6581 = vdwg.mxu0
    %v6582 = vtanh.pop %v6577
    %v6583 = vstv %s224
    %v6584 = vmul.f32 %v6583, %v6582
    %6585 = vst [vmem:[%s16] sm:$0xff] %v6584
    %6586 = vst [vmem:[#allocation24] sm:$0xff] %v3281
    %6587 = vst [vmem:[#allocation25] sm:$0xff] %v3290
    // Predicated region
    $region118: #{_vae_forward_impl.1} parent=1 // pred_check
      _
    $region119: #{_vae_forward_impl.1} parent=1 // pred_check_branch
      %6589 = sbr.rel (0) target = $region121
    $region120: #{_vae_forward_impl.1} parent=1 // pred_region
      _
    $region121: #{_vae_forward_impl.1} parent=1 // pred_fallthru
      _
    // Predicated region
    $region122: #{_vae_forward_impl.1} parent=1 // pred_check
      _
    $region123: #{_vae_forward_impl.1} parent=1 // pred_check_branch
      %6591 = sbr.rel (0) target = $region125
    $region124: #{_vae_forward_impl.1} parent=1 // pred_region
      %s6593 = ssub.s32 128, 128
      %6594 = vsyncadd [#allocation5], %s6593
      %s6596 = sshll.u32 [#allocation24], 4
      %s6597 = int_to_ptr.vmem [resolvable:$true] %s6596
      %6599 = dma.vmem_to_hbm [thread:$0]  %s6597, 128, %s17, [#allocation5]
    $region125: #{_vae_forward_impl.1} parent=1 // pred_fallthru
      _
    // Predicated region
    $region126: #{_vae_forward_impl.1} parent=1 // pred_check
      _
    $region127: #{_vae_forward_impl.1} parent=1 // pred_check_branch
      %6601 = sbr.rel (0) target = $region129
    $region128: #{_vae_forward_impl.1} parent=1 // pred_region
      %s6603 = ssub.s32 128, 128
      %6604 = vsyncadd [#allocation26], %s6603
      %s6606 = sshll.u32 [#allocation25], 4
      %s6607 = int_to_ptr.vmem [resolvable:$true] %s6606
      %6609 = dma.vmem_to_hbm [thread:$0]  %s6607, 128, %s18, [#allocation26]
    $region129: #{_vae_forward_impl.1} parent=1 // pred_fallthru
      _
    // Predicated region
    $region130: #{_vae_forward_impl.1} parent=1 // pred_check
      _
    $region131: #{_vae_forward_impl.1} parent=1 // pred_check_branch
      %6611 = sbr.rel (0) target = $region133
    $region132: #{_vae_forward_impl.1} parent=1 // pred_region
      _
    $region133: #{_vae_forward_impl.1} parent=1 // pred_fallthru
      _
    // Predicated region
    $region134: #{_vae_forward_impl.1} parent=1 // pred_check
      _
    $region135: #{_vae_forward_impl.1} parent=1 // pred_check_branch
      %6613 = sbr.rel (0) target = $region137
    $region136: #{_vae_forward_impl.1} parent=1 // pred_region
      %6614 = dma.done [#allocation5], 128
    $region137: #{_vae_forward_impl.1} parent=1 // pred_fallthru
      _
    // Predicated region
    $region138: #{_vae_forward_impl.1} parent=1 // pred_check
      _
    $region139: #{_vae_forward_impl.1} parent=1 // pred_check_branch
      %6616 = sbr.rel (0) target = $region141
    $region140: #{_vae_forward_impl.1} parent=1 // pred_region
      %6617 = dma.done [#allocation26], 128
    $region141: #{_vae_forward_impl.1} parent=1 // pred_fallthru
      _
    %6618 = vsyncpa [#allocation4], 1
    %6619 = vsyncpa [#allocation7], 1
    %6620 = vsyncpa [#allocation10], 1
    %6621 = vsyncpa [#allocation13], 1
    %6622 = vsyncpa [#allocation16], 1
    %6623 = vsyncpa [#allocation19], 1
    %6624 = vsyncpa [#allocation22], 1
    %6625 = vsyncpa [#allocation5], 1
    %6626 = vsyncpa [#allocation26], 1

</llo_original>
